<compile_context>
chip_gen: v7x
topology: tpu7x:2x2x1
jax: 0.10.0
libtpu: 0.0.40
codegen_flags: <defaults>
</compile_context>

<pallas_src>
import functools

import jax
import jax.numpy as jnp
import numpy as np
from jax.experimental import pallas as pl
from jax.experimental.pallas import tpu as pltpu


# ---------------------------------------------------------------------------
# Fused Pallas kernel: whole discriminator forward for one batch element.
# ---------------------------------------------------------------------------
def _fused_disc_kernel(p1_ref, w1_ref,
                       s2_ref, w2_ref, g2_ref, b2_ref,
                       s3_ref, w3_ref, g3_ref, b3_ref,
                       w4_ref, o_ref, *, taps2, taps3, alpha, eps):
    """One grid step == one batch element.

    p1_ref : (M1, K1)      bf16  layer-1 im2col patches (M1 = H1*W1, K1 = Cin*k1*k1)
    w1_ref : (K1, C1)      bf16
    s2_ref : (T2, M2, M1)  bf16  0/1 tap-selection matrices for conv2
    w2_ref : (T2, C1, C2)  bf16  per-tap conv2 weights
    g2/b2  : (1, C2)       f32   InstanceNorm affine (lane vectors)
    s3_ref : (T3, M3, M2)  bf16
    w3_ref : (T3, C2, C3)  bf16
    g3/b3  : (1, C3)       f32
    w4_ref : (M3, C3)      f32   final full-window 1-channel conv weights
    o_ref  : (1, 1)        f32
    """

    def lrelu(v):
        return jnp.where(v >= 0.0, v, alpha * v)

    def conv_tapped(act_bf16, s_ref, w_ref, taps):
        # conv == sum_t (S_t @ act) @ W_t ; S_t gathers the zero-padded, strided
        # input window for tap t (one nonzero per row), so it is an exact gather.
        acc = None
        for t in range(taps):
            gathered = jnp.dot(s_ref[t], act_bf16,
                               preferred_element_type=jnp.float32)
            part = jnp.dot(gathered.astype(jnp.bfloat16), w_ref[t],
                           preferred_element_type=jnp.float32)
            acc = part if acc is None else acc + part
        return acc

    def instance_norm(v, g_ref, b_ref):
        # Per-channel stats over the spatial (sublane) axis; biased variance
        # matches PyTorch InstanceNorm2d.  C stays dense in the lane dim.
        mean = jnp.mean(v, axis=0, keepdims=True)
        xc = v - mean
        var = jnp.mean(xc * xc, axis=0, keepdims=True)
        return xc * jax.lax.rsqrt(var + eps) * g_ref[...] + b_ref[...]

    # conv1 + LeakyReLU  (patches of the raw input precomputed outside)
    h1 = jnp.dot(p1_ref[...], w1_ref[...], preferred_element_type=jnp.float32)
    a1 = lrelu(h1).astype(jnp.bfloat16)                       # (M1, C1)

    # conv2 -> InstanceNorm -> LeakyReLU
    h2 = conv_tapped(a1, s2_ref, w2_ref, taps2)               # (M2, C2) f32
    a2 = lrelu(instance_norm(h2, g2_ref, b2_ref)).astype(jnp.bfloat16)

    # conv3 -> InstanceNorm -> LeakyReLU
    h3 = conv_tapped(a2, s3_ref, w3_ref, taps3)               # (M3, C3) f32
    a3 = lrelu(instance_norm(h3, g3_ref, b3_ref))             # keep f32

    # conv4: 1-channel conv over exactly the remaining map -> scalar reduction
    prod = a3 * w4_ref[...]                                   # (M3, C3) f32
    o_ref[...] = jnp.sum(jnp.sum(prod, axis=0, keepdims=True),
                         axis=1, keepdims=True)               # (1, 1)


# ---------------------------------------------------------------------------
# Host-side helpers (tiny, one-off glue)
# ---------------------------------------------------------------------------
def _out_hw(h, w, k, stride, pad):
    return (h + 2 * pad - k) // stride + 1, (w + 2 * pad - k) // stride + 1


def _im2col(x, k, stride, pad):
    """x: NCHW -> (N, Hout*Wout, C*k*k) patches, feature order (ci, kh, kw)."""
    n, c, h, w = x.shape
    xp = jnp.pad(x, ((0, 0), (0, 0), (pad, pad), (pad, pad)))
    hout, wout = _out_hw(h, w, k, stride, pad)
    cols = []
    for i in range(k):
        for j in range(k):
            cols.append(xp[:, :, i:i + stride * hout:stride,
                              j:j + stride * wout:stride])    # (N, C, Hout, Wout)
    cols = jnp.stack(cols, axis=2).reshape(n, c, k, k, hout, wout)
    cols = cols.transpose(0, 4, 5, 1, 2, 3)                   # (N, Hout, Wout, C, k, k)
    return cols.reshape(n, hout * wout, c * k * k)


@functools.lru_cache(maxsize=None)
def _selection_matrices(hin, win, k, stride, pad):
    """Per-tap 0/1 gather matrices S[t]: (Hout*Wout, Hin*Win), t = i*k + j."""
    hout, wout = _out_hw(hin, win, k, stride, pad)
    s = np.zeros((k * k, hout * wout, hin * win), np.float32)
    for i in range(k):
        for j in range(k):
            t = i * k + j
            for ho in range(hout):
                hi = ho * stride + i - pad
                if not (0 <= hi < hin):
                    continue
                for wo in range(wout):
                    wi = wo * stride + j - pad
                    if 0 <= wi < win:
                        s[t, ho * wout + wo, hi * win + wi] = 1.0
    return s


# ---------------------------------------------------------------------------
# ConvDiscriminator: parameters + fused forward
# ---------------------------------------------------------------------------
def init_params(key, no_of_channels=1, disc_dim=32):
    ks = jax.random.split(key, 8)
    p = {}
    p["w1"] = 0.02 * jax.random.normal(ks[0], (disc_dim, no_of_channels, 4, 4), jnp.float32)
    p["w2"] = 0.02 * jax.random.normal(ks[1], (disc_dim * 2, disc_dim, 4, 4), jnp.float32)
    p["g2"] = 1.0 + 0.1 * jax.random.normal(ks[2], (disc_dim * 2,), jnp.float32)
    p["b2"] = 0.1 * jax.random.normal(ks[3], (disc_dim * 2,), jnp.float32)
    p["w3"] = 0.02 * jax.random.normal(ks[4], (disc_dim * 4, disc_dim * 2, 3, 3), jnp.float32)
    p["g3"] = 1.0 + 0.1 * jax.random.normal(ks[5], (disc_dim * 4,), jnp.float32)
    p["b3"] = 0.1 * jax.random.normal(ks[6], (disc_dim * 4,), jnp.float32)
    p["w4"] = 0.02 * jax.random.normal(ks[7], (1, disc_dim * 4, 4, 4), jnp.float32)
    return p


def conv_discriminator_forward(params, x, *, alpha=0.2, eps=1e-5):
    """NCHW float32 input -> (N, 1, 1, 1) float32, matching the PyTorch module."""
    n, cin, h0, w0 = x.shape
    cw1, cw2, cw3, cw4 = params["w1"], params["w2"], params["w3"], params["w4"]
    c1, c2, c3 = cw1.shape[0], cw2.shape[0], cw3.shape[0]
    k1, k2, k3, k4 = cw1.shape[2], cw2.shape[2], cw3.shape[2], cw4.shape[2]

    h1, w1 = _out_hw(h0, w0, k1, 2, 1)
    h2, w2 = _out_hw(h1, w1, k2, 2, 1)
    h3, w3 = _out_hw(h2, w2, k3, 2, 1)
    # Final 4x4/s1/p0 conv must consume the whole remaining map (true for the
    # 32x32 DCGAN geometry) so it reduces to a single dot product.
    # TODO(synk): generalize the last layer to spatial outputs > 1x1 if needed.
    assert (h3, w3) == (k4, cw4.shape[3]) and cw4.shape[0] == 1
    m1, m2, m3 = h1 * w1, h2 * w2, h3 * w3
    kk1 = cin * k1 * k1

    # --- tiny one-off rearrangements outside the kernel (raw input + weights) ---
    p1 = _im2col(x, k1, 2, 1).astype(jnp.bfloat16)                         # (N, M1, K1)
    w1m = cw1.reshape(c1, kk1).T.astype(jnp.bfloat16)                      # (K1, C1)
    w2m = jnp.transpose(cw2, (2, 3, 1, 0)).reshape(k2 * k2, c1, c2).astype(jnp.bfloat16)
    w3m = jnp.transpose(cw3, (2, 3, 1, 0)).reshape(k3 * k3, c2, c3).astype(jnp.bfloat16)
    w4r = jnp.transpose(cw4[0], (1, 2, 0)).reshape(m3, c3)                 # (M3, C3) f32
    s2 = jnp.asarray(_selection_matrices(h1, w1, k2, 2, 1), jnp.bfloat16)  # (T2, M2, M1)
    s3 = jnp.asarray(_selection_matrices(h2, w2, k3, 2, 1), jnp.bfloat16)  # (T3, M3, M2)
    g2 = params["g2"].reshape(1, c2).astype(jnp.float32)
    b2 = params["b2"].reshape(1, c2).astype(jnp.float32)
    g3 = params["g3"].reshape(1, c3).astype(jnp.float32)
    b3 = params["b3"].reshape(1, c3).astype(jnp.float32)

    def full(shape):  # whole-array block, constant index across the batch grid
        return pl.BlockSpec(shape, lambda nb: (0,) * len(shape))

    out = pl.pallas_call(
        functools.partial(_fused_disc_kernel, taps2=k2 * k2, taps3=k3 * k3,
                          alpha=alpha, eps=eps),
        out_shape=jax.ShapeDtypeStruct((n, 1, 1), jnp.float32),
        grid=(n,),
        in_specs=[
            pl.BlockSpec((None, m1, kk1), lambda nb: (nb, 0, 0)),  # per-batch patches
            full((kk1, c1)),
            full((k2 * k2, m2, m1)),
            full((k2 * k2, c1, c2)),
            full((1, c2)), full((1, c2)),
            full((k3 * k3, m3, m2)),
            full((k3 * k3, c2, c3)),
            full((1, c3)), full((1, c3)),
            full((m3, c3)),
        ],
        out_specs=pl.BlockSpec((None, 1, 1), lambda nb: (nb, 0, 0)),
        compiler_params=pltpu.CompilerParams(
            dimension_semantics=("parallel",),          # batch across v7x's 2 TCs
            vmem_limit_bytes=32 * 1024 * 1024),
    )(p1, w1m, s2, w2m, g2, b2, s3, w3m, g3, b3, w4r)
    return out.reshape(n, 1, 1, 1)


# ---------------------------------------------------------------------------
# Pure-JAX f32 reference (for correctness check)
# ---------------------------------------------------------------------------
def _ref_conv(x, w, stride, pad):
    return jax.lax.conv_general_dilated(
        x, w, (stride, stride), ((pad, pad), (pad, pad)),
        dimension_numbers=("NCHW", "OIHW", "NCHW"))


def reference_forward(params, x):
    lrelu = lambda v: jnp.where(v >= 0, v, 0.2 * v)

    def inorm(v, g, b):
        mean = v.mean(axis=(2, 3), keepdims=True)
        var = v.var(axis=(2, 3), keepdims=True)
        vn = (v - mean) / jnp.sqrt(var + 1e-5)
        return vn * g[None, :, None, None] + b[None, :, None, None]

    h = lrelu(_ref_conv(x, params["w1"], 2, 1))
    h = lrelu(inorm(_ref_conv(h, params["w2"], 2, 1), params["g2"], params["b2"]))
    h = lrelu(inorm(_ref_conv(h, params["w3"], 2, 1), params["g3"], params["b3"]))
    h = _ref_conv(h, params["w4"], 1, 0)
    return h


if __name__ == "__main__":
    key = jax.random.PRNGKey(0)
    pkey, xkey = jax.random.split(key)

    # batch=2, no_of_channels=1, 32x32 input -> 16 -> 8 -> 4 -> 1x1 output
    x = jax.random.normal(xkey, (2, 1, 32, 32), jnp.float32)
    params = init_params(pkey, no_of_channels=1, disc_dim=32)

    fwd = jax.jit(conv_discriminator_forward)
    out = jax.block_until_ready(fwd(params, x))
    assert out.shape == (2, 1, 1, 1), out.shape

    ref = jax.block_until_ready(reference_forward(params, x))
    # Kernel uses bf16 MXU operands (f32 accumulation / f32 InstanceNorm) per
    # the perf guidance, so tolerances vs. the all-f32 XLA reference are
    # relaxed accordingly.
    assert jnp.allclose(out, ref, rtol=3e-2, atol=1e-2), (out, ref)

    print("KERNEL_OK")
</pallas_src>

<mosaic_0001>
module attributes {stable_mosaic.version = 11 : i64} {
  func.func @_fused_disc_kernel(%arg0: i32, %arg1: memref<1x256x16xbf16, #tpu.memory_space<vmem>>, %arg2: memref<16x32xbf16, #tpu.memory_space<vmem>>, %arg3: memref<16x64x256xbf16, #tpu.memory_space<vmem>>, %arg4: memref<16x32x64xbf16, #tpu.memory_space<vmem>>, %arg5: memref<1x64xf32, #tpu.memory_space<vmem>>, %arg6: memref<1x64xf32, #tpu.memory_space<vmem>>, %arg7: memref<9x16x64xbf16, #tpu.memory_space<vmem>>, %arg8: memref<9x64x128xbf16, #tpu.memory_space<vmem>>, %arg9: memref<1x128xf32, #tpu.memory_space<vmem>>, %arg10: memref<1x128xf32, #tpu.memory_space<vmem>>, %arg11: memref<16x128xf32, #tpu.memory_space<vmem>>, %arg12: memref<1x1x1xf32, #tpu.memory_space<vmem>>) attributes {dimension_semantics = [#tpu.dimension_semantics<parallel>], iteration_bounds = array<i64: 2>, scalar_prefetch = 0 : i64, scratch_operands = 0 : i64, tpu.core_type = #tpu.core_type<tc>, window_params = [{transform_indices = @transform_0, window_bounds = array<i64: 1, 256, 16>}, {pipeline_mode = #tpu.pipeline_mode<synchronous>, transform_indices = @transform_1, window_bounds = array<i64: 16, 32>}, {pipeline_mode = #tpu.pipeline_mode<synchronous>, transform_indices = @transform_2, window_bounds = array<i64: 16, 64, 256>}, {pipeline_mode = #tpu.pipeline_mode<synchronous>, transform_indices = @transform_3, window_bounds = array<i64: 16, 32, 64>}, {pipeline_mode = #tpu.pipeline_mode<synchronous>, transform_indices = @transform_4, window_bounds = array<i64: 1, 64>}, {pipeline_mode = #tpu.pipeline_mode<synchronous>, transform_indices = @transform_5, window_bounds = array<i64: 1, 64>}, {pipeline_mode = #tpu.pipeline_mode<synchronous>, transform_indices = @transform_6, window_bounds = array<i64: 9, 16, 64>}, {pipeline_mode = #tpu.pipeline_mode<synchronous>, transform_indices = @transform_7, window_bounds = array<i64: 9, 64, 128>}, {pipeline_mode = #tpu.pipeline_mode<synchronous>, transform_indices = @transform_8, window_bounds = array<i64: 1, 128>}, {pipeline_mode = #tpu.pipeline_mode<synchronous>, transform_indices = @transform_9, window_bounds = array<i64: 1, 128>}, {pipeline_mode = #tpu.pipeline_mode<synchronous>, transform_indices = @transform_10, window_bounds = array<i64: 16, 128>}, {transform_indices = @transform_11, window_bounds = array<i64: 1, 1, 1>}]} {
    %c0 = arith.constant 0 : index
    %c0_0 = arith.constant 0 : index
    %c0_1 = arith.constant 0 : index
    %0 = vector.load %arg1[%c0, %c0_0, %c0_1] : memref<1x256x16xbf16, #tpu.memory_space<vmem>>, vector<1x256x16xbf16>
    %1 = vector.shape_cast %0 : vector<1x256x16xbf16> to vector<256x16xbf16>
    %c0_2 = arith.constant 0 : index
    %c0_3 = arith.constant 0 : index
    %2 = vector.load %arg2[%c0_2, %c0_3] : memref<16x32xbf16, #tpu.memory_space<vmem>>, vector<16x32xbf16>
    %cst = arith.constant dense<0.000000e+00> : vector<256x32xf32>
    %3 = tpu.matmul %1, %2, %cst {dimension_numbers = #tpu.dot_dimension_numbers<[1], [0], [0], [1], [0, 0, 1, 1], [], []>} : vector<256x16xbf16>, vector<16x32xbf16>, vector<256x32xf32> -> vector<256x32xf32>
    %cst_4 = arith.constant 0.000000e+00 : f32
    %4 = vector.broadcast %cst_4 : f32 to vector<256x32xf32>
    %5 = arith.cmpf oge, %3, %4 : vector<256x32xf32>
    %cst_5 = arith.constant 2.000000e-01 : f32
    %6 = vector.broadcast %cst_5 : f32 to vector<256x32xf32>
    %7 = arith.mulf %6, %3 : vector<256x32xf32>
    %8 = arith.select %5, %3, %7 : vector<256x32xi1>, vector<256x32xf32>
    %9 = arith.truncf %8 : vector<256x32xf32> to vector<256x32xbf16>
    %c0_6 = arith.constant 0 : index
    %c0_7 = arith.constant 0 : index
    %c0_8 = arith.constant 0 : index
    %10 = vector.load %arg3[%c0_6, %c0_7, %c0_8] : memref<16x64x256xbf16, #tpu.memory_space<vmem>>, vector<1x64x256xbf16>
    %11 = vector.shape_cast %10 : vector<1x64x256xbf16> to vector<64x256xbf16>
    %cst_9 = arith.constant dense<0.000000e+00> : vector<64x32xf32>
    %12 = tpu.matmul %11, %9, %cst_9 {dimension_numbers = #tpu.dot_dimension_numbers<[1], [0], [0], [1], [0, 0, 1, 1], [], []>} : vector<64x256xbf16>, vector<256x32xbf16>, vector<64x32xf32> -> vector<64x32xf32>
    %13 = arith.truncf %12 : vector<64x32xf32> to vector<64x32xbf16>
    %c0_10 = arith.constant 0 : index
    %c0_11 = arith.constant 0 : index
    %c0_12 = arith.constant 0 : index
    %14 = vector.load %arg4[%c0_10, %c0_11, %c0_12] : memref<16x32x64xbf16, #tpu.memory_space<vmem>>, vector<1x32x64xbf16>
    %15 = vector.shape_cast %14 : vector<1x32x64xbf16> to vector<32x64xbf16>
    %cst_13 = arith.constant dense<0.000000e+00> : vector<64x64xf32>
    %16 = tpu.matmul %13, %15, %cst_13 {dimension_numbers = #tpu.dot_dimension_numbers<[1], [0], [0], [1], [0, 0, 1, 1], [], []>} : vector<64x32xbf16>, vector<32x64xbf16>, vector<64x64xf32> -> vector<64x64xf32>
    %c1 = arith.constant 1 : index
    %c0_14 = arith.constant 0 : index
    %c0_15 = arith.constant 0 : index
    %17 = vector.load %arg3[%c1, %c0_14, %c0_15] : memref<16x64x256xbf16, #tpu.memory_space<vmem>>, vector<1x64x256xbf16>
    %18 = vector.shape_cast %17 : vector<1x64x256xbf16> to vector<64x256xbf16>
    %cst_16 = arith.constant dense<0.000000e+00> : vector<64x32xf32>
    %19 = tpu.matmul %18, %9, %cst_16 {dimension_numbers = #tpu.dot_dimension_numbers<[1], [0], [0], [1], [0, 0, 1, 1], [], []>} : vector<64x256xbf16>, vector<256x32xbf16>, vector<64x32xf32> -> vector<64x32xf32>
    %20 = arith.truncf %19 : vector<64x32xf32> to vector<64x32xbf16>
    %c1_17 = arith.constant 1 : index
    %c0_18 = arith.constant 0 : index
    %c0_19 = arith.constant 0 : index
    %21 = vector.load %arg4[%c1_17, %c0_18, %c0_19] : memref<16x32x64xbf16, #tpu.memory_space<vmem>>, vector<1x32x64xbf16>
    %22 = vector.shape_cast %21 : vector<1x32x64xbf16> to vector<32x64xbf16>
    %cst_20 = arith.constant dense<0.000000e+00> : vector<64x64xf32>
    %23 = tpu.matmul %20, %22, %cst_20 {dimension_numbers = #tpu.dot_dimension_numbers<[1], [0], [0], [1], [0, 0, 1, 1], [], []>} : vector<64x32xbf16>, vector<32x64xbf16>, vector<64x64xf32> -> vector<64x64xf32>
    %24 = arith.addf %16, %23 : vector<64x64xf32>
    %c2 = arith.constant 2 : index
    %c0_21 = arith.constant 0 : index
    %c0_22 = arith.constant 0 : index
    %25 = vector.load %arg3[%c2, %c0_21, %c0_22] : memref<16x64x256xbf16, #tpu.memory_space<vmem>>, vector<1x64x256xbf16>
    %26 = vector.shape_cast %25 : vector<1x64x256xbf16> to vector<64x256xbf16>
    %cst_23 = arith.constant dense<0.000000e+00> : vector<64x32xf32>
    %27 = tpu.matmul %26, %9, %cst_23 {dimension_numbers = #tpu.dot_dimension_numbers<[1], [0], [0], [1], [0, 0, 1, 1], [], []>} : vector<64x256xbf16>, vector<256x32xbf16>, vector<64x32xf32> -> vector<64x32xf32>
    %28 = arith.truncf %27 : vector<64x32xf32> to vector<64x32xbf16>
    %c2_24 = arith.constant 2 : index
    %c0_25 = arith.constant 0 : index
    %c0_26 = arith.constant 0 : index
    %29 = vector.load %arg4[%c2_24, %c0_25, %c0_26] : memref<16x32x64xbf16, #tpu.memory_space<vmem>>, vector<1x32x64xbf16>
    %30 = vector.shape_cast %29 : vector<1x32x64xbf16> to vector<32x64xbf16>
    %cst_27 = arith.constant dense<0.000000e+00> : vector<64x64xf32>
    %31 = tpu.matmul %28, %30, %cst_27 {dimension_numbers = #tpu.dot_dimension_numbers<[1], [0], [0], [1], [0, 0, 1, 1], [], []>} : vector<64x32xbf16>, vector<32x64xbf16>, vector<64x64xf32> -> vector<64x64xf32>
    %32 = arith.addf %24, %31 : vector<64x64xf32>
    %c3 = arith.constant 3 : index
    %c0_28 = arith.constant 0 : index
    %c0_29 = arith.constant 0 : index
    %33 = vector.load %arg3[%c3, %c0_28, %c0_29] : memref<16x64x256xbf16, #tpu.memory_space<vmem>>, vector<1x64x256xbf16>
    %34 = vector.shape_cast %33 : vector<1x64x256xbf16> to vector<64x256xbf16>
    %cst_30 = arith.constant dense<0.000000e+00> : vector<64x32xf32>
    %35 = tpu.matmul %34, %9, %cst_30 {dimension_numbers = #tpu.dot_dimension_numbers<[1], [0], [0], [1], [0, 0, 1, 1], [], []>} : vector<64x256xbf16>, vector<256x32xbf16>, vector<64x32xf32> -> vector<64x32xf32>
    %36 = arith.truncf %35 : vector<64x32xf32> to vector<64x32xbf16>
    %c3_31 = arith.constant 3 : index
    %c0_32 = arith.constant 0 : index
    %c0_33 = arith.constant 0 : index
    %37 = vector.load %arg4[%c3_31, %c0_32, %c0_33] : memref<16x32x64xbf16, #tpu.memory_space<vmem>>, vector<1x32x64xbf16>
    %38 = vector.shape_cast %37 : vector<1x32x64xbf16> to vector<32x64xbf16>
    %cst_34 = arith.constant dense<0.000000e+00> : vector<64x64xf32>
    %39 = tpu.matmul %36, %38, %cst_34 {dimension_numbers = #tpu.dot_dimension_numbers<[1], [0], [0], [1], [0, 0, 1, 1], [], []>} : vector<64x32xbf16>, vector<32x64xbf16>, vector<64x64xf32> -> vector<64x64xf32>
    %40 = arith.addf %32, %39 : vector<64x64xf32>
    %c4 = arith.constant 4 : index
    %c0_35 = arith.constant 0 : index
    %c0_36 = arith.constant 0 : index
    %41 = vector.load %arg3[%c4, %c0_35, %c0_36] : memref<16x64x256xbf16, #tpu.memory_space<vmem>>, vector<1x64x256xbf16>
    %42 = vector.shape_cast %41 : vector<1x64x256xbf16> to vector<64x256xbf16>
    %cst_37 = arith.constant dense<0.000000e+00> : vector<64x32xf32>
    %43 = tpu.matmul %42, %9, %cst_37 {dimension_numbers = #tpu.dot_dimension_numbers<[1], [0], [0], [1], [0, 0, 1, 1], [], []>} : vector<64x256xbf16>, vector<256x32xbf16>, vector<64x32xf32> -> vector<64x32xf32>
    %44 = arith.truncf %43 : vector<64x32xf32> to vector<64x32xbf16>
    %c4_38 = arith.constant 4 : index
    %c0_39 = arith.constant 0 : index
    %c0_40 = arith.constant 0 : index
    %45 = vector.load %arg4[%c4_38, %c0_39, %c0_40] : memref<16x32x64xbf16, #tpu.memory_space<vmem>>, vector<1x32x64xbf16>
    %46 = vector.shape_cast %45 : vector<1x32x64xbf16> to vector<32x64xbf16>
    %cst_41 = arith.constant dense<0.000000e+00> : vector<64x64xf32>
    %47 = tpu.matmul %44, %46, %cst_41 {dimension_numbers = #tpu.dot_dimension_numbers<[1], [0], [0], [1], [0, 0, 1, 1], [], []>} : vector<64x32xbf16>, vector<32x64xbf16>, vector<64x64xf32> -> vector<64x64xf32>
    %48 = arith.addf %40, %47 : vector<64x64xf32>
    %c5 = arith.constant 5 : index
    %c0_42 = arith.constant 0 : index
    %c0_43 = arith.constant 0 : index
    %49 = vector.load %arg3[%c5, %c0_42, %c0_43] : memref<16x64x256xbf16, #tpu.memory_space<vmem>>, vector<1x64x256xbf16>
    %50 = vector.shape_cast %49 : vector<1x64x256xbf16> to vector<64x256xbf16>
    %cst_44 = arith.constant dense<0.000000e+00> : vector<64x32xf32>
    %51 = tpu.matmul %50, %9, %cst_44 {dimension_numbers = #tpu.dot_dimension_numbers<[1], [0], [0], [1], [0, 0, 1, 1], [], []>} : vector<64x256xbf16>, vector<256x32xbf16>, vector<64x32xf32> -> vector<64x32xf32>
    %52 = arith.truncf %51 : vector<64x32xf32> to vector<64x32xbf16>
    %c5_45 = arith.constant 5 : index
    %c0_46 = arith.constant 0 : index
    %c0_47 = arith.constant 0 : index
    %53 = vector.load %arg4[%c5_45, %c0_46, %c0_47] : memref<16x32x64xbf16, #tpu.memory_space<vmem>>, vector<1x32x64xbf16>
    %54 = vector.shape_cast %53 : vector<1x32x64xbf16> to vector<32x64xbf16>
    %cst_48 = arith.constant dense<0.000000e+00> : vector<64x64xf32>
    %55 = tpu.matmul %52, %54, %cst_48 {dimension_numbers = #tpu.dot_dimension_numbers<[1], [0], [0], [1], [0, 0, 1, 1], [], []>} : vector<64x32xbf16>, vector<32x64xbf16>, vector<64x64xf32> -> vector<64x64xf32>
    %56 = arith.addf %48, %55 : vector<64x64xf32>
    %c6 = arith.constant 6 : index
    %c0_49 = arith.constant 0 : index
    %c0_50 = arith.constant 0 : index
    %57 = vector.load %arg3[%c6, %c0_49, %c0_50] : memref<16x64x256xbf16, #tpu.memory_space<vmem>>, vector<1x64x256xbf16>
    %58 = vector.shape_cast %57 : vector<1x64x256xbf16> to vector<64x256xbf16>
    %cst_51 = arith.constant dense<0.000000e+00> : vector<64x32xf32>
    %59 = tpu.matmul %58, %9, %cst_51 {dimension_numbers = #tpu.dot_dimension_numbers<[1], [0], [0], [1], [0, 0, 1, 1], [], []>} : vector<64x256xbf16>, vector<256x32xbf16>, vector<64x32xf32> -> vector<64x32xf32>
    %60 = arith.truncf %59 : vector<64x32xf32> to vector<64x32xbf16>
    %c6_52 = arith.constant 6 : index
    %c0_53 = arith.constant 0 : index
    %c0_54 = arith.constant 0 : index
    %61 = vector.load %arg4[%c6_52, %c0_53, %c0_54] : memref<16x32x64xbf16, #tpu.memory_space<vmem>>, vector<1x32x64xbf16>
    %62 = vector.shape_cast %61 : vector<1x32x64xbf16> to vector<32x64xbf16>
    %cst_55 = arith.constant dense<0.000000e+00> : vector<64x64xf32>
    %63 = tpu.matmul %60, %62, %cst_55 {dimension_numbers = #tpu.dot_dimension_numbers<[1], [0], [0], [1], [0, 0, 1, 1], [], []>} : vector<64x32xbf16>, vector<32x64xbf16>, vector<64x64xf32> -> vector<64x64xf32>
    %64 = arith.addf %56, %63 : vector<64x64xf32>
    %c7 = arith.constant 7 : index
    %c0_56 = arith.constant 0 : index
    %c0_57 = arith.constant 0 : index
    %65 = vector.load %arg3[%c7, %c0_56, %c0_57] : memref<16x64x256xbf16, #tpu.memory_space<vmem>>, vector<1x64x256xbf16>
    %66 = vector.shape_cast %65 : vector<1x64x256xbf16> to vector<64x256xbf16>
    %cst_58 = arith.constant dense<0.000000e+00> : vector<64x32xf32>
    %67 = tpu.matmul %66, %9, %cst_58 {dimension_numbers = #tpu.dot_dimension_numbers<[1], [0], [0], [1], [0, 0, 1, 1], [], []>} : vector<64x256xbf16>, vector<256x32xbf16>, vector<64x32xf32> -> vector<64x32xf32>
    %68 = arith.truncf %67 : vector<64x32xf32> to vector<64x32xbf16>
    %c7_59 = arith.constant 7 : index
    %c0_60 = arith.constant 0 : index
    %c0_61 = arith.constant 0 : index
    %69 = vector.load %arg4[%c7_59, %c0_60, %c0_61] : memref<16x32x64xbf16, #tpu.memory_space<vmem>>, vector<1x32x64xbf16>
    %70 = vector.shape_cast %69 : vector<1x32x64xbf16> to vector<32x64xbf16>
    %cst_62 = arith.constant dense<0.000000e+00> : vector<64x64xf32>
    %71 = tpu.matmul %68, %70, %cst_62 {dimension_numbers = #tpu.dot_dimension_numbers<[1], [0], [0], [1], [0, 0, 1, 1], [], []>} : vector<64x32xbf16>, vector<32x64xbf16>, vector<64x64xf32> -> vector<64x64xf32>
    %72 = arith.addf %64, %71 : vector<64x64xf32>
    %c8 = arith.constant 8 : index
    %c0_63 = arith.constant 0 : index
    %c0_64 = arith.constant 0 : index
    %73 = vector.load %arg3[%c8, %c0_63, %c0_64] : memref<16x64x256xbf16, #tpu.memory_space<vmem>>, vector<1x64x256xbf16>
    %74 = vector.shape_cast %73 : vector<1x64x256xbf16> to vector<64x256xbf16>
    %cst_65 = arith.constant dense<0.000000e+00> : vector<64x32xf32>
    %75 = tpu.matmul %74, %9, %cst_65 {dimension_numbers = #tpu.dot_dimension_numbers<[1], [0], [0], [1], [0, 0, 1, 1], [], []>} : vector<64x256xbf16>, vector<256x32xbf16>, vector<64x32xf32> -> vector<64x32xf32>
    %76 = arith.truncf %75 : vector<64x32xf32> to vector<64x32xbf16>
    %c8_66 = arith.constant 8 : index
    %c0_67 = arith.constant 0 : index
    %c0_68 = arith.constant 0 : index
    %77 = vector.load %arg4[%c8_66, %c0_67, %c0_68] : memref<16x32x64xbf16, #tpu.memory_space<vmem>>, vector<1x32x64xbf16>
    %78 = vector.shape_cast %77 : vector<1x32x64xbf16> to vector<32x64xbf16>
    %cst_69 = arith.constant dense<0.000000e+00> : vector<64x64xf32>
    %79 = tpu.matmul %76, %78, %cst_69 {dimension_numbers = #tpu.dot_dimension_numbers<[1], [0], [0], [1], [0, 0, 1, 1], [], []>} : vector<64x32xbf16>, vector<32x64xbf16>, vector<64x64xf32> -> vector<64x64xf32>
    %80 = arith.addf %72, %79 : vector<64x64xf32>
    %c9 = arith.constant 9 : index
    %c0_70 = arith.constant 0 : index
    %c0_71 = arith.constant 0 : index
    %81 = vector.load %arg3[%c9, %c0_70, %c0_71] : memref<16x64x256xbf16, #tpu.memory_space<vmem>>, vector<1x64x256xbf16>
    %82 = vector.shape_cast %81 : vector<1x64x256xbf16> to vector<64x256xbf16>
    %cst_72 = arith.constant dense<0.000000e+00> : vector<64x32xf32>
    %83 = tpu.matmul %82, %9, %cst_72 {dimension_numbers = #tpu.dot_dimension_numbers<[1], [0], [0], [1], [0, 0, 1, 1], [], []>} : vector<64x256xbf16>, vector<256x32xbf16>, vector<64x32xf32> -> vector<64x32xf32>
    %84 = arith.truncf %83 : vector<64x32xf32> to vector<64x32xbf16>
    %c9_73 = arith.constant 9 : index
    %c0_74 = arith.constant 0 : index
    %c0_75 = arith.constant 0 : index
    %85 = vector.load %arg4[%c9_73, %c0_74, %c0_75] : memref<16x32x64xbf16, #tpu.memory_space<vmem>>, vector<1x32x64xbf16>
    %86 = vector.shape_cast %85 : vector<1x32x64xbf16> to vector<32x64xbf16>
    %cst_76 = arith.constant dense<0.000000e+00> : vector<64x64xf32>
    %87 = tpu.matmul %84, %86, %cst_76 {dimension_numbers = #tpu.dot_dimension_numbers<[1], [0], [0], [1], [0, 0, 1, 1], [], []>} : vector<64x32xbf16>, vector<32x64xbf16>, vector<64x64xf32> -> vector<64x64xf32>
    %88 = arith.addf %80, %87 : vector<64x64xf32>
    %c10 = arith.constant 10 : index
    %c0_77 = arith.constant 0 : index
    %c0_78 = arith.constant 0 : index
    %89 = vector.load %arg3[%c10, %c0_77, %c0_78] : memref<16x64x256xbf16, #tpu.memory_space<vmem>>, vector<1x64x256xbf16>
    %90 = vector.shape_cast %89 : vector<1x64x256xbf16> to vector<64x256xbf16>
    %cst_79 = arith.constant dense<0.000000e+00> : vector<64x32xf32>
    %91 = tpu.matmul %90, %9, %cst_79 {dimension_numbers = #tpu.dot_dimension_numbers<[1], [0], [0], [1], [0, 0, 1, 1], [], []>} : vector<64x256xbf16>, vector<256x32xbf16>, vector<64x32xf32> -> vector<64x32xf32>
    %92 = arith.truncf %91 : vector<64x32xf32> to vector<64x32xbf16>
    %c10_80 = arith.constant 10 : index
    %c0_81 = arith.constant 0 : index
    %c0_82 = arith.constant 0 : index
    %93 = vector.load %arg4[%c10_80, %c0_81, %c0_82] : memref<16x32x64xbf16, #tpu.memory_space<vmem>>, vector<1x32x64xbf16>
    %94 = vector.shape_cast %93 : vector<1x32x64xbf16> to vector<32x64xbf16>
    %cst_83 = arith.constant dense<0.000000e+00> : vector<64x64xf32>
    %95 = tpu.matmul %92, %94, %cst_83 {dimension_numbers = #tpu.dot_dimension_numbers<[1], [0], [0], [1], [0, 0, 1, 1], [], []>} : vector<64x32xbf16>, vector<32x64xbf16>, vector<64x64xf32> -> vector<64x64xf32>
    %96 = arith.addf %88, %95 : vector<64x64xf32>
    %c11 = arith.constant 11 : index
    %c0_84 = arith.constant 0 : index
    %c0_85 = arith.constant 0 : index
    %97 = vector.load %arg3[%c11, %c0_84, %c0_85] : memref<16x64x256xbf16, #tpu.memory_space<vmem>>, vector<1x64x256xbf16>
    %98 = vector.shape_cast %97 : vector<1x64x256xbf16> to vector<64x256xbf16>
    %cst_86 = arith.constant dense<0.000000e+00> : vector<64x32xf32>
    %99 = tpu.matmul %98, %9, %cst_86 {dimension_numbers = #tpu.dot_dimension_numbers<[1], [0], [0], [1], [0, 0, 1, 1], [], []>} : vector<64x256xbf16>, vector<256x32xbf16>, vector<64x32xf32> -> vector<64x32xf32>
    %100 = arith.truncf %99 : vector<64x32xf32> to vector<64x32xbf16>
    %c11_87 = arith.constant 11 : index
    %c0_88 = arith.constant 0 : index
    %c0_89 = arith.constant 0 : index
    %101 = vector.load %arg4[%c11_87, %c0_88, %c0_89] : memref<16x32x64xbf16, #tpu.memory_space<vmem>>, vector<1x32x64xbf16>
    %102 = vector.shape_cast %101 : vector<1x32x64xbf16> to vector<32x64xbf16>
    %cst_90 = arith.constant dense<0.000000e+00> : vector<64x64xf32>
    %103 = tpu.matmul %100, %102, %cst_90 {dimension_numbers = #tpu.dot_dimension_numbers<[1], [0], [0], [1], [0, 0, 1, 1], [], []>} : vector<64x32xbf16>, vector<32x64xbf16>, vector<64x64xf32> -> vector<64x64xf32>
    %104 = arith.addf %96, %103 : vector<64x64xf32>
    %c12 = arith.constant 12 : index
    %c0_91 = arith.constant 0 : index
    %c0_92 = arith.constant 0 : index
    %105 = vector.load %arg3[%c12, %c0_91, %c0_92] : memref<16x64x256xbf16, #tpu.memory_space<vmem>>, vector<1x64x256xbf16>
    %106 = vector.shape_cast %105 : vector<1x64x256xbf16> to vector<64x256xbf16>
    %cst_93 = arith.constant dense<0.000000e+00> : vector<64x32xf32>
    %107 = tpu.matmul %106, %9, %cst_93 {dimension_numbers = #tpu.dot_dimension_numbers<[1], [0], [0], [1], [0, 0, 1, 1], [], []>} : vector<64x256xbf16>, vector<256x32xbf16>, vector<64x32xf32> -> vector<64x32xf32>
    %108 = arith.truncf %107 : vector<64x32xf32> to vector<64x32xbf16>
    %c12_94 = arith.constant 12 : index
    %c0_95 = arith.constant 0 : index
    %c0_96 = arith.constant 0 : index
    %109 = vector.load %arg4[%c12_94, %c0_95, %c0_96] : memref<16x32x64xbf16, #tpu.memory_space<vmem>>, vector<1x32x64xbf16>
    %110 = vector.shape_cast %109 : vector<1x32x64xbf16> to vector<32x64xbf16>
    %cst_97 = arith.constant dense<0.000000e+00> : vector<64x64xf32>
    %111 = tpu.matmul %108, %110, %cst_97 {dimension_numbers = #tpu.dot_dimension_numbers<[1], [0], [0], [1], [0, 0, 1, 1], [], []>} : vector<64x32xbf16>, vector<32x64xbf16>, vector<64x64xf32> -> vector<64x64xf32>
    %112 = arith.addf %104, %111 : vector<64x64xf32>
    %c13 = arith.constant 13 : index
    %c0_98 = arith.constant 0 : index
    %c0_99 = arith.constant 0 : index
    %113 = vector.load %arg3[%c13, %c0_98, %c0_99] : memref<16x64x256xbf16, #tpu.memory_space<vmem>>, vector<1x64x256xbf16>
    %114 = vector.shape_cast %113 : vector<1x64x256xbf16> to vector<64x256xbf16>
    %cst_100 = arith.constant dense<0.000000e+00> : vector<64x32xf32>
    %115 = tpu.matmul %114, %9, %cst_100 {dimension_numbers = #tpu.dot_dimension_numbers<[1], [0], [0], [1], [0, 0, 1, 1], [], []>} : vector<64x256xbf16>, vector<256x32xbf16>, vector<64x32xf32> -> vector<64x32xf32>
    %116 = arith.truncf %115 : vector<64x32xf32> to vector<64x32xbf16>
    %c13_101 = arith.constant 13 : index
    %c0_102 = arith.constant 0 : index
    %c0_103 = arith.constant 0 : index
    %117 = vector.load %arg4[%c13_101, %c0_102, %c0_103] : memref<16x32x64xbf16, #tpu.memory_space<vmem>>, vector<1x32x64xbf16>
    %118 = vector.shape_cast %117 : vector<1x32x64xbf16> to vector<32x64xbf16>
    %cst_104 = arith.constant dense<0.000000e+00> : vector<64x64xf32>
    %119 = tpu.matmul %116, %118, %cst_104 {dimension_numbers = #tpu.dot_dimension_numbers<[1], [0], [0], [1], [0, 0, 1, 1], [], []>} : vector<64x32xbf16>, vector<32x64xbf16>, vector<64x64xf32> -> vector<64x64xf32>
    %120 = arith.addf %112, %119 : vector<64x64xf32>
    %c14 = arith.constant 14 : index
    %c0_105 = arith.constant 0 : index
    %c0_106 = arith.constant 0 : index
    %121 = vector.load %arg3[%c14, %c0_105, %c0_106] : memref<16x64x256xbf16, #tpu.memory_space<vmem>>, vector<1x64x256xbf16>
    %122 = vector.shape_cast %121 : vector<1x64x256xbf16> to vector<64x256xbf16>
    %cst_107 = arith.constant dense<0.000000e+00> : vector<64x32xf32>
    %123 = tpu.matmul %122, %9, %cst_107 {dimension_numbers = #tpu.dot_dimension_numbers<[1], [0], [0], [1], [0, 0, 1, 1], [], []>} : vector<64x256xbf16>, vector<256x32xbf16>, vector<64x32xf32> -> vector<64x32xf32>
    %124 = arith.truncf %123 : vector<64x32xf32> to vector<64x32xbf16>
    %c14_108 = arith.constant 14 : index
    %c0_109 = arith.constant 0 : index
    %c0_110 = arith.constant 0 : index
    %125 = vector.load %arg4[%c14_108, %c0_109, %c0_110] : memref<16x32x64xbf16, #tpu.memory_space<vmem>>, vector<1x32x64xbf16>
    %126 = vector.shape_cast %125 : vector<1x32x64xbf16> to vector<32x64xbf16>
    %cst_111 = arith.constant dense<0.000000e+00> : vector<64x64xf32>
    %127 = tpu.matmul %124, %126, %cst_111 {dimension_numbers = #tpu.dot_dimension_numbers<[1], [0], [0], [1], [0, 0, 1, 1], [], []>} : vector<64x32xbf16>, vector<32x64xbf16>, vector<64x64xf32> -> vector<64x64xf32>
    %128 = arith.addf %120, %127 : vector<64x64xf32>
    %c15 = arith.constant 15 : index
    %c0_112 = arith.constant 0 : index
    %c0_113 = arith.constant 0 : index
    %129 = vector.load %arg3[%c15, %c0_112, %c0_113] : memref<16x64x256xbf16, #tpu.memory_space<vmem>>, vector<1x64x256xbf16>
    %130 = vector.shape_cast %129 : vector<1x64x256xbf16> to vector<64x256xbf16>
    %cst_114 = arith.constant dense<0.000000e+00> : vector<64x32xf32>
    %131 = tpu.matmul %130, %9, %cst_114 {dimension_numbers = #tpu.dot_dimension_numbers<[1], [0], [0], [1], [0, 0, 1, 1], [], []>} : vector<64x256xbf16>, vector<256x32xbf16>, vector<64x32xf32> -> vector<64x32xf32>
    %132 = arith.truncf %131 : vector<64x32xf32> to vector<64x32xbf16>
    %c15_115 = arith.constant 15 : index
    %c0_116 = arith.constant 0 : index
    %c0_117 = arith.constant 0 : index
    %133 = vector.load %arg4[%c15_115, %c0_116, %c0_117] : memref<16x32x64xbf16, #tpu.memory_space<vmem>>, vector<1x32x64xbf16>
    %134 = vector.shape_cast %133 : vector<1x32x64xbf16> to vector<32x64xbf16>
    %cst_118 = arith.constant dense<0.000000e+00> : vector<64x64xf32>
    %135 = tpu.matmul %132, %134, %cst_118 {dimension_numbers = #tpu.dot_dimension_numbers<[1], [0], [0], [1], [0, 0, 1, 1], [], []>} : vector<64x32xbf16>, vector<32x64xbf16>, vector<64x64xf32> -> vector<64x64xf32>
    %136 = arith.addf %128, %135 : vector<64x64xf32>
    %cst_119 = arith.constant dense<0.000000e+00> : vector<64xf32>
    %137 = vector.multi_reduction <add>, %136, %cst_119 [0] : vector<64x64xf32> to vector<64xf32>
    %138 = vector.shape_cast %137 : vector<64xf32> to vector<1x64xf32>
    %cst_120 = arith.constant 6.400000e+01 : f32
    %139 = vector.broadcast %cst_120 : f32 to vector<1x64xf32>
    %140 = arith.divf %138, %139 : vector<1x64xf32>
    %141 = vector.broadcast %140 : vector<1x64xf32> to vector<64x64xf32>
    %142 = arith.subf %136, %141 : vector<64x64xf32>
    %143 = arith.mulf %142, %142 : vector<64x64xf32>
    %cst_121 = arith.constant dense<0.000000e+00> : vector<64xf32>
    %144 = vector.multi_reduction <add>, %143, %cst_121 [0] : vector<64x64xf32> to vector<64xf32>
    %145 = vector.shape_cast %144 : vector<64xf32> to vector<1x64xf32>
    %cst_122 = arith.constant 6.400000e+01 : f32
    %146 = vector.broadcast %cst_122 : f32 to vector<1x64xf32>
    %147 = arith.divf %145, %146 : vector<1x64xf32>
    %cst_123 = arith.constant 9.99999974E-6 : f32
    %148 = vector.broadcast %cst_123 : f32 to vector<1x64xf32>
    %149 = arith.addf %147, %148 : vector<1x64xf32>
    %150 = math.rsqrt %149 : vector<1x64xf32>
    %151 = vector.broadcast %150 : vector<1x64xf32> to vector<64x64xf32>
    %152 = arith.mulf %142, %151 : vector<64x64xf32>
    %c0_124 = arith.constant 0 : index
    %c0_125 = arith.constant 0 : index
    %153 = vector.load %arg5[%c0_124, %c0_125] : memref<1x64xf32, #tpu.memory_space<vmem>>, vector<1x64xf32>
    %154 = vector.broadcast %153 : vector<1x64xf32> to vector<64x64xf32>
    %155 = arith.mulf %152, %154 : vector<64x64xf32>
    %c0_126 = arith.constant 0 : index
    %c0_127 = arith.constant 0 : index
    %156 = vector.load %arg6[%c0_126, %c0_127] : memref<1x64xf32, #tpu.memory_space<vmem>>, vector<1x64xf32>
    %157 = vector.broadcast %156 : vector<1x64xf32> to vector<64x64xf32>
    %158 = arith.addf %155, %157 : vector<64x64xf32>
    %cst_128 = arith.constant 0.000000e+00 : f32
    %159 = vector.broadcast %cst_128 : f32 to vector<64x64xf32>
    %160 = arith.cmpf oge, %158, %159 : vector<64x64xf32>
    %cst_129 = arith.constant 2.000000e-01 : f32
    %161 = vector.broadcast %cst_129 : f32 to vector<64x64xf32>
    %162 = arith.mulf %161, %158 : vector<64x64xf32>
    %163 = arith.select %160, %158, %162 : vector<64x64xi1>, vector<64x64xf32>
    %164 = arith.truncf %163 : vector<64x64xf32> to vector<64x64xbf16>
    %c0_130 = arith.constant 0 : index
    %c0_131 = arith.constant 0 : index
    %c0_132 = arith.constant 0 : index
    %165 = vector.load %arg7[%c0_130, %c0_131, %c0_132] : memref<9x16x64xbf16, #tpu.memory_space<vmem>>, vector<1x16x64xbf16>
    %166 = vector.shape_cast %165 : vector<1x16x64xbf16> to vector<16x64xbf16>
    %cst_133 = arith.constant dense<0.000000e+00> : vector<16x64xf32>
    %167 = tpu.matmul %166, %164, %cst_133 {dimension_numbers = #tpu.dot_dimension_numbers<[1], [0], [0], [1], [0, 0, 1, 1], [], []>} : vector<16x64xbf16>, vector<64x64xbf16>, vector<16x64xf32> -> vector<16x64xf32>
    %168 = arith.truncf %167 : vector<16x64xf32> to vector<16x64xbf16>
    %c0_134 = arith.constant 0 : index
    %c0_135 = arith.constant 0 : index
    %c0_136 = arith.constant 0 : index
    %169 = vector.load %arg8[%c0_134, %c0_135, %c0_136] : memref<9x64x128xbf16, #tpu.memory_space<vmem>>, vector<1x64x128xbf16>
    %170 = vector.shape_cast %169 : vector<1x64x128xbf16> to vector<64x128xbf16>
    %cst_137 = arith.constant dense<0.000000e+00> : vector<16x128xf32>
    %171 = tpu.matmul %168, %170, %cst_137 {dimension_numbers = #tpu.dot_dimension_numbers<[1], [0], [0], [1], [0, 0, 1, 1], [], []>} : vector<16x64xbf16>, vector<64x128xbf16>, vector<16x128xf32> -> vector<16x128xf32>
    %c1_138 = arith.constant 1 : index
    %c0_139 = arith.constant 0 : index
    %c0_140 = arith.constant 0 : index
    %172 = vector.load %arg7[%c1_138, %c0_139, %c0_140] : memref<9x16x64xbf16, #tpu.memory_space<vmem>>, vector<1x16x64xbf16>
    %173 = vector.shape_cast %172 : vector<1x16x64xbf16> to vector<16x64xbf16>
    %cst_141 = arith.constant dense<0.000000e+00> : vector<16x64xf32>
    %174 = tpu.matmul %173, %164, %cst_141 {dimension_numbers = #tpu.dot_dimension_numbers<[1], [0], [0], [1], [0, 0, 1, 1], [], []>} : vector<16x64xbf16>, vector<64x64xbf16>, vector<16x64xf32> -> vector<16x64xf32>
    %175 = arith.truncf %174 : vector<16x64xf32> to vector<16x64xbf16>
    %c1_142 = arith.constant 1 : index
    %c0_143 = arith.constant 0 : index
    %c0_144 = arith.constant 0 : index
    %176 = vector.load %arg8[%c1_142, %c0_143, %c0_144] : memref<9x64x128xbf16, #tpu.memory_space<vmem>>, vector<1x64x128xbf16>
    %177 = vector.shape_cast %176 : vector<1x64x128xbf16> to vector<64x128xbf16>
    %cst_145 = arith.constant dense<0.000000e+00> : vector<16x128xf32>
    %178 = tpu.matmul %175, %177, %cst_145 {dimension_numbers = #tpu.dot_dimension_numbers<[1], [0], [0], [1], [0, 0, 1, 1], [], []>} : vector<16x64xbf16>, vector<64x128xbf16>, vector<16x128xf32> -> vector<16x128xf32>
    %179 = arith.addf %171, %178 : vector<16x128xf32>
    %c2_146 = arith.constant 2 : index
    %c0_147 = arith.constant 0 : index
    %c0_148 = arith.constant 0 : index
    %180 = vector.load %arg7[%c2_146, %c0_147, %c0_148] : memref<9x16x64xbf16, #tpu.memory_space<vmem>>, vector<1x16x64xbf16>
    %181 = vector.shape_cast %180 : vector<1x16x64xbf16> to vector<16x64xbf16>
    %cst_149 = arith.constant dense<0.000000e+00> : vector<16x64xf32>
    %182 = tpu.matmul %181, %164, %cst_149 {dimension_numbers = #tpu.dot_dimension_numbers<[1], [0], [0], [1], [0, 0, 1, 1], [], []>} : vector<16x64xbf16>, vector<64x64xbf16>, vector<16x64xf32> -> vector<16x64xf32>
    %183 = arith.truncf %182 : vector<16x64xf32> to vector<16x64xbf16>
    %c2_150 = arith.constant 2 : index
    %c0_151 = arith.constant 0 : index
    %c0_152 = arith.constant 0 : index
    %184 = vector.load %arg8[%c2_150, %c0_151, %c0_152] : memref<9x64x128xbf16, #tpu.memory_space<vmem>>, vector<1x64x128xbf16>
    %185 = vector.shape_cast %184 : vector<1x64x128xbf16> to vector<64x128xbf16>
    %cst_153 = arith.constant dense<0.000000e+00> : vector<16x128xf32>
    %186 = tpu.matmul %183, %185, %cst_153 {dimension_numbers = #tpu.dot_dimension_numbers<[1], [0], [0], [1], [0, 0, 1, 1], [], []>} : vector<16x64xbf16>, vector<64x128xbf16>, vector<16x128xf32> -> vector<16x128xf32>
    %187 = arith.addf %179, %186 : vector<16x128xf32>
    %c3_154 = arith.constant 3 : index
    %c0_155 = arith.constant 0 : index
    %c0_156 = arith.constant 0 : index
    %188 = vector.load %arg7[%c3_154, %c0_155, %c0_156] : memref<9x16x64xbf16, #tpu.memory_space<vmem>>, vector<1x16x64xbf16>
    %189 = vector.shape_cast %188 : vector<1x16x64xbf16> to vector<16x64xbf16>
    %cst_157 = arith.constant dense<0.000000e+00> : vector<16x64xf32>
    %190 = tpu.matmul %189, %164, %cst_157 {dimension_numbers = #tpu.dot_dimension_numbers<[1], [0], [0], [1], [0, 0, 1, 1], [], []>} : vector<16x64xbf16>, vector<64x64xbf16>, vector<16x64xf32> -> vector<16x64xf32>
    %191 = arith.truncf %190 : vector<16x64xf32> to vector<16x64xbf16>
    %c3_158 = arith.constant 3 : index
    %c0_159 = arith.constant 0 : index
    %c0_160 = arith.constant 0 : index
    %192 = vector.load %arg8[%c3_158, %c0_159, %c0_160] : memref<9x64x128xbf16, #tpu.memory_space<vmem>>, vector<1x64x128xbf16>
    %193 = vector.shape_cast %192 : vector<1x64x128xbf16> to vector<64x128xbf16>
    %cst_161 = arith.constant dense<0.000000e+00> : vector<16x128xf32>
    %194 = tpu.matmul %191, %193, %cst_161 {dimension_numbers = #tpu.dot_dimension_numbers<[1], [0], [0], [1], [0, 0, 1, 1], [], []>} : vector<16x64xbf16>, vector<64x128xbf16>, vector<16x128xf32> -> vector<16x128xf32>
    %195 = arith.addf %187, %194 : vector<16x128xf32>
    %c4_162 = arith.constant 4 : index
    %c0_163 = arith.constant 0 : index
    %c0_164 = arith.constant 0 : index
    %196 = vector.load %arg7[%c4_162, %c0_163, %c0_164] : memref<9x16x64xbf16, #tpu.memory_space<vmem>>, vector<1x16x64xbf16>
    %197 = vector.shape_cast %196 : vector<1x16x64xbf16> to vector<16x64xbf16>
    %cst_165 = arith.constant dense<0.000000e+00> : vector<16x64xf32>
    %198 = tpu.matmul %197, %164, %cst_165 {dimension_numbers = #tpu.dot_dimension_numbers<[1], [0], [0], [1], [0, 0, 1, 1], [], []>} : vector<16x64xbf16>, vector<64x64xbf16>, vector<16x64xf32> -> vector<16x64xf32>
    %199 = arith.truncf %198 : vector<16x64xf32> to vector<16x64xbf16>
    %c4_166 = arith.constant 4 : index
    %c0_167 = arith.constant 0 : index
    %c0_168 = arith.constant 0 : index
    %200 = vector.load %arg8[%c4_166, %c0_167, %c0_168] : memref<9x64x128xbf16, #tpu.memory_space<vmem>>, vector<1x64x128xbf16>
    %201 = vector.shape_cast %200 : vector<1x64x128xbf16> to vector<64x128xbf16>
    %cst_169 = arith.constant dense<0.000000e+00> : vector<16x128xf32>
    %202 = tpu.matmul %199, %201, %cst_169 {dimension_numbers = #tpu.dot_dimension_numbers<[1], [0], [0], [1], [0, 0, 1, 1], [], []>} : vector<16x64xbf16>, vector<64x128xbf16>, vector<16x128xf32> -> vector<16x128xf32>
    %203 = arith.addf %195, %202 : vector<16x128xf32>
    %c5_170 = arith.constant 5 : index
    %c0_171 = arith.constant 0 : index
    %c0_172 = arith.constant 0 : index
    %204 = vector.load %arg7[%c5_170, %c0_171, %c0_172] : memref<9x16x64xbf16, #tpu.memory_space<vmem>>, vector<1x16x64xbf16>
    %205 = vector.shape_cast %204 : vector<1x16x64xbf16> to vector<16x64xbf16>
    %cst_173 = arith.constant dense<0.000000e+00> : vector<16x64xf32>
    %206 = tpu.matmul %205, %164, %cst_173 {dimension_numbers = #tpu.dot_dimension_numbers<[1], [0], [0], [1], [0, 0, 1, 1], [], []>} : vector<16x64xbf16>, vector<64x64xbf16>, vector<16x64xf32> -> vector<16x64xf32>
    %207 = arith.truncf %206 : vector<16x64xf32> to vector<16x64xbf16>
    %c5_174 = arith.constant 5 : index
    %c0_175 = arith.constant 0 : index
    %c0_176 = arith.constant 0 : index
    %208 = vector.load %arg8[%c5_174, %c0_175, %c0_176] : memref<9x64x128xbf16, #tpu.memory_space<vmem>>, vector<1x64x128xbf16>
    %209 = vector.shape_cast %208 : vector<1x64x128xbf16> to vector<64x128xbf16>
    %cst_177 = arith.constant dense<0.000000e+00> : vector<16x128xf32>
    %210 = tpu.matmul %207, %209, %cst_177 {dimension_numbers = #tpu.dot_dimension_numbers<[1], [0], [0], [1], [0, 0, 1, 1], [], []>} : vector<16x64xbf16>, vector<64x128xbf16>, vector<16x128xf32> -> vector<16x128xf32>
    %211 = arith.addf %203, %210 : vector<16x128xf32>
    %c6_178 = arith.constant 6 : index
    %c0_179 = arith.constant 0 : index
    %c0_180 = arith.constant 0 : index
    %212 = vector.load %arg7[%c6_178, %c0_179, %c0_180] : memref<9x16x64xbf16, #tpu.memory_space<vmem>>, vector<1x16x64xbf16>
    %213 = vector.shape_cast %212 : vector<1x16x64xbf16> to vector<16x64xbf16>
    %cst_181 = arith.constant dense<0.000000e+00> : vector<16x64xf32>
    %214 = tpu.matmul %213, %164, %cst_181 {dimension_numbers = #tpu.dot_dimension_numbers<[1], [0], [0], [1], [0, 0, 1, 1], [], []>} : vector<16x64xbf16>, vector<64x64xbf16>, vector<16x64xf32> -> vector<16x64xf32>
    %215 = arith.truncf %214 : vector<16x64xf32> to vector<16x64xbf16>
    %c6_182 = arith.constant 6 : index
    %c0_183 = arith.constant 0 : index
    %c0_184 = arith.constant 0 : index
    %216 = vector.load %arg8[%c6_182, %c0_183, %c0_184] : memref<9x64x128xbf16, #tpu.memory_space<vmem>>, vector<1x64x128xbf16>
    %217 = vector.shape_cast %216 : vector<1x64x128xbf16> to vector<64x128xbf16>
    %cst_185 = arith.constant dense<0.000000e+00> : vector<16x128xf32>
    %218 = tpu.matmul %215, %217, %cst_185 {dimension_numbers = #tpu.dot_dimension_numbers<[1], [0], [0], [1], [0, 0, 1, 1], [], []>} : vector<16x64xbf16>, vector<64x128xbf16>, vector<16x128xf32> -> vector<16x128xf32>
    %219 = arith.addf %211, %218 : vector<16x128xf32>
    %c7_186 = arith.constant 7 : index
    %c0_187 = arith.constant 0 : index
    %c0_188 = arith.constant 0 : index
    %220 = vector.load %arg7[%c7_186, %c0_187, %c0_188] : memref<9x16x64xbf16, #tpu.memory_space<vmem>>, vector<1x16x64xbf16>
    %221 = vector.shape_cast %220 : vector<1x16x64xbf16> to vector<16x64xbf16>
    %cst_189 = arith.constant dense<0.000000e+00> : vector<16x64xf32>
    %222 = tpu.matmul %221, %164, %cst_189 {dimension_numbers = #tpu.dot_dimension_numbers<[1], [0], [0], [1], [0, 0, 1, 1], [], []>} : vector<16x64xbf16>, vector<64x64xbf16>, vector<16x64xf32> -> vector<16x64xf32>
    %223 = arith.truncf %222 : vector<16x64xf32> to vector<16x64xbf16>
    %c7_190 = arith.constant 7 : index
    %c0_191 = arith.constant 0 : index
    %c0_192 = arith.constant 0 : index
    %224 = vector.load %arg8[%c7_190, %c0_191, %c0_192] : memref<9x64x128xbf16, #tpu.memory_space<vmem>>, vector<1x64x128xbf16>
    %225 = vector.shape_cast %224 : vector<1x64x128xbf16> to vector<64x128xbf16>
    %cst_193 = arith.constant dense<0.000000e+00> : vector<16x128xf32>
    %226 = tpu.matmul %223, %225, %cst_193 {dimension_numbers = #tpu.dot_dimension_numbers<[1], [0], [0], [1], [0, 0, 1, 1], [], []>} : vector<16x64xbf16>, vector<64x128xbf16>, vector<16x128xf32> -> vector<16x128xf32>
    %227 = arith.addf %219, %226 : vector<16x128xf32>
    %c8_194 = arith.constant 8 : index
    %c0_195 = arith.constant 0 : index
    %c0_196 = arith.constant 0 : index
    %228 = vector.load %arg7[%c8_194, %c0_195, %c0_196] : memref<9x16x64xbf16, #tpu.memory_space<vmem>>, vector<1x16x64xbf16>
    %229 = vector.shape_cast %228 : vector<1x16x64xbf16> to vector<16x64xbf16>
    %cst_197 = arith.constant dense<0.000000e+00> : vector<16x64xf32>
    %230 = tpu.matmul %229, %164, %cst_197 {dimension_numbers = #tpu.dot_dimension_numbers<[1], [0], [0], [1], [0, 0, 1, 1], [], []>} : vector<16x64xbf16>, vector<64x64xbf16>, vector<16x64xf32> -> vector<16x64xf32>
    %231 = arith.truncf %230 : vector<16x64xf32> to vector<16x64xbf16>
    %c8_198 = arith.constant 8 : index
    %c0_199 = arith.constant 0 : index
    %c0_200 = arith.constant 0 : index
    %232 = vector.load %arg8[%c8_198, %c0_199, %c0_200] : memref<9x64x128xbf16, #tpu.memory_space<vmem>>, vector<1x64x128xbf16>
    %233 = vector.shape_cast %232 : vector<1x64x128xbf16> to vector<64x128xbf16>
    %cst_201 = arith.constant dense<0.000000e+00> : vector<16x128xf32>
    %234 = tpu.matmul %231, %233, %cst_201 {dimension_numbers = #tpu.dot_dimension_numbers<[1], [0], [0], [1], [0, 0, 1, 1], [], []>} : vector<16x64xbf16>, vector<64x128xbf16>, vector<16x128xf32> -> vector<16x128xf32>
    %235 = arith.addf %227, %234 : vector<16x128xf32>
    %cst_202 = arith.constant dense<0.000000e+00> : vector<128xf32>
    %236 = vector.multi_reduction <add>, %235, %cst_202 [0] : vector<16x128xf32> to vector<128xf32>
    %237 = vector.shape_cast %236 : vector<128xf32> to vector<1x128xf32>
    %cst_203 = arith.constant 1.600000e+01 : f32
    %238 = vector.broadcast %cst_203 : f32 to vector<1x128xf32>
    %239 = arith.divf %237, %238 : vector<1x128xf32>
    %240 = vector.broadcast %239 : vector<1x128xf32> to vector<16x128xf32>
    %241 = arith.subf %235, %240 : vector<16x128xf32>
    %242 = arith.mulf %241, %241 : vector<16x128xf32>
    %cst_204 = arith.constant dense<0.000000e+00> : vector<128xf32>
    %243 = vector.multi_reduction <add>, %242, %cst_204 [0] : vector<16x128xf32> to vector<128xf32>
    %244 = vector.shape_cast %243 : vector<128xf32> to vector<1x128xf32>
    %cst_205 = arith.constant 1.600000e+01 : f32
    %245 = vector.broadcast %cst_205 : f32 to vector<1x128xf32>
    %246 = arith.divf %244, %245 : vector<1x128xf32>
    %cst_206 = arith.constant 9.99999974E-6 : f32
    %247 = vector.broadcast %cst_206 : f32 to vector<1x128xf32>
    %248 = arith.addf %246, %247 : vector<1x128xf32>
    %249 = math.rsqrt %248 : vector<1x128xf32>
    %250 = vector.broadcast %249 : vector<1x128xf32> to vector<16x128xf32>
    %251 = arith.mulf %241, %250 : vector<16x128xf32>
    %c0_207 = arith.constant 0 : index
    %c0_208 = arith.constant 0 : index
    %252 = vector.load %arg9[%c0_207, %c0_208] : memref<1x128xf32, #tpu.memory_space<vmem>>, vector<1x128xf32>
    %253 = vector.broadcast %252 : vector<1x128xf32> to vector<16x128xf32>
    %254 = arith.mulf %251, %253 : vector<16x128xf32>
    %c0_209 = arith.constant 0 : index
    %c0_210 = arith.constant 0 : index
    %255 = vector.load %arg10[%c0_209, %c0_210] : memref<1x128xf32, #tpu.memory_space<vmem>>, vector<1x128xf32>
    %256 = vector.broadcast %255 : vector<1x128xf32> to vector<16x128xf32>
    %257 = arith.addf %254, %256 : vector<16x128xf32>
    %cst_211 = arith.constant 0.000000e+00 : f32
    %258 = vector.broadcast %cst_211 : f32 to vector<16x128xf32>
    %259 = arith.cmpf oge, %257, %258 : vector<16x128xf32>
    %cst_212 = arith.constant 2.000000e-01 : f32
    %260 = vector.broadcast %cst_212 : f32 to vector<16x128xf32>
    %261 = arith.mulf %260, %257 : vector<16x128xf32>
    %262 = arith.select %259, %257, %261 : vector<16x128xi1>, vector<16x128xf32>
    %c0_213 = arith.constant 0 : index
    %c0_214 = arith.constant 0 : index
    %263 = vector.load %arg11[%c0_213, %c0_214] : memref<16x128xf32, #tpu.memory_space<vmem>>, vector<16x128xf32>
    %264 = arith.mulf %262, %263 : vector<16x128xf32>
    %cst_215 = arith.constant dense<0.000000e+00> : vector<128xf32>
    %265 = vector.multi_reduction <add>, %264, %cst_215 [0] : vector<16x128xf32> to vector<128xf32>
    %266 = vector.shape_cast %265 : vector<128xf32> to vector<1x128xf32>
    %cst_216 = arith.constant dense<0.000000e+00> : vector<1xf32>
    %267 = vector.multi_reduction <add>, %266, %cst_216 [1] : vector<1x128xf32> to vector<1xf32>
    %268 = vector.shape_cast %267 : vector<1xf32> to vector<1x1xf32>
    %c0_217 = arith.constant 0 : index
    %c0_218 = arith.constant 0 : index
    %c0_219 = arith.constant 0 : index
    %269 = vector.load %arg12[%c0_217, %c0_218, %c0_219] : memref<1x1x1xf32, #tpu.memory_space<vmem>>, vector<1x1x1xf32>
    %270 = vector.shape_cast %269 : vector<1x1x1xf32> to vector<1x1xf32>
    %271 = vector.shape_cast %268 : vector<1x1xf32> to vector<1x1x1xf32>
    tpu.vector_store %arg12[%c0_217, %c0_218, %c0_219], %271 {strides = array<i32>} : memref<1x1x1xf32, #tpu.memory_space<vmem>>, vector<1x1x1xf32>,
    return
  }
  func.func @transform_0(%arg0: i32) -> (i32, i32, i32) {
    %c0_i32 = arith.constant 0 : i32
    %c0_i32_0 = arith.constant 0 : i32
    %c0_i32_1 = arith.constant 0 : i32
    return %arg0, %c0_i32, %c0_i32_0 : i32, i32, i32
  }
  func.func @transform_1(%arg0: i32) -> (i32, i32) {
    %c0_i32 = arith.constant 0 : i32
    %c0_i32_0 = arith.constant 0 : i32
    %c0_i32_1 = arith.constant 0 : i32
    return %c0_i32, %c0_i32_0 : i32, i32
  }
  func.func @transform_2(%arg0: i32) -> (i32, i32, i32) {
    %c0_i32 = arith.constant 0 : i32
    %c0_i32_0 = arith.constant 0 : i32
    %c0_i32_1 = arith.constant 0 : i32
    %c0_i32_2 = arith.constant 0 : i32
    return %c0_i32, %c0_i32_0, %c0_i32_1 : i32, i32, i32
  }
  func.func @transform_3(%arg0: i32) -> (i32, i32, i32) {
    %c0_i32 = arith.constant 0 : i32
    %c0_i32_0 = arith.constant 0 : i32
    %c0_i32_1 = arith.constant 0 : i32
    %c0_i32_2 = arith.constant 0 : i32
    return %c0_i32, %c0_i32_0, %c0_i32_1 : i32, i32, i32
  }
  func.func @transform_4(%arg0: i32) -> (i32, i32) {
    %c0_i32 = arith.constant 0 : i32
    %c0_i32_0 = arith.constant 0 : i32
    %c0_i32_1 = arith.constant 0 : i32
    return %c0_i32, %c0_i32_0 : i32, i32
  }
  func.func @transform_5(%arg0: i32) -> (i32, i32) {
    %c0_i32 = arith.constant 0 : i32
    %c0_i32_0 = arith.constant 0 : i32
    %c0_i32_1 = arith.constant 0 : i32
    return %c0_i32, %c0_i32_0 : i32, i32
  }
  func.func @transform_6(%arg0: i32) -> (i32, i32, i32) {
    %c0_i32 = arith.constant 0 : i32
    %c0_i32_0 = arith.constant 0 : i32
    %c0_i32_1 = arith.constant 0 : i32
    %c0_i32_2 = arith.constant 0 : i32
    return %c0_i32, %c0_i32_0, %c0_i32_1 : i32, i32, i32
  }
  func.func @transform_7(%arg0: i32) -> (i32, i32, i32) {
    %c0_i32 = arith.constant 0 : i32
    %c0_i32_0 = arith.constant 0 : i32
    %c0_i32_1 = arith.constant 0 : i32
    %c0_i32_2 = arith.constant 0 : i32
    return %c0_i32, %c0_i32_0, %c0_i32_1 : i32, i32, i32
  }
  func.func @transform_8(%arg0: i32) -> (i32, i32) {
    %c0_i32 = arith.constant 0 : i32
    %c0_i32_0 = arith.constant 0 : i32
    %c0_i32_1 = arith.constant 0 : i32
    return %c0_i32, %c0_i32_0 : i32, i32
  }
  func.func @transform_9(%arg0: i32) -> (i32, i32) {
    %c0_i32 = arith.constant 0 : i32
    %c0_i32_0 = arith.constant 0 : i32
    %c0_i32_1 = arith.constant 0 : i32
    return %c0_i32, %c0_i32_0 : i32, i32
  }
  func.func @transform_10(%arg0: i32) -> (i32, i32) {
    %c0_i32 = arith.constant 0 : i32
    %c0_i32_0 = arith.constant 0 : i32
    %c0_i32_1 = arith.constant 0 : i32
    return %c0_i32, %c0_i32_0 : i32, i32
  }
  func.func @transform_11(%arg0: i32) -> (i32, i32, i32) {
    %c0_i32 = arith.constant 0 : i32
    %c0_i32_0 = arith.constant 0 : i32
    %c0_i32_1 = arith.constant 0 : i32
    return %arg0, %c0_i32, %c0_i32_0 : i32, i32, i32
  }
}

</mosaic_0001>

<llo_original>
// kernel: conv_discriminator_forward.1
$region0: #{conv_discriminator_forward.1}
  #allocation0 [shape = 'u32[]', space=smem, size = 0x4, offset = 0x4, fixed_abs, tag = 'smem constant byte address 0x4 - core index']
  #allocation1 [shape = 'u32[144,128]{1,0:T(1,128)}', space=vmem, size = 0x12000, scoped, tag = 'internal scratch']
  %s0 = inlined_call_operand.vmem [shape: bf16[2,256,16], index: 0, kind: input, shape index: {}]
  %s1 = inlined_call_operand.vmem [shape: bf16[16,32], index: 1, kind: input, shape index: {}]
  %s2 = inlined_call_operand.vmem [shape: bf16[16,64,256], index: 2, kind: input, shape index: {}]
  %s3 = inlined_call_operand.vmem [shape: bf16[16,32,64], index: 3, kind: input, shape index: {}]
  %s4 = inlined_call_operand.vmem [shape: f32[1,64], index: 4, kind: input, shape index: {}]
  %s5 = inlined_call_operand.vmem [shape: f32[1,64], index: 5, kind: input, shape index: {}]
  %s6 = inlined_call_operand.vmem [shape: bf16[9,16,64], index: 6, kind: input, shape index: {}]
  %s7 = inlined_call_operand.vmem [shape: bf16[9,64,128], index: 7, kind: input, shape index: {}]
  %s8 = inlined_call_operand.vmem [shape: f32[1,128], index: 8, kind: input, shape index: {}]
  %s9 = inlined_call_operand.vmem [shape: f32[1,128], index: 9, kind: input, shape index: {}]
  %s10 = inlined_call_operand.vmem [shape: f32[16,128], index: 10, kind: input, shape index: {}]
  %s11 = inlined_call_operand.vmem [shape: f32[2,1,1], index: 11, kind: output, shape index: {}]
  %s12 = sld [smem:[#allocation0]]
  $region77: #{conv_discriminator_forward.1} parent=0
    _
  %s14 = ssub.s32 1, %s12
  %s15 = scalar_select 0, %s14, %s12
  loop: start=0, step=1, limit=4
  $region2: #{conv_discriminator_forward.1} parent=0 // loop_pre_header
    _
  $region3: #{conv_discriminator_forward.1} parent=0 // loop_header
    %s17 = sphi 0, %s21
    %p18 = scmp.ge.s32.totalorder %s17, 4
    %s27 = sphi 0, %s29
    %s30 = sphi 0, %s27
    %s31 = sphi 0, %s30
    %s47 = sphi 0, %s31
    %s51 = sphi 0, %s51
    %s53 = sphi 0, %s51
    %s54 = sphi 0, %s53
    %s68 = sphi 0, %s54
    %s72 = sphi 0, %s72
    %s74 = sphi 0, %s72
    %s75 = sphi 0, %s74
    %s89 = sphi 0, %s75
    %s93 = sphi 0, %s93
    %s95 = sphi 0, %s93
    %s96 = sphi 0, %s95
    %s110 = sphi 0, %s96
    %s114 = sphi 0, %s114
    %s116 = sphi 0, %s114
    %s117 = sphi 0, %s116
    %s131 = sphi 0, %s117
    %s135 = sphi 0, %s135
    %s137 = sphi 0, %s135
    %s138 = sphi 0, %s137
    %s152 = sphi 0, %s138
    %s156 = sphi 0, %s156
    %s158 = sphi 0, %s156
    %s159 = sphi 0, %s158
    %s173 = sphi 0, %s159
    %s177 = sphi 0, %s177
    %s179 = sphi 0, %s177
    %s180 = sphi 0, %s179
    %s194 = sphi 0, %s180
    %s198 = sphi 0, %s198
    %s200 = sphi 0, %s198
    %s201 = sphi 0, %s200
    %s215 = sphi 0, %s201
    %s219 = sphi 0, %s219
    %s221 = sphi 0, %s219
    %s222 = sphi 0, %s221
    %s236 = sphi 0, %s222
    %s240 = sphi 0, %s240
    %s242 = sphi 0, %s240
    %s243 = sphi 0, %s242
    %s257 = sphi 0, %s243
    %s263 = sphi 0, %s265
    %s266 = sphi 0, %s263
    %s267 = sphi 0, %s266
    %s283 = sphi 0, %s267
  $region4: #{conv_discriminator_forward.1} parent=0 // loop_header_branch
    %20 = sbr.rel (%p18) target = $region8
  $region5: #{conv_discriminator_forward.1} parent=0 // loop_body
    %s22 = ssub.s32 %s17, 1
    %s23 = ssub.s32 %s17, 2
    %s24 = sadd.s32 %s17, 1
    %s25 = ssub.s32 %s17, %s24
    %p26 = scmp.eq.s32.totalorder %s25, 0
    %s28 = sadd.s32 %s27, 1
    %s29 = scalar_select %p26, %s27, %s28
    %p32 = pneg %p26
    %p33 = scmp.eq.s32.totalorder %s17, 1
    %p34 = por %p32, %p33
    %p35 = scmp.ne.s32.totalorder %s27, %s30
    %p36 = scmp.eq.s32.totalorder %s17, 0
    %p37 = por %p35, %p36
    %p38 = scmp.ne.s32.totalorder %s27, %s30
    %p39 = scmp.eq.s32.totalorder %s22, 1
    %p40 = por %p38, %p39
    %p41 = scmp.ne.s32.totalorder %s30, %s31
    %p42 = scmp.eq.s32.totalorder %s22, 0
    %p43 = por %p41, %p42
    %p44 = scmp.ne.s32.totalorder %s30, %s31
    %p45 = scmp.eq.s32.totalorder %s23, 1
    %p46 = por %p44, %p45
    %p48 = scmp.ne.s32.totalorder %s31, %s47
    %p49 = scmp.eq.s32.totalorder %s23, 0
    %p50 = por %p48, %p49
    %s52 = sadd.s32 %s51, 1
    %p55 = scmp.eq.s32.totalorder %s17, 1
    %p56 = scmp.ne.s32.totalorder %s51, %s53
    %p57 = scmp.eq.s32.totalorder %s17, 0
    %p58 = por %p56, %p57
    %p59 = scmp.ne.s32.totalorder %s51, %s53
    %p60 = scmp.eq.s32.totalorder %s22, 1
    %p61 = por %p59, %p60
    %p62 = scmp.ne.s32.totalorder %s53, %s54
    %p63 = scmp.eq.s32.totalorder %s22, 0
    %p64 = por %p62, %p63
    %p65 = scmp.ne.s32.totalorder %s53, %s54
    %p66 = scmp.eq.s32.totalorder %s23, 1
    %p67 = por %p65, %p66
    %p69 = scmp.ne.s32.totalorder %s54, %s68
    %p70 = scmp.eq.s32.totalorder %s23, 0
    %p71 = por %p69, %p70
    %s73 = sadd.s32 %s72, 1
    %p76 = scmp.eq.s32.totalorder %s17, 1
    %p77 = scmp.ne.s32.totalorder %s72, %s74
    %p78 = scmp.eq.s32.totalorder %s17, 0
    %p79 = por %p77, %p78
    %p80 = scmp.ne.s32.totalorder %s72, %s74
    %p81 = scmp.eq.s32.totalorder %s22, 1
    %p82 = por %p80, %p81
    %p83 = scmp.ne.s32.totalorder %s74, %s75
    %p84 = scmp.eq.s32.totalorder %s22, 0
    %p85 = por %p83, %p84
    %p86 = scmp.ne.s32.totalorder %s74, %s75
    %p87 = scmp.eq.s32.totalorder %s23, 1
    %p88 = por %p86, %p87
    %p90 = scmp.ne.s32.totalorder %s75, %s89
    %p91 = scmp.eq.s32.totalorder %s23, 0
    %p92 = por %p90, %p91
    %s94 = sadd.s32 %s93, 1
    %p97 = scmp.eq.s32.totalorder %s17, 1
    %p98 = scmp.ne.s32.totalorder %s93, %s95
    %p99 = scmp.eq.s32.totalorder %s17, 0
    %p100 = por %p98, %p99
    %p101 = scmp.ne.s32.totalorder %s93, %s95
    %p102 = scmp.eq.s32.totalorder %s22, 1
    %p103 = por %p101, %p102
    %p104 = scmp.ne.s32.totalorder %s95, %s96
    %p105 = scmp.eq.s32.totalorder %s22, 0
    %p106 = por %p104, %p105
    %p107 = scmp.ne.s32.totalorder %s95, %s96
    %p108 = scmp.eq.s32.totalorder %s23, 1
    %p109 = por %p107, %p108
    %p111 = scmp.ne.s32.totalorder %s96, %s110
    %p112 = scmp.eq.s32.totalorder %s23, 0
    %p113 = por %p111, %p112
    %s115 = sadd.s32 %s114, 1
    %p118 = scmp.eq.s32.totalorder %s17, 1
    %p119 = scmp.ne.s32.totalorder %s114, %s116
    %p120 = scmp.eq.s32.totalorder %s17, 0
    %p121 = por %p119, %p120
    %p122 = scmp.ne.s32.totalorder %s114, %s116
    %p123 = scmp.eq.s32.totalorder %s22, 1
    %p124 = por %p122, %p123
    %p125 = scmp.ne.s32.totalorder %s116, %s117
    %p126 = scmp.eq.s32.totalorder %s22, 0
    %p127 = por %p125, %p126
    %p128 = scmp.ne.s32.totalorder %s116, %s117
    %p129 = scmp.eq.s32.totalorder %s23, 1
    %p130 = por %p128, %p129
    %p132 = scmp.ne.s32.totalorder %s117, %s131
    %p133 = scmp.eq.s32.totalorder %s23, 0
    %p134 = por %p132, %p133
    %s136 = sadd.s32 %s135, 1
    %p139 = scmp.eq.s32.totalorder %s17, 1
    %p140 = scmp.ne.s32.totalorder %s135, %s137
    %p141 = scmp.eq.s32.totalorder %s17, 0
    %p142 = por %p140, %p141
    %p143 = scmp.ne.s32.totalorder %s135, %s137
    %p144 = scmp.eq.s32.totalorder %s22, 1
    %p145 = por %p143, %p144
    %p146 = scmp.ne.s32.totalorder %s137, %s138
    %p147 = scmp.eq.s32.totalorder %s22, 0
    %p148 = por %p146, %p147
    %p149 = scmp.ne.s32.totalorder %s137, %s138
    %p150 = scmp.eq.s32.totalorder %s23, 1
    %p151 = por %p149, %p150
    %p153 = scmp.ne.s32.totalorder %s138, %s152
    %p154 = scmp.eq.s32.totalorder %s23, 0
    %p155 = por %p153, %p154
    %s157 = sadd.s32 %s156, 1
    %p160 = scmp.eq.s32.totalorder %s17, 1
    %p161 = scmp.ne.s32.totalorder %s156, %s158
    %p162 = scmp.eq.s32.totalorder %s17, 0
    %p163 = por %p161, %p162
    %p164 = scmp.ne.s32.totalorder %s156, %s158
    %p165 = scmp.eq.s32.totalorder %s22, 1
    %p166 = por %p164, %p165
    %p167 = scmp.ne.s32.totalorder %s158, %s159
    %p168 = scmp.eq.s32.totalorder %s22, 0
    %p169 = por %p167, %p168
    %p170 = scmp.ne.s32.totalorder %s158, %s159
    %p171 = scmp.eq.s32.totalorder %s23, 1
    %p172 = por %p170, %p171
    %p174 = scmp.ne.s32.totalorder %s159, %s173
    %p175 = scmp.eq.s32.totalorder %s23, 0
    %p176 = por %p174, %p175
    %s178 = sadd.s32 %s177, 1
    %p181 = scmp.eq.s32.totalorder %s17, 1
    %p182 = scmp.ne.s32.totalorder %s177, %s179
    %p183 = scmp.eq.s32.totalorder %s17, 0
    %p184 = por %p182, %p183
    %p185 = scmp.ne.s32.totalorder %s177, %s179
    %p186 = scmp.eq.s32.totalorder %s22, 1
    %p187 = por %p185, %p186
    %p188 = scmp.ne.s32.totalorder %s179, %s180
    %p189 = scmp.eq.s32.totalorder %s22, 0
    %p190 = por %p188, %p189
    %p191 = scmp.ne.s32.totalorder %s179, %s180
    %p192 = scmp.eq.s32.totalorder %s23, 1
    %p193 = por %p191, %p192
    %p195 = scmp.ne.s32.totalorder %s180, %s194
    %p196 = scmp.eq.s32.totalorder %s23, 0
    %p197 = por %p195, %p196
    %s199 = sadd.s32 %s198, 1
    %p202 = scmp.eq.s32.totalorder %s17, 1
    %p203 = scmp.ne.s32.totalorder %s198, %s200
    %p204 = scmp.eq.s32.totalorder %s17, 0
    %p205 = por %p203, %p204
    %p206 = scmp.ne.s32.totalorder %s198, %s200
    %p207 = scmp.eq.s32.totalorder %s22, 1
    %p208 = por %p206, %p207
    %p209 = scmp.ne.s32.totalorder %s200, %s201
    %p210 = scmp.eq.s32.totalorder %s22, 0
    %p211 = por %p209, %p210
    %p212 = scmp.ne.s32.totalorder %s200, %s201
    %p213 = scmp.eq.s32.totalorder %s23, 1
    %p214 = por %p212, %p213
    %p216 = scmp.ne.s32.totalorder %s201, %s215
    %p217 = scmp.eq.s32.totalorder %s23, 0
    %p218 = por %p216, %p217
    %s220 = sadd.s32 %s219, 1
    %p223 = scmp.eq.s32.totalorder %s17, 1
    %p224 = scmp.ne.s32.totalorder %s219, %s221
    %p225 = scmp.eq.s32.totalorder %s17, 0
    %p226 = por %p224, %p225
    %p227 = scmp.ne.s32.totalorder %s219, %s221
    %p228 = scmp.eq.s32.totalorder %s22, 1
    %p229 = por %p227, %p228
    %p230 = scmp.ne.s32.totalorder %s221, %s222
    %p231 = scmp.eq.s32.totalorder %s22, 0
    %p232 = por %p230, %p231
    %p233 = scmp.ne.s32.totalorder %s221, %s222
    %p234 = scmp.eq.s32.totalorder %s23, 1
    %p235 = por %p233, %p234
    %p237 = scmp.ne.s32.totalorder %s222, %s236
    %p238 = scmp.eq.s32.totalorder %s23, 0
    %p239 = por %p237, %p238
    %s241 = sadd.s32 %s240, 1
    %p244 = scmp.eq.s32.totalorder %s17, 1
    %p245 = scmp.ne.s32.totalorder %s240, %s242
    %p246 = scmp.eq.s32.totalorder %s17, 0
    %p247 = por %p245, %p246
    %p248 = scmp.ne.s32.totalorder %s240, %s242
    %p249 = scmp.eq.s32.totalorder %s22, 1
    %p250 = por %p248, %p249
    %p251 = scmp.ne.s32.totalorder %s242, %s243
    %p252 = scmp.eq.s32.totalorder %s22, 0
    %p253 = por %p251, %p252
    %p254 = scmp.ne.s32.totalorder %s242, %s243
    %p255 = scmp.eq.s32.totalorder %s23, 1
    %p256 = por %p254, %p255
    %p258 = scmp.ne.s32.totalorder %s243, %s257
    %p259 = scmp.eq.s32.totalorder %s23, 0
    %p260 = por %p258, %p259
    %s261 = ssub.s32 %s17, %s24
    %p262 = scmp.eq.s32.totalorder %s261, 0
    %s264 = sadd.s32 %s263, 1
    %s265 = scalar_select %p262, %s263, %s264
    %p268 = pneg %p262
    %p269 = scmp.eq.s32.totalorder %s17, 1
    %p270 = por %p268, %p269
    %p271 = scmp.ne.s32.totalorder %s263, %s266
    %p272 = scmp.eq.s32.totalorder %s17, 0
    %p273 = por %p271, %p272
    %p274 = scmp.ne.s32.totalorder %s263, %s266
    %p275 = scmp.eq.s32.totalorder %s22, 1
    %p276 = por %p274, %p275
    %p277 = scmp.ne.s32.totalorder %s266, %s267
    %p278 = scmp.eq.s32.totalorder %s22, 0
    %p279 = por %p277, %p278
    %p280 = scmp.ne.s32.totalorder %s266, %s267
    %p281 = scmp.eq.s32.totalorder %s23, 1
    %p282 = por %p280, %p281
    %p284 = scmp.ne.s32.totalorder %s267, %s283
    %p285 = scmp.eq.s32.totalorder %s23, 0
    %p286 = por %p284, %p285
    %p287 = scmp.le.s32.totalorder 1, %s17
    %p288 = scmp.lt.s32.totalorder %s17, 3
    %p289 = pnand %p287, %p288
    %p290 = pneg %p289
    // Predicated region
    $region9: #{conv_discriminator_forward.1} parent=5 // pred_check
      _
    $region10: #{conv_discriminator_forward.1} parent=5 // pred_check_branch
      %292 = sbr.rel (%p289) target = $region12
    $region11: #{conv_discriminator_forward.1} parent=5 // pred_region
      %s293 = ssub.s32 %s17, 1
      // Predicated region
      $region13: #{conv_discriminator_forward.1} parent=11 // pred_check
        %p294 = pneg %p64
      $region14: #{conv_discriminator_forward.1} parent=11 // pred_check_branch
        %296 = sbr.rel (%p294) target = $region16
      $region15: #{conv_discriminator_forward.1} parent=11 // pred_region
        _
      $region16: #{conv_discriminator_forward.1} parent=11 // pred_fallthru
        _
      // Predicated region
      $region17: #{conv_discriminator_forward.1} parent=11 // pred_check
        %p297 = pneg %p85
      $region18: #{conv_discriminator_forward.1} parent=11 // pred_check_branch
        %299 = sbr.rel (%p297) target = $region20
      $region19: #{conv_discriminator_forward.1} parent=11 // pred_region
        _
      $region20: #{conv_discriminator_forward.1} parent=11 // pred_fallthru
        _
      // Predicated region
      $region21: #{conv_discriminator_forward.1} parent=11 // pred_check
        %p300 = pneg %p106
      $region22: #{conv_discriminator_forward.1} parent=11 // pred_check_branch
        %302 = sbr.rel (%p300) target = $region24
      $region23: #{conv_discriminator_forward.1} parent=11 // pred_region
        _
      $region24: #{conv_discriminator_forward.1} parent=11 // pred_fallthru
        _
      // Predicated region
      $region25: #{conv_discriminator_forward.1} parent=11 // pred_check
        %p303 = pneg %p127
      $region26: #{conv_discriminator_forward.1} parent=11 // pred_check_branch
        %305 = sbr.rel (%p303) target = $region28
      $region27: #{conv_discriminator_forward.1} parent=11 // pred_region
        _
      $region28: #{conv_discriminator_forward.1} parent=11 // pred_fallthru
        _
      // Predicated region
      $region29: #{conv_discriminator_forward.1} parent=11 // pred_check
        %p306 = pneg %p148
      $region30: #{conv_discriminator_forward.1} parent=11 // pred_check_branch
        %308 = sbr.rel (%p306) target = $region32
      $region31: #{conv_discriminator_forward.1} parent=11 // pred_region
        _
      $region32: #{conv_discriminator_forward.1} parent=11 // pred_fallthru
        _
      // Predicated region
      $region33: #{conv_discriminator_forward.1} parent=11 // pred_check
        %p309 = pneg %p169
      $region34: #{conv_discriminator_forward.1} parent=11 // pred_check_branch
        %311 = sbr.rel (%p309) target = $region36
      $region35: #{conv_discriminator_forward.1} parent=11 // pred_region
        _
      $region36: #{conv_discriminator_forward.1} parent=11 // pred_fallthru
        _
      // Predicated region
      $region37: #{conv_discriminator_forward.1} parent=11 // pred_check
        %p312 = pneg %p190
      $region38: #{conv_discriminator_forward.1} parent=11 // pred_check_branch
        %314 = sbr.rel (%p312) target = $region40
      $region39: #{conv_discriminator_forward.1} parent=11 // pred_region
        _
      $region40: #{conv_discriminator_forward.1} parent=11 // pred_fallthru
        _
      // Predicated region
      $region41: #{conv_discriminator_forward.1} parent=11 // pred_check
        %p315 = pneg %p211
      $region42: #{conv_discriminator_forward.1} parent=11 // pred_check_branch
        %317 = sbr.rel (%p315) target = $region44
      $region43: #{conv_discriminator_forward.1} parent=11 // pred_region
        _
      $region44: #{conv_discriminator_forward.1} parent=11 // pred_fallthru
        _
      // Predicated region
      $region45: #{conv_discriminator_forward.1} parent=11 // pred_check
        %p318 = pneg %p232
      $region46: #{conv_discriminator_forward.1} parent=11 // pred_check_branch
        %320 = sbr.rel (%p318) target = $region48
      $region47: #{conv_discriminator_forward.1} parent=11 // pred_region
        _
      $region48: #{conv_discriminator_forward.1} parent=11 // pred_fallthru
        _
      // Predicated region
      $region49: #{conv_discriminator_forward.1} parent=11 // pred_check
        %p321 = pneg %p253
      $region50: #{conv_discriminator_forward.1} parent=11 // pred_check_branch
        %323 = sbr.rel (%p321) target = $region52
      $region51: #{conv_discriminator_forward.1} parent=11 // pred_region
        _
      $region52: #{conv_discriminator_forward.1} parent=11 // pred_fallthru
        _
    $region12: #{conv_discriminator_forward.1} parent=5 // pred_fallthru
      _
    %p324 = scmp.lt.s32.totalorder %s17, 2
    // Predicated region
    $region53: #{conv_discriminator_forward.1} parent=5 // pred_check
      %p325 = pneg %p324
    $region54: #{conv_discriminator_forward.1} parent=5 // pred_check_branch
      %327 = sbr.rel (%p325) target = $region56
    $region55: #{conv_discriminator_forward.1} parent=5 // pred_region
      // Predicated region
      $region57: #{conv_discriminator_forward.1} parent=55 // pred_check
        %p328 = pneg %p37
      $region58: #{conv_discriminator_forward.1} parent=55 // pred_check_branch
        %330 = sbr.rel (%p328) target = $region60
      $region59: #{conv_discriminator_forward.1} parent=55 // pred_region
        %p331 = scmp.lt.s32.totalorder %s17, 1
        %s332 = scalar_select %p331, %s17, 1
        %s333 = smul.addr %s332, 32
        %s334 = smul.addr %s333, 4
        %s335 = scalar_lea.vmem %s0, %s334
      $region60: #{conv_discriminator_forward.1} parent=55 // pred_fallthru
        _
    $region56: #{conv_discriminator_forward.1} parent=5 // pred_fallthru
      _
    %p336 = scmp.le.s32.totalorder 1, %s17
    %p337 = scmp.lt.s32.totalorder %s17, 3
    %p338 = pnand %p336, %p337
    %p339 = pneg %p338
    // Predicated region
    $region61: #{conv_discriminator_forward.1} parent=5 // pred_check
      _
    $region62: #{conv_discriminator_forward.1} parent=5 // pred_check_branch
      %341 = sbr.rel (%p338) target = $region64
    $region63: #{conv_discriminator_forward.1} parent=5 // pred_region
      %s342 = ssub.s32 %s17, 1
      %p343 = scmp.lt.s32.totalorder %s22, 1
      %s344 = scalar_select %p343, %s22, 1
      %s345 = smul.addr %s344, 32
      %s346 = smul.addr %s345, 4
      %s347 = scalar_lea.vmem %s0, %s346
      %p348 = pneg %p43
      %p349 = pneg %p40
      %p350 = pneg %p64
      %p351 = pneg %p61
      %p352 = pneg %p85
      %p353 = pneg %p82
      %p354 = pneg %p106
      %p355 = pneg %p103
      %p356 = pneg %p127
      %p357 = pneg %p124
      %p358 = pneg %p148
      %p359 = pneg %p145
      %p360 = pneg %p169
      %p361 = pneg %p166
      %p362 = pneg %p190
      %p363 = pneg %p187
      %p364 = pneg %p211
      %p365 = pneg %p208
      %p366 = pneg %p232
      %p367 = pneg %p229
      %p368 = pneg %p253
      %p369 = pneg %p250
      %p370 = pneg %p279
      %p371 = pneg %p276
      %p372 = scmp.lt.s32.totalorder %s22, 1
      %s373 = scalar_select %p372, %s22, 1
      %s374 = scalar_lea.vmem %s11, %s373
      %p375 = scmp.lt.s32.totalorder %s22, 1
      %s376 = scalar_select %p375, %s22, 1
      %s377 = smul.addr %s376, 32
      %s378 = smul.addr %s377, 4
      %s379 = scalar_lea.vmem %s0, %s378
      %p380 = scmp.lt.s32.totalorder %s22, 1
      %s381 = scalar_select %p380, %s22, 1
      %s382 = scalar_lea.vmem %s11, %s381
      %v384 = vld [vmem:[%s379] sm:$0xf]
      %v385 = vld [vmem:[%s379 + $0x4] sm:$0xf]
      %v386 = vld [vmem:[%s379 + $0x8] sm:$0xf]
      %v387 = vld [vmem:[%s379 + $0xc] sm:$0xf]
      %v388 = vld [vmem:[%s379 + $0x10] sm:$0xf]
      %v389 = vld [vmem:[%s379 + $0x14] sm:$0xf]
      %v390 = vld [vmem:[%s379 + $0x18] sm:$0xf]
      %v391 = vld [vmem:[%s379 + $0x1c] sm:$0xf]
      %v392 = vld [vmem:[%s379 + $0x20] sm:$0xf]
      %v393 = vld [vmem:[%s379 + $0x24] sm:$0xf]
      %v394 = vld [vmem:[%s379 + $0x28] sm:$0xf]
      %v395 = vld [vmem:[%s379 + $0x2c] sm:$0xf]
      %v396 = vld [vmem:[%s379 + $0x30] sm:$0xf]
      %v397 = vld [vmem:[%s379 + $0x34] sm:$0xf]
      %v398 = vld [vmem:[%s379 + $0x38] sm:$0xf]
      %v399 = vld [vmem:[%s379 + $0x3c] sm:$0xf]
      %v400 = vld [vmem:[%s379 + $0x40] sm:$0xf]
      %v401 = vld [vmem:[%s379 + $0x44] sm:$0xf]
      %v402 = vld [vmem:[%s379 + $0x48] sm:$0xf]
      %v403 = vld [vmem:[%s379 + $0x4c] sm:$0xf]
      %v404 = vld [vmem:[%s379 + $0x50] sm:$0xf]
      %v405 = vld [vmem:[%s379 + $0x54] sm:$0xf]
      %v406 = vld [vmem:[%s379 + $0x58] sm:$0xf]
      %v407 = vld [vmem:[%s379 + $0x5c] sm:$0xf]
      %v408 = vld [vmem:[%s379 + $0x60] sm:$0xf]
      %v409 = vld [vmem:[%s379 + $0x64] sm:$0xf]
      %v410 = vld [vmem:[%s379 + $0x68] sm:$0xf]
      %v411 = vld [vmem:[%s379 + $0x6c] sm:$0xf]
      %v412 = vld [vmem:[%s379 + $0x70] sm:$0xf]
      %v413 = vld [vmem:[%s379 + $0x74] sm:$0xf]
      %v414 = vld [vmem:[%s379 + $0x78] sm:$0xf]
      %v415 = vld [vmem:[%s379 + $0x7c] sm:$0xf]
      %v416 = vld [vmem:[%s1] sm:$0xf]
      %v417 = vld [vmem:[%s1 + $0x4] sm:$0xf]
      %v450 = vunpack.c.l.b16 %v384
      %v451 = vunpack.c.l.b16 %v385
      %v452 = vunpack.c.l.b16 %v386
      %v453 = vunpack.c.l.b16 %v387
      %v454 = vunpack.c.l.b16 %v388
      %v455 = vunpack.c.l.b16 %v389
      %v456 = vunpack.c.l.b16 %v390
      %v457 = vunpack.c.l.b16 %v391
      %v458 = vunpack.c.l.b16 %v392
      %v459 = vunpack.c.l.b16 %v393
      %v460 = vunpack.c.l.b16 %v394
      %v461 = vunpack.c.l.b16 %v395
      %v462 = vunpack.c.l.b16 %v396
      %v463 = vunpack.c.l.b16 %v397
      %v464 = vunpack.c.l.b16 %v398
      %v465 = vunpack.c.l.b16 %v399
      %v466 = vunpack.c.l.b16 %v400
      %v467 = vunpack.c.l.b16 %v401
      %v468 = vunpack.c.l.b16 %v402
      %v469 = vunpack.c.l.b16 %v403
      %v470 = vunpack.c.l.b16 %v404
      %v471 = vunpack.c.l.b16 %v405
      %v472 = vunpack.c.l.b16 %v406
      %v473 = vunpack.c.l.b16 %v407
      %v474 = vunpack.c.l.b16 %v408
      %v475 = vunpack.c.l.b16 %v409
      %v476 = vunpack.c.l.b16 %v410
      %v477 = vunpack.c.l.b16 %v411
      %v478 = vunpack.c.l.b16 %v412
      %v479 = vunpack.c.l.b16 %v413
      %v480 = vunpack.c.l.b16 %v414
      %v481 = vunpack.c.l.b16 %v415
      %v482 = vpack.c.b16 %v451, %v450
      %v483 = vpack.c.b16 %v453, %v452
      %v484 = vpack.c.b16 %v455, %v454
      %v485 = vpack.c.b16 %v457, %v456
      %v486 = vpack.c.b16 %v459, %v458
      %v487 = vpack.c.b16 %v461, %v460
      %v488 = vpack.c.b16 %v463, %v462
      %v489 = vpack.c.b16 %v465, %v464
      %v490 = vpack.c.b16 %v467, %v466
      %v491 = vpack.c.b16 %v469, %v468
      %v492 = vpack.c.b16 %v471, %v470
      %v493 = vpack.c.b16 %v473, %v472
      %v494 = vpack.c.b16 %v475, %v474
      %v495 = vpack.c.b16 %v477, %v476
      %v496 = vpack.c.b16 %v479, %v478
      %v497 = vpack.c.b16 %v481, %v480
      %v500 = vunpack.c.l.b16 %v416
      %v501 = vunpack.c.l.b16 %v417
      %v502 = vpack.c.b16 %v501, %v500
      %vm504 = vcmask 130048
      %v506 = vsel %vm504, %v482, 0
      %v509 = vsel %vm504, %v483, 0
      %v512 = vsel %vm504, %v484, 0
      %v515 = vsel %vm504, %v485, 0
      %v518 = vsel %vm504, %v486, 0
      %v521 = vsel %vm504, %v487, 0
      %v524 = vsel %vm504, %v488, 0
      %v527 = vsel %vm504, %v489, 0
      %v530 = vsel %vm504, %v490, 0
      %v533 = vsel %vm504, %v491, 0
      %v536 = vsel %vm504, %v492, 0
      %v539 = vsel %vm504, %v493, 0
      %v542 = vsel %vm504, %v494, 0
      %v545 = vsel %vm504, %v495, 0
      %v548 = vsel %vm504, %v496, 0
      %v551 = vsel %vm504, %v497, 0
      %553 = vmatprep.subr.bf16.mxu0 0
      %554 = vmatpush1.bf16.msra.mxu0 %v502
      %555 = vmatprep.subr.bf16.mxu0 0
      %556 = vmatpush1.bf16.msra.mxu0 0
      %557 = vmatprep.subr.bf16.mxu0 0
      %558 = vmatpush1.bf16.msra.mxu0 0
      %559 = vmatprep.subr.bf16.mxu0 0
      %560 = vmatpush1.bf16.msra.mxu0 0
      %561 = vmatprep.subr.bf16.mxu0 0
      %562 = vmatpush1.bf16.msra.mxu0 0
      %563 = vmatprep.subr.bf16.mxu0 0
      %564 = vmatpush1.bf16.msra.mxu0 0
      %565 = vmatprep.subr.bf16.mxu0 0
      %566 = vmatpush1.bf16.msra.mxu0 0
      %567 = vmatprep.subr.bf16.mxu0 0
      %568 = vmatpush1.bf16.msra.mxu0 0
      %569 = vmatprep.subr.bf16.mxu0 0
      %570 = vmatpush1.bf16.msra.mxu0 0
      %571 = vmatprep.subr.bf16.mxu0 0
      %572 = vmatpush1.bf16.msra.mxu0 0
      %573 = vmatprep.subr.bf16.mxu0 0
      %574 = vmatpush1.bf16.msra.mxu0 0
      %575 = vmatprep.subr.bf16.mxu0 0
      %576 = vmatpush1.bf16.msra.mxu0 0
      %577 = vmatprep.subr.bf16.mxu0 0
      %578 = vmatpush1.bf16.msra.mxu0 0
      %579 = vmatprep.subr.bf16.mxu0 0
      %580 = vmatpush1.bf16.msra.mxu0 0
      %581 = vmatprep.subr.bf16.mxu0 0
      %582 = vmatpush1.bf16.msra.mxu0 0
      %583 = vmatprep.subr.bf16.mxu0 0
      %584 = vmatpush1.bf16.msra.mxu0 0
      %585 = vmatprep.mubr.bf16.mxu0 0
      %586 = vmatmul.mubr.bf16.gmra.mrb[0].mxu0 %v506
      %v587 = vpop.f32.mrb[0].mxu0
      %v588 = vadd.f32 0.0, %v587
      %v589 = vpop.f32.mrb[0].mxu0
      %v590 = vpop.f32.mrb[0].mxu0
      %v591 = vadd.f32 0.0, %v590
      %v592 = vpop.f32.mrb[0].mxu0
      %593 = vmatprep.mubr.bf16.mxu0 0
      %594 = vmatmul.mubr.bf16.gmra.mrb[0].mxu0 %v509
      %v595 = vpop.f32.mrb[0].mxu0
      %v596 = vadd.f32 0.0, %v595
      %v597 = vpop.f32.mrb[0].mxu0
      %v598 = vpop.f32.mrb[0].mxu0
      %v599 = vadd.f32 0.0, %v598
      %v600 = vpop.f32.mrb[0].mxu0
      %601 = vmatprep.mubr.bf16.mxu0 0
      %602 = vmatmul.mubr.bf16.gmra.mrb[0].mxu0 %v512
      %v603 = vpop.f32.mrb[0].mxu0
      %v604 = vadd.f32 0.0, %v603
      %v605 = vpop.f32.mrb[0].mxu0
      %v606 = vpop.f32.mrb[0].mxu0
      %v607 = vadd.f32 0.0, %v606
      %v608 = vpop.f32.mrb[0].mxu0
      %609 = vmatprep.mubr.bf16.mxu0 0
      %610 = vmatmul.mubr.bf16.gmra.mrb[0].mxu0 %v515
      %v611 = vpop.f32.mrb[0].mxu0
      %v612 = vadd.f32 0.0, %v611
      %v613 = vpop.f32.mrb[0].mxu0
      %v614 = vpop.f32.mrb[0].mxu0
      %v615 = vadd.f32 0.0, %v614
      %v616 = vpop.f32.mrb[0].mxu0
      %617 = vmatprep.mubr.bf16.mxu0 0
      %618 = vmatmul.mubr.bf16.gmra.mrb[0].mxu0 %v518
      %v619 = vpop.f32.mrb[0].mxu0
      %v620 = vadd.f32 0.0, %v619
      %v621 = vpop.f32.mrb[0].mxu0
      %v622 = vpop.f32.mrb[0].mxu0
      %v623 = vadd.f32 0.0, %v622
      %v624 = vpop.f32.mrb[0].mxu0
      %625 = vmatprep.mubr.bf16.mxu0 0
      %626 = vmatmul.mubr.bf16.gmra.mrb[0].mxu0 %v521
      %v627 = vpop.f32.mrb[0].mxu0
      %v628 = vadd.f32 0.0, %v627
      %v629 = vpop.f32.mrb[0].mxu0
      %v630 = vpop.f32.mrb[0].mxu0
      %v631 = vadd.f32 0.0, %v630
      %v632 = vpop.f32.mrb[0].mxu0
      %633 = vmatprep.mubr.bf16.mxu0 0
      %634 = vmatmul.mubr.bf16.gmra.mrb[0].mxu0 %v524
      %v635 = vpop.f32.mrb[0].mxu0
      %v636 = vadd.f32 0.0, %v635
      %v637 = vpop.f32.mrb[0].mxu0
      %v638 = vpop.f32.mrb[0].mxu0
      %v639 = vadd.f32 0.0, %v638
      %v640 = vpop.f32.mrb[0].mxu0
      %641 = vmatprep.mubr.bf16.mxu0 0
      %642 = vmatmul.mubr.bf16.gmra.mrb[0].mxu0 %v527
      %v643 = vpop.f32.mrb[0].mxu0
      %v644 = vadd.f32 0.0, %v643
      %v645 = vpop.f32.mrb[0].mxu0
      %v646 = vpop.f32.mrb[0].mxu0
      %v647 = vadd.f32 0.0, %v646
      %v648 = vpop.f32.mrb[0].mxu0
      %649 = vmatprep.mubr.bf16.mxu0 0
      %650 = vmatmul.mubr.bf16.gmra.mrb[0].mxu0 %v530
      %v651 = vpop.f32.mrb[0].mxu0
      %v652 = vadd.f32 0.0, %v651
      %v653 = vpop.f32.mrb[0].mxu0
      %v654 = vpop.f32.mrb[0].mxu0
      %v655 = vadd.f32 0.0, %v654
      %v656 = vpop.f32.mrb[0].mxu0
      %657 = vmatprep.mubr.bf16.mxu0 0
      %658 = vmatmul.mubr.bf16.gmra.mrb[0].mxu0 %v533
      %v659 = vpop.f32.mrb[0].mxu0
      %v660 = vadd.f32 0.0, %v659
      %v661 = vpop.f32.mrb[0].mxu0
      %v662 = vpop.f32.mrb[0].mxu0
      %v663 = vadd.f32 0.0, %v662
      %v664 = vpop.f32.mrb[0].mxu0
      %665 = vmatprep.mubr.bf16.mxu0 0
      %666 = vmatmul.mubr.bf16.gmra.mrb[0].mxu0 %v536
      %v667 = vpop.f32.mrb[0].mxu0
      %v668 = vadd.f32 0.0, %v667
      %v669 = vpop.f32.mrb[0].mxu0
      %v670 = vpop.f32.mrb[0].mxu0
      %v671 = vadd.f32 0.0, %v670
      %v672 = vpop.f32.mrb[0].mxu0
      %673 = vmatprep.mubr.bf16.mxu0 0
      %674 = vmatmul.mubr.bf16.gmra.mrb[0].mxu0 %v539
      %v675 = vpop.f32.mrb[0].mxu0
      %v676 = vadd.f32 0.0, %v675
      %v677 = vpop.f32.mrb[0].mxu0
      %v678 = vpop.f32.mrb[0].mxu0
      %v679 = vadd.f32 0.0, %v678
      %v680 = vpop.f32.mrb[0].mxu0
      %681 = vmatprep.mubr.bf16.mxu0 0
      %682 = vmatmul.mubr.bf16.gmra.mrb[0].mxu0 %v542
      %v683 = vpop.f32.mrb[0].mxu0
      %v684 = vadd.f32 0.0, %v683
      %v685 = vpop.f32.mrb[0].mxu0
      %v686 = vpop.f32.mrb[0].mxu0
      %v687 = vadd.f32 0.0, %v686
      %v688 = vpop.f32.mrb[0].mxu0
      %689 = vmatprep.mubr.bf16.mxu0 0
      %690 = vmatmul.mubr.bf16.gmra.mrb[0].mxu0 %v545
      %v691 = vpop.f32.mrb[0].mxu0
      %v692 = vadd.f32 0.0, %v691
      %v693 = vpop.f32.mrb[0].mxu0
      %v694 = vpop.f32.mrb[0].mxu0
      %v695 = vadd.f32 0.0, %v694
      %v696 = vpop.f32.mrb[0].mxu0
      %697 = vmatprep.mubr.bf16.mxu0 0
      %698 = vmatmul.mubr.bf16.gmra.mrb[0].mxu0 %v548
      %v699 = vpop.f32.mrb[0].mxu0
      %v700 = vadd.f32 0.0, %v699
      %v701 = vpop.f32.mrb[0].mxu0
      %v702 = vpop.f32.mrb[0].mxu0
      %v703 = vadd.f32 0.0, %v702
      %v704 = vpop.f32.mrb[0].mxu0
      %705 = vmatprep.mubr.bf16.mxu0 0
      %706 = vmatmul.mubr.bf16.gmra.mrb[0].mxu0 %v551
      %v707 = vpop.f32.mrb[0].mxu0
      %v708 = vadd.f32 0.0, %v707
      %v709 = vpop.f32.mrb[0].mxu0
      %v710 = vpop.f32.mrb[0].mxu0
      %v711 = vadd.f32 0.0, %v710
      %v712 = vpop.f32.mrb[0].mxu0
      %713 = vdwg.mxu0
      %vm714 = vcmp.ge.f32.partialorder %v588, 0.0
      %vm715 = vcmp.ge.f32.partialorder %v591, 0.0
      %vm716 = vcmp.ge.f32.partialorder %v596, 0.0
      %vm717 = vcmp.ge.f32.partialorder %v599, 0.0
      %vm718 = vcmp.ge.f32.partialorder %v604, 0.0
      %vm719 = vcmp.ge.f32.partialorder %v607, 0.0
      %vm720 = vcmp.ge.f32.partialorder %v612, 0.0
      %vm721 = vcmp.ge.f32.partialorder %v615, 0.0
      %vm722 = vcmp.ge.f32.partialorder %v620, 0.0
      %vm723 = vcmp.ge.f32.partialorder %v623, 0.0
      %vm724 = vcmp.ge.f32.partialorder %v628, 0.0
      %vm725 = vcmp.ge.f32.partialorder %v631, 0.0
      %vm726 = vcmp.ge.f32.partialorder %v636, 0.0
      %vm727 = vcmp.ge.f32.partialorder %v639, 0.0
      %vm728 = vcmp.ge.f32.partialorder %v644, 0.0
      %vm729 = vcmp.ge.f32.partialorder %v647, 0.0
      %vm730 = vcmp.ge.f32.partialorder %v652, 0.0
      %vm731 = vcmp.ge.f32.partialorder %v655, 0.0
      %vm732 = vcmp.ge.f32.partialorder %v660, 0.0
      %vm733 = vcmp.ge.f32.partialorder %v663, 0.0
      %vm734 = vcmp.ge.f32.partialorder %v668, 0.0
      %vm735 = vcmp.ge.f32.partialorder %v671, 0.0
      %vm736 = vcmp.ge.f32.partialorder %v676, 0.0
      %vm737 = vcmp.ge.f32.partialorder %v679, 0.0
      %vm738 = vcmp.ge.f32.partialorder %v684, 0.0
      %vm739 = vcmp.ge.f32.partialorder %v687, 0.0
      %vm740 = vcmp.ge.f32.partialorder %v692, 0.0
      %vm741 = vcmp.ge.f32.partialorder %v695, 0.0
      %vm742 = vcmp.ge.f32.partialorder %v700, 0.0
      %vm743 = vcmp.ge.f32.partialorder %v703, 0.0
      %vm744 = vcmp.ge.f32.partialorder %v708, 0.0
      %vm745 = vcmp.ge.f32.partialorder %v711, 0.0
      %v746 = vmul.f32 %v588, 0.2
      %v747 = vmul.f32 %v591, 0.2
      %v748 = vmul.f32 %v596, 0.2
      %v749 = vmul.f32 %v599, 0.2
      %v750 = vmul.f32 %v604, 0.2
      %v751 = vmul.f32 %v607, 0.2
      %v752 = vmul.f32 %v612, 0.2
      %v753 = vmul.f32 %v615, 0.2
      %v754 = vmul.f32 %v620, 0.2
      %v755 = vmul.f32 %v623, 0.2
      %v756 = vmul.f32 %v628, 0.2
      %v757 = vmul.f32 %v631, 0.2
      %v758 = vmul.f32 %v636, 0.2
      %v759 = vmul.f32 %v639, 0.2
      %v760 = vmul.f32 %v644, 0.2
      %v761 = vmul.f32 %v647, 0.2
      %v762 = vmul.f32 %v652, 0.2
      %v763 = vmul.f32 %v655, 0.2
      %v764 = vmul.f32 %v660, 0.2
      %v765 = vmul.f32 %v663, 0.2
      %v766 = vmul.f32 %v668, 0.2
      %v767 = vmul.f32 %v671, 0.2
      %v768 = vmul.f32 %v676, 0.2
      %v769 = vmul.f32 %v679, 0.2
      %v770 = vmul.f32 %v684, 0.2
      %v771 = vmul.f32 %v687, 0.2
      %v772 = vmul.f32 %v692, 0.2
      %v773 = vmul.f32 %v695, 0.2
      %v774 = vmul.f32 %v700, 0.2
      %v775 = vmul.f32 %v703, 0.2
      %v776 = vmul.f32 %v708, 0.2
      %v777 = vmul.f32 %v711, 0.2
      %v778 = vsel %vm714, %v588, %v746
      %v779 = vsel %vm715, %v591, %v747
      %v780 = vsel %vm716, %v596, %v748
      %v781 = vsel %vm717, %v599, %v749
      %v782 = vsel %vm718, %v604, %v750
      %v783 = vsel %vm719, %v607, %v751
      %v784 = vsel %vm720, %v612, %v752
      %v785 = vsel %vm721, %v615, %v753
      %v786 = vsel %vm722, %v620, %v754
      %v787 = vsel %vm723, %v623, %v755
      %v788 = vsel %vm724, %v628, %v756
      %v789 = vsel %vm725, %v631, %v757
      %v790 = vsel %vm726, %v636, %v758
      %v791 = vsel %vm727, %v639, %v759
      %v792 = vsel %vm728, %v644, %v760
      %v793 = vsel %vm729, %v647, %v761
      %v794 = vsel %vm730, %v652, %v762
      %v795 = vsel %vm731, %v655, %v763
      %v796 = vsel %vm732, %v660, %v764
      %v797 = vsel %vm733, %v663, %v765
      %v798 = vsel %vm734, %v668, %v766
      %v799 = vsel %vm735, %v671, %v767
      %v800 = vsel %vm736, %v676, %v768
      %v801 = vsel %vm737, %v679, %v769
      %v802 = vsel %vm738, %v684, %v770
      %v803 = vsel %vm739, %v687, %v771
      %v804 = vsel %vm740, %v692, %v772
      %v805 = vsel %vm741, %v695, %v773
      %v806 = vsel %vm742, %v700, %v774
      %v807 = vsel %vm743, %v703, %v775
      %v808 = vsel %vm744, %v708, %v776
      %v809 = vsel %vm745, %v711, %v777
      %v810 = vpack.c.bf16 %v779, %v778
      %v811 = vpack.c.bf16 %v781, %v780
      %v812 = vpack.c.bf16 %v783, %v782
      %v813 = vpack.c.bf16 %v785, %v784
      %v814 = vpack.c.bf16 %v787, %v786
      %v815 = vpack.c.bf16 %v789, %v788
      %v816 = vpack.c.bf16 %v791, %v790
      %v817 = vpack.c.bf16 %v793, %v792
      %v818 = vpack.c.bf16 %v795, %v794
      %v819 = vpack.c.bf16 %v797, %v796
      %v820 = vpack.c.bf16 %v799, %v798
      %v821 = vpack.c.bf16 %v801, %v800
      %v822 = vpack.c.bf16 %v803, %v802
      %v823 = vpack.c.bf16 %v805, %v804
      %v824 = vpack.c.bf16 %v807, %v806
      %v825 = vpack.c.bf16 %v809, %v808
      %v826 = vld [vmem:[%s2] sm:$0xff]
      %v827 = vld [vmem:[%s2 + $0x8] sm:$0xff]
      %v828 = vld [vmem:[%s2 + $0x10] sm:$0xff]
      %v829 = vld [vmem:[%s2 + $0x18] sm:$0xff]
      %v830 = vld [vmem:[%s2 + $0x20] sm:$0xff]
      %v831 = vld [vmem:[%s2 + $0x28] sm:$0xff]
      %v832 = vld [vmem:[%s2 + $0x30] sm:$0xff]
      %v833 = vld [vmem:[%s2 + $0x38] sm:$0xff]
      %v842 = vunpack.c.l.b16 %v826
      %v843 = vunpack.c.h.b16 %v826
      %v844 = vunpack.c.l.b16 %v827
      %v845 = vunpack.c.h.b16 %v827
      %v846 = vunpack.c.l.b16 %v828
      %v847 = vunpack.c.h.b16 %v828
      %v848 = vunpack.c.l.b16 %v829
      %v849 = vunpack.c.h.b16 %v829
      %v850 = vunpack.c.l.b16 %v830
      %v851 = vunpack.c.h.b16 %v830
      %v852 = vunpack.c.l.b16 %v831
      %v853 = vunpack.c.h.b16 %v831
      %v854 = vunpack.c.l.b16 %v832
      %v855 = vunpack.c.h.b16 %v832
      %v856 = vunpack.c.l.b16 %v833
      %v857 = vunpack.c.h.b16 %v833
      %v858 = vpack.c.b16 %v844, %v842
      %v859 = vpack.c.b16 %v845, %v843
      %v860 = vpack.c.b16 %v848, %v846
      %v861 = vpack.c.b16 %v849, %v847
      %v862 = vpack.c.b16 %v852, %v850
      %v863 = vpack.c.b16 %v853, %v851
      %v864 = vpack.c.b16 %v856, %v854
      %v865 = vpack.c.b16 %v857, %v855
      %874 = vmatprep.subr.bf16.mxu0 0
      %875 = vmatpush1.bf16.msra.mxu0 %v810
      %876 = vmatprep.subr.bf16.mxu0 0
      %877 = vmatpush1.bf16.msra.mxu0 %v811
      %878 = vmatprep.subr.bf16.mxu0 0
      %879 = vmatpush1.bf16.msra.mxu0 %v812
      %880 = vmatprep.subr.bf16.mxu0 0
      %881 = vmatpush1.bf16.msra.mxu0 %v813
      %882 = vmatprep.subr.bf16.mxu0 0
      %883 = vmatpush1.bf16.msra.mxu0 %v814
      %884 = vmatprep.subr.bf16.mxu0 0
      %885 = vmatpush1.bf16.msra.mxu0 %v815
      %886 = vmatprep.subr.bf16.mxu0 0
      %887 = vmatpush1.bf16.msra.mxu0 %v816
      %888 = vmatprep.subr.bf16.mxu0 0
      %889 = vmatpush1.bf16.msra.mxu0 %v817
      %890 = vmatprep.subr.bf16.mxu0 0
      %891 = vmatpush1.bf16.msra.mxu0 %v818
      %892 = vmatprep.subr.bf16.mxu0 0
      %893 = vmatpush1.bf16.msra.mxu0 %v819
      %894 = vmatprep.subr.bf16.mxu0 0
      %895 = vmatpush1.bf16.msra.mxu0 %v820
      %896 = vmatprep.subr.bf16.mxu0 0
      %897 = vmatpush1.bf16.msra.mxu0 %v821
      %898 = vmatprep.subr.bf16.mxu0 0
      %899 = vmatpush1.bf16.msra.mxu0 %v822
      %900 = vmatprep.subr.bf16.mxu0 0
      %901 = vmatpush1.bf16.msra.mxu0 %v823
      %902 = vmatprep.subr.bf16.mxu0 0
      %903 = vmatpush1.bf16.msra.mxu0 %v824
      %904 = vmatprep.subr.bf16.mxu0 0
      %905 = vmatpush1.bf16.msra.mxu0 %v825
      %906 = vmatprep.mubr.bf16.mxu0 %v859
      %907 = vmatmul.mubr.bf16.gmra.mrb[0].mxu0 %v858
      %v908 = vpop.f32.mrb[0].mxu0
      %v909 = vadd.f32 0.0, %v908
      %v910 = vpop.f32.mrb[0].mxu0
      %v911 = vpop.f32.mrb[0].mxu0
      %v912 = vadd.f32 0.0, %v911
      %v913 = vpop.f32.mrb[0].mxu0
      %914 = vmatprep.mubr.bf16.mxu0 %v861
      %915 = vmatmul.mubr.bf16.gmra.mrb[0].mxu0 %v860
      %v916 = vpop.f32.mrb[0].mxu0
      %v917 = vadd.f32 0.0, %v916
      %v918 = vpop.f32.mrb[0].mxu0
      %v919 = vpop.f32.mrb[0].mxu0
      %v920 = vadd.f32 0.0, %v919
      %v921 = vpop.f32.mrb[0].mxu0
      %922 = vmatprep.mubr.bf16.mxu0 %v863
      %923 = vmatmul.mubr.bf16.gmra.mrb[0].mxu0 %v862
      %v924 = vpop.f32.mrb[0].mxu0
      %v925 = vadd.f32 0.0, %v924
      %v926 = vpop.f32.mrb[0].mxu0
      %v927 = vpop.f32.mrb[0].mxu0
      %v928 = vadd.f32 0.0, %v927
      %v929 = vpop.f32.mrb[0].mxu0
      %930 = vmatprep.mubr.bf16.mxu0 %v865
      %931 = vmatmul.mubr.bf16.gmra.mrb[0].mxu0 %v864
      %v932 = vpop.f32.mrb[0].mxu0
      %v933 = vadd.f32 0.0, %v932
      %v934 = vpop.f32.mrb[0].mxu0
      %v935 = vpop.f32.mrb[0].mxu0
      %v936 = vadd.f32 0.0, %v935
      %v937 = vpop.f32.mrb[0].mxu0
      %938 = vdwg.mxu0
      %v939 = vpack.c.bf16 %v912, %v909
      %v940 = vpack.c.bf16 %v920, %v917
      %v941 = vpack.c.bf16 %v928, %v925
      %v942 = vpack.c.bf16 %v936, %v933
      %v943 = vld [vmem:[%s3] sm:$0xf]
      %v944 = vld [vmem:[%s3 + $0x4] sm:$0xf]
      %v945 = vld [vmem:[%s3 + $0x8] sm:$0xf]
      %v946 = vld [vmem:[%s3 + $0xc] sm:$0xf]
      %s947 = scalar_lea.vmem %s2, 64
      %v948 = vld [vmem:[%s947] sm:$0xff]
      %v949 = vld [vmem:[%s947 + $0x8] sm:$0xff]
      %v950 = vld [vmem:[%s947 + $0x10] sm:$0xff]
      %v951 = vld [vmem:[%s947 + $0x18] sm:$0xff]
      %v952 = vld [vmem:[%s947 + $0x20] sm:$0xff]
      %v953 = vld [vmem:[%s947 + $0x28] sm:$0xff]
      %v954 = vld [vmem:[%s947 + $0x30] sm:$0xff]
      %v955 = vld [vmem:[%s947 + $0x38] sm:$0xff]
      %v964 = vunpack.c.l.b16 %v948
      %v965 = vunpack.c.h.b16 %v948
      %v966 = vunpack.c.l.b16 %v949
      %v967 = vunpack.c.h.b16 %v949
      %v968 = vunpack.c.l.b16 %v950
      %v969 = vunpack.c.h.b16 %v950
      %v970 = vunpack.c.l.b16 %v951
      %v971 = vunpack.c.h.b16 %v951
      %v972 = vunpack.c.l.b16 %v952
      %v973 = vunpack.c.h.b16 %v952
      %v974 = vunpack.c.l.b16 %v953
      %v975 = vunpack.c.h.b16 %v953
      %v976 = vunpack.c.l.b16 %v954
      %v977 = vunpack.c.h.b16 %v954
      %v978 = vunpack.c.l.b16 %v955
      %v979 = vunpack.c.h.b16 %v955
      %v980 = vpack.c.b16 %v966, %v964
      %v981 = vpack.c.b16 %v967, %v965
      %v982 = vpack.c.b16 %v970, %v968
      %v983 = vpack.c.b16 %v971, %v969
      %v984 = vpack.c.b16 %v974, %v972
      %v985 = vpack.c.b16 %v975, %v973
      %v986 = vpack.c.b16 %v978, %v976
      %v987 = vpack.c.b16 %v979, %v977
      %996 = vmatprep.subr.bf16.mxu0 0
      %997 = vmatpush1.bf16.msra.mxu0 %v810
      %998 = vmatprep.subr.bf16.mxu0 0
      %999 = vmatpush1.bf16.msra.mxu0 %v811
      %1000 = vmatprep.subr.bf16.mxu0 0
      %1001 = vmatpush1.bf16.msra.mxu0 %v812
      %1002 = vmatprep.subr.bf16.mxu0 0
      %1003 = vmatpush1.bf16.msra.mxu0 %v813
      %1004 = vmatprep.subr.bf16.mxu0 0
      %1005 = vmatpush1.bf16.msra.mxu0 %v814
      %1006 = vmatprep.subr.bf16.mxu0 0
      %1007 = vmatpush1.bf16.msra.mxu0 %v815
      %1008 = vmatprep.subr.bf16.mxu0 0
      %1009 = vmatpush1.bf16.msra.mxu0 %v816
      %1010 = vmatprep.subr.bf16.mxu0 0
      %1011 = vmatpush1.bf16.msra.mxu0 %v817
      %1012 = vmatprep.subr.bf16.mxu0 0
      %1013 = vmatpush1.bf16.msra.mxu0 %v818
      %1014 = vmatprep.subr.bf16.mxu0 0
      %1015 = vmatpush1.bf16.msra.mxu0 %v819
      %1016 = vmatprep.subr.bf16.mxu0 0
      %1017 = vmatpush1.bf16.msra.mxu0 %v820
      %1018 = vmatprep.subr.bf16.mxu0 0
      %1019 = vmatpush1.bf16.msra.mxu0 %v821
      %1020 = vmatprep.subr.bf16.mxu0 0
      %1021 = vmatpush1.bf16.msra.mxu0 %v822
      %1022 = vmatprep.subr.bf16.mxu0 0
      %1023 = vmatpush1.bf16.msra.mxu0 %v823
      %1024 = vmatprep.subr.bf16.mxu0 0
      %1025 = vmatpush1.bf16.msra.mxu0 %v824
      %1026 = vmatprep.subr.bf16.mxu0 0
      %1027 = vmatpush1.bf16.msra.mxu0 %v825
      %1028 = vmatprep.mubr.bf16.mxu0 %v981
      %1029 = vmatmul.mubr.bf16.gmra.mrb[0].mxu0 %v980
      %v1030 = vpop.f32.mrb[0].mxu0
      %v1031 = vadd.f32 0.0, %v1030
      %v1032 = vpop.f32.mrb[0].mxu0
      %v1033 = vpop.f32.mrb[0].mxu0
      %v1034 = vadd.f32 0.0, %v1033
      %v1035 = vpop.f32.mrb[0].mxu0
      %1036 = vmatprep.mubr.bf16.mxu0 %v983
      %1037 = vmatmul.mubr.bf16.gmra.mrb[0].mxu0 %v982
      %v1038 = vpop.f32.mrb[0].mxu0
      %v1039 = vadd.f32 0.0, %v1038
      %v1040 = vpop.f32.mrb[0].mxu0
      %v1041 = vpop.f32.mrb[0].mxu0
      %v1042 = vadd.f32 0.0, %v1041
      %v1043 = vpop.f32.mrb[0].mxu0
      %1044 = vmatprep.mubr.bf16.mxu0 %v985
      %1045 = vmatmul.mubr.bf16.gmra.mrb[0].mxu0 %v984
      %v1046 = vpop.f32.mrb[0].mxu0
      %v1047 = vadd.f32 0.0, %v1046
      %v1048 = vpop.f32.mrb[0].mxu0
      %v1049 = vpop.f32.mrb[0].mxu0
      %v1050 = vadd.f32 0.0, %v1049
      %v1051 = vpop.f32.mrb[0].mxu0
      %1052 = vmatprep.mubr.bf16.mxu0 %v987
      %1053 = vmatmul.mubr.bf16.gmra.mrb[0].mxu0 %v986
      %v1054 = vpop.f32.mrb[0].mxu0
      %v1055 = vadd.f32 0.0, %v1054
      %v1056 = vpop.f32.mrb[0].mxu0
      %v1057 = vpop.f32.mrb[0].mxu0
      %v1058 = vadd.f32 0.0, %v1057
      %v1059 = vpop.f32.mrb[0].mxu0
      %1060 = vdwg.mxu0
      %v1061 = vpack.c.bf16 %v1034, %v1031
      %v1062 = vpack.c.bf16 %v1042, %v1039
      %v1063 = vpack.c.bf16 %v1050, %v1047
      %v1064 = vpack.c.bf16 %v1058, %v1055
      %s1065 = scalar_lea.vmem %s3, 16
      %v1066 = vld [vmem:[%s1065] sm:$0xf]
      %v1067 = vld [vmem:[%s1065 + $0x4] sm:$0xf]
      %v1068 = vld [vmem:[%s1065 + $0x8] sm:$0xf]
      %v1069 = vld [vmem:[%s1065 + $0xc] sm:$0xf]
      %v1074 = vunpack.c.l.b16 %v1066
      %v1075 = vunpack.c.l.b16 %v1067
      %v1076 = vunpack.c.l.b16 %v1068
      %v1077 = vunpack.c.l.b16 %v1069
      %v1078 = vpack.c.b16 %v1075, %v1074
      %v1079 = vpack.c.b16 %v1077, %v1076
      %vm1082 = vcmask 261120
      %v1084 = vsel %vm1082, %v1061, 0
      %v1087 = vsel %vm1082, %v1062, 0
      %v1090 = vsel %vm1082, %v1063, 0
      %v1093 = vsel %vm1082, %v1064, 0
      %1095 = vmatprep.subr.bf16.mxu0 0
      %1096 = vmatpush1.bf16.msra.mxu0 %v1078
      %1097 = vmatprep.subr.bf16.mxu0 0
      %1098 = vmatpush1.bf16.msra.mxu0 %v1079
      %1099 = vmatprep.subr.bf16.mxu0 0
      %1100 = vmatpush1.bf16.msra.mxu0 0
      %1101 = vmatprep.subr.bf16.mxu0 0
      %1102 = vmatpush1.bf16.msra.mxu0 0
      %1103 = vmatprep.subr.bf16.mxu0 0
      %1104 = vmatpush1.bf16.msra.mxu0 0
      %1105 = vmatprep.subr.bf16.mxu0 0
      %1106 = vmatpush1.bf16.msra.mxu0 0
      %1107 = vmatprep.subr.bf16.mxu0 0
      %1108 = vmatpush1.bf16.msra.mxu0 0
      %1109 = vmatprep.subr.bf16.mxu0 0
      %1110 = vmatpush1.bf16.msra.mxu0 0
      %1111 = vmatprep.subr.bf16.mxu0 0
      %1112 = vmatpush1.bf16.msra.mxu0 0
      %1113 = vmatprep.subr.bf16.mxu0 0
      %1114 = vmatpush1.bf16.msra.mxu0 0
      %1115 = vmatprep.subr.bf16.mxu0 0
      %1116 = vmatpush1.bf16.msra.mxu0 0
      %1117 = vmatprep.subr.bf16.mxu0 0
      %1118 = vmatpush1.bf16.msra.mxu0 0
      %1119 = vmatprep.subr.bf16.mxu0 0
      %1120 = vmatpush1.bf16.msra.mxu0 0
      %1121 = vmatprep.subr.bf16.mxu0 0
      %1122 = vmatpush1.bf16.msra.mxu0 0
      %1123 = vmatprep.subr.bf16.mxu0 0
      %1124 = vmatpush1.bf16.msra.mxu0 0
      %1125 = vmatprep.subr.bf16.mxu0 0
      %1126 = vmatpush1.bf16.msra.mxu0 0
      %1127 = vmatprep.mubr.bf16.mxu0 0
      %1128 = vmatmul.mubr.bf16.gmra.mrb[0].mxu0 %v1084
      %v1129 = vpop.f32.mrb[0].mxu0
      %v1130 = vadd.f32 0.0, %v1129
      %v1131 = vpop.f32.mrb[0].mxu0
      %v1132 = vpop.f32.mrb[0].mxu0
      %v1133 = vadd.f32 0.0, %v1132
      %v1134 = vpop.f32.mrb[0].mxu0
      %1135 = vmatprep.mubr.bf16.mxu0 0
      %1136 = vmatmul.mubr.bf16.gmra.mrb[0].mxu0 %v1087
      %v1137 = vpop.f32.mrb[0].mxu0
      %v1138 = vadd.f32 0.0, %v1137
      %v1139 = vpop.f32.mrb[0].mxu0
      %v1140 = vpop.f32.mrb[0].mxu0
      %v1141 = vadd.f32 0.0, %v1140
      %v1142 = vpop.f32.mrb[0].mxu0
      %1143 = vmatprep.mubr.bf16.mxu0 0
      %1144 = vmatmul.mubr.bf16.gmra.mrb[0].mxu0 %v1090
      %v1145 = vpop.f32.mrb[0].mxu0
      %v1146 = vadd.f32 0.0, %v1145
      %v1147 = vpop.f32.mrb[0].mxu0
      %v1148 = vpop.f32.mrb[0].mxu0
      %v1149 = vadd.f32 0.0, %v1148
      %v1150 = vpop.f32.mrb[0].mxu0
      %1151 = vmatprep.mubr.bf16.mxu0 0
      %1152 = vmatmul.mubr.bf16.gmra.mrb[0].mxu0 %v1093
      %v1153 = vpop.f32.mrb[0].mxu0
      %v1154 = vadd.f32 0.0, %v1153
      %v1155 = vpop.f32.mrb[0].mxu0
      %v1156 = vpop.f32.mrb[0].mxu0
      %v1157 = vadd.f32 0.0, %v1156
      %v1158 = vpop.f32.mrb[0].mxu0
      %1159 = vdwg.mxu0
      %v1164 = vunpack.c.l.b16 %v943
      %v1165 = vunpack.c.l.b16 %v944
      %v1166 = vunpack.c.l.b16 %v945
      %v1167 = vunpack.c.l.b16 %v946
      %v1168 = vpack.c.b16 %v1165, %v1164
      %v1169 = vpack.c.b16 %v1167, %v1166
      %v1173 = vsel %vm1082, %v939, 0
      %v1176 = vsel %vm1082, %v940, 0
      %v1179 = vsel %vm1082, %v941, 0
      %v1182 = vsel %vm1082, %v942, 0
      %1184 = vmatprep.subr.bf16.mxu0 0
      %1185 = vmatpush1.bf16.msra.mxu0 %v1168
      %1186 = vmatprep.subr.bf16.mxu0 0
      %1187 = vmatpush1.bf16.msra.mxu0 %v1169
      %1188 = vmatprep.subr.bf16.mxu0 0
      %1189 = vmatpush1.bf16.msra.mxu0 0
      %1190 = vmatprep.subr.bf16.mxu0 0
      %1191 = vmatpush1.bf16.msra.mxu0 0
      %1192 = vmatprep.subr.bf16.mxu0 0
      %1193 = vmatpush1.bf16.msra.mxu0 0
      %1194 = vmatprep.subr.bf16.mxu0 0
      %1195 = vmatpush1.bf16.msra.mxu0 0
      %1196 = vmatprep.subr.bf16.mxu0 0
      %1197 = vmatpush1.bf16.msra.mxu0 0
      %1198 = vmatprep.subr.bf16.mxu0 0
      %1199 = vmatpush1.bf16.msra.mxu0 0
      %1200 = vmatprep.subr.bf16.mxu0 0
      %1201 = vmatpush1.bf16.msra.mxu0 0
      %1202 = vmatprep.subr.bf16.mxu0 0
      %1203 = vmatpush1.bf16.msra.mxu0 0
      %1204 = vmatprep.subr.bf16.mxu0 0
      %1205 = vmatpush1.bf16.msra.mxu0 0
      %1206 = vmatprep.subr.bf16.mxu0 0
      %1207 = vmatpush1.bf16.msra.mxu0 0
      %1208 = vmatprep.subr.bf16.mxu0 0
      %1209 = vmatpush1.bf16.msra.mxu0 0
      %1210 = vmatprep.subr.bf16.mxu0 0
      %1211 = vmatpush1.bf16.msra.mxu0 0
      %1212 = vmatprep.subr.bf16.mxu0 0
      %1213 = vmatpush1.bf16.msra.mxu0 0
      %1214 = vmatprep.subr.bf16.mxu0 0
      %1215 = vmatpush1.bf16.msra.mxu0 0
      %1216 = vmatprep.mubr.bf16.mxu0 0
      %1217 = vmatmul.mubr.bf16.gmra.mrb[0].mxu0 %v1173
      %v1218 = vpop.f32.mrb[0].mxu0
      %v1219 = vadd.f32 %v1130, %v1218
      %v1220 = vpop.f32.mrb[0].mxu0
      %v1221 = vpop.f32.mrb[0].mxu0
      %v1222 = vadd.f32 %v1133, %v1221
      %v1223 = vpop.f32.mrb[0].mxu0
      %1224 = vmatprep.mubr.bf16.mxu0 0
      %1225 = vmatmul.mubr.bf16.gmra.mrb[0].mxu0 %v1176
      %v1226 = vpop.f32.mrb[0].mxu0
      %v1227 = vadd.f32 %v1138, %v1226
      %v1228 = vpop.f32.mrb[0].mxu0
      %v1229 = vpop.f32.mrb[0].mxu0
      %v1230 = vadd.f32 %v1141, %v1229
      %v1231 = vpop.f32.mrb[0].mxu0
      %1232 = vmatprep.mubr.bf16.mxu0 0
      %1233 = vmatmul.mubr.bf16.gmra.mrb[0].mxu0 %v1179
      %v1234 = vpop.f32.mrb[0].mxu0
      %v1235 = vadd.f32 %v1146, %v1234
      %v1236 = vpop.f32.mrb[0].mxu0
      %v1237 = vpop.f32.mrb[0].mxu0
      %v1238 = vadd.f32 %v1149, %v1237
      %v1239 = vpop.f32.mrb[0].mxu0
      %1240 = vmatprep.mubr.bf16.mxu0 0
      %1241 = vmatmul.mubr.bf16.gmra.mrb[0].mxu0 %v1182
      %v1242 = vpop.f32.mrb[0].mxu0
      %v1243 = vadd.f32 %v1154, %v1242
      %v1244 = vpop.f32.mrb[0].mxu0
      %v1245 = vpop.f32.mrb[0].mxu0
      %v1246 = vadd.f32 %v1157, %v1245
      %v1247 = vpop.f32.mrb[0].mxu0
      %1248 = vdwg.mxu0
      %s1249 = scalar_lea.vmem %s2, 128
      %v1250 = vld [vmem:[%s1249] sm:$0xff]
      %v1251 = vld [vmem:[%s1249 + $0x8] sm:$0xff]
      %v1252 = vld [vmem:[%s1249 + $0x10] sm:$0xff]
      %v1253 = vld [vmem:[%s1249 + $0x18] sm:$0xff]
      %v1254 = vld [vmem:[%s1249 + $0x20] sm:$0xff]
      %v1255 = vld [vmem:[%s1249 + $0x28] sm:$0xff]
      %v1256 = vld [vmem:[%s1249 + $0x30] sm:$0xff]
      %v1257 = vld [vmem:[%s1249 + $0x38] sm:$0xff]
      %v1266 = vunpack.c.l.b16 %v1250
      %v1267 = vunpack.c.h.b16 %v1250
      %v1268 = vunpack.c.l.b16 %v1251
      %v1269 = vunpack.c.h.b16 %v1251
      %v1270 = vunpack.c.l.b16 %v1252
      %v1271 = vunpack.c.h.b16 %v1252
      %v1272 = vunpack.c.l.b16 %v1253
      %v1273 = vunpack.c.h.b16 %v1253
      %v1274 = vunpack.c.l.b16 %v1254
      %v1275 = vunpack.c.h.b16 %v1254
      %v1276 = vunpack.c.l.b16 %v1255
      %v1277 = vunpack.c.h.b16 %v1255
      %v1278 = vunpack.c.l.b16 %v1256
      %v1279 = vunpack.c.h.b16 %v1256
      %v1280 = vunpack.c.l.b16 %v1257
      %v1281 = vunpack.c.h.b16 %v1257
      %v1282 = vpack.c.b16 %v1268, %v1266
      %v1283 = vpack.c.b16 %v1269, %v1267
      %v1284 = vpack.c.b16 %v1272, %v1270
      %v1285 = vpack.c.b16 %v1273, %v1271
      %v1286 = vpack.c.b16 %v1276, %v1274
      %v1287 = vpack.c.b16 %v1277, %v1275
      %v1288 = vpack.c.b16 %v1280, %v1278
      %v1289 = vpack.c.b16 %v1281, %v1279
      %1298 = vmatprep.subr.bf16.mxu0 0
      %1299 = vmatpush1.bf16.msra.mxu0 %v810
      %1300 = vmatprep.subr.bf16.mxu0 0
      %1301 = vmatpush1.bf16.msra.mxu0 %v811
      %1302 = vmatprep.subr.bf16.mxu0 0
      %1303 = vmatpush1.bf16.msra.mxu0 %v812
      %1304 = vmatprep.subr.bf16.mxu0 0
      %1305 = vmatpush1.bf16.msra.mxu0 %v813
      %1306 = vmatprep.subr.bf16.mxu0 0
      %1307 = vmatpush1.bf16.msra.mxu0 %v814
      %1308 = vmatprep.subr.bf16.mxu0 0
      %1309 = vmatpush1.bf16.msra.mxu0 %v815
      %1310 = vmatprep.subr.bf16.mxu0 0
      %1311 = vmatpush1.bf16.msra.mxu0 %v816
      %1312 = vmatprep.subr.bf16.mxu0 0
      %1313 = vmatpush1.bf16.msra.mxu0 %v817
      %1314 = vmatprep.subr.bf16.mxu0 0
      %1315 = vmatpush1.bf16.msra.mxu0 %v818
      %1316 = vmatprep.subr.bf16.mxu0 0
      %1317 = vmatpush1.bf16.msra.mxu0 %v819
      %1318 = vmatprep.subr.bf16.mxu0 0
      %1319 = vmatpush1.bf16.msra.mxu0 %v820
      %1320 = vmatprep.subr.bf16.mxu0 0
      %1321 = vmatpush1.bf16.msra.mxu0 %v821
      %1322 = vmatprep.subr.bf16.mxu0 0
      %1323 = vmatpush1.bf16.msra.mxu0 %v822
      %1324 = vmatprep.subr.bf16.mxu0 0
      %1325 = vmatpush1.bf16.msra.mxu0 %v823
      %1326 = vmatprep.subr.bf16.mxu0 0
      %1327 = vmatpush1.bf16.msra.mxu0 %v824
      %1328 = vmatprep.subr.bf16.mxu0 0
      %1329 = vmatpush1.bf16.msra.mxu0 %v825
      %1330 = vmatprep.mubr.bf16.mxu0 %v1283
      %1331 = vmatmul.mubr.bf16.gmra.mrb[0].mxu0 %v1282
      %v1332 = vpop.f32.mrb[0].mxu0
      %v1333 = vadd.f32 0.0, %v1332
      %v1334 = vpop.f32.mrb[0].mxu0
      %v1335 = vpop.f32.mrb[0].mxu0
      %v1336 = vadd.f32 0.0, %v1335
      %v1337 = vpop.f32.mrb[0].mxu0
      %1338 = vmatprep.mubr.bf16.mxu0 %v1285
      %1339 = vmatmul.mubr.bf16.gmra.mrb[0].mxu0 %v1284
      %v1340 = vpop.f32.mrb[0].mxu0
      %v1341 = vadd.f32 0.0, %v1340
      %v1342 = vpop.f32.mrb[0].mxu0
      %v1343 = vpop.f32.mrb[0].mxu0
      %v1344 = vadd.f32 0.0, %v1343
      %v1345 = vpop.f32.mrb[0].mxu0
      %1346 = vmatprep.mubr.bf16.mxu0 %v1287
      %1347 = vmatmul.mubr.bf16.gmra.mrb[0].mxu0 %v1286
      %v1348 = vpop.f32.mrb[0].mxu0
      %v1349 = vadd.f32 0.0, %v1348
      %v1350 = vpop.f32.mrb[0].mxu0
      %v1351 = vpop.f32.mrb[0].mxu0
      %v1352 = vadd.f32 0.0, %v1351
      %v1353 = vpop.f32.mrb[0].mxu0
      %1354 = vmatprep.mubr.bf16.mxu0 %v1289
      %1355 = vmatmul.mubr.bf16.gmra.mrb[0].mxu0 %v1288
      %v1356 = vpop.f32.mrb[0].mxu0
      %v1357 = vadd.f32 0.0, %v1356
      %v1358 = vpop.f32.mrb[0].mxu0
      %v1359 = vpop.f32.mrb[0].mxu0
      %v1360 = vadd.f32 0.0, %v1359
      %v1361 = vpop.f32.mrb[0].mxu0
      %1362 = vdwg.mxu0
      %v1363 = vpack.c.bf16 %v1336, %v1333
      %v1364 = vpack.c.bf16 %v1344, %v1341
      %v1365 = vpack.c.bf16 %v1352, %v1349
      %v1366 = vpack.c.bf16 %v1360, %v1357
      %s1367 = scalar_lea.vmem %s3, 32
      %v1368 = vld [vmem:[%s1367] sm:$0xf]
      %v1369 = vld [vmem:[%s1367 + $0x4] sm:$0xf]
      %v1370 = vld [vmem:[%s1367 + $0x8] sm:$0xf]
      %v1371 = vld [vmem:[%s1367 + $0xc] sm:$0xf]
      %v1376 = vunpack.c.l.b16 %v1368
      %v1377 = vunpack.c.l.b16 %v1369
      %v1378 = vunpack.c.l.b16 %v1370
      %v1379 = vunpack.c.l.b16 %v1371
      %v1380 = vpack.c.b16 %v1377, %v1376
      %v1381 = vpack.c.b16 %v1379, %v1378
      %v1385 = vsel %vm1082, %v1363, 0
      %v1388 = vsel %vm1082, %v1364, 0
      %v1391 = vsel %vm1082, %v1365, 0
      %v1394 = vsel %vm1082, %v1366, 0
      %1396 = vmatprep.subr.bf16.mxu0 0
      %1397 = vmatpush1.bf16.msra.mxu0 %v1380
      %1398 = vmatprep.subr.bf16.mxu0 0
      %1399 = vmatpush1.bf16.msra.mxu0 %v1381
      %1400 = vmatprep.subr.bf16.mxu0 0
      %1401 = vmatpush1.bf16.msra.mxu0 0
      %1402 = vmatprep.subr.bf16.mxu0 0
      %1403 = vmatpush1.bf16.msra.mxu0 0
      %1404 = vmatprep.subr.bf16.mxu0 0
      %1405 = vmatpush1.bf16.msra.mxu0 0
      %1406 = vmatprep.subr.bf16.mxu0 0
      %1407 = vmatpush1.bf16.msra.mxu0 0
      %1408 = vmatprep.subr.bf16.mxu0 0
      %1409 = vmatpush1.bf16.msra.mxu0 0
      %1410 = vmatprep.subr.bf16.mxu0 0
      %1411 = vmatpush1.bf16.msra.mxu0 0
      %1412 = vmatprep.subr.bf16.mxu0 0
      %1413 = vmatpush1.bf16.msra.mxu0 0
      %1414 = vmatprep.subr.bf16.mxu0 0
      %1415 = vmatpush1.bf16.msra.mxu0 0
      %1416 = vmatprep.subr.bf16.mxu0 0
      %1417 = vmatpush1.bf16.msra.mxu0 0
      %1418 = vmatprep.subr.bf16.mxu0 0
      %1419 = vmatpush1.bf16.msra.mxu0 0
      %1420 = vmatprep.subr.bf16.mxu0 0
      %1421 = vmatpush1.bf16.msra.mxu0 0
      %1422 = vmatprep.subr.bf16.mxu0 0
      %1423 = vmatpush1.bf16.msra.mxu0 0
      %1424 = vmatprep.subr.bf16.mxu0 0
      %1425 = vmatpush1.bf16.msra.mxu0 0
      %1426 = vmatprep.subr.bf16.mxu0 0
      %1427 = vmatpush1.bf16.msra.mxu0 0
      %1428 = vmatprep.mubr.bf16.mxu0 0
      %1429 = vmatmul.mubr.bf16.gmra.mrb[0].mxu0 %v1385
      %v1430 = vpop.f32.mrb[0].mxu0
      %v1431 = vadd.f32 0.0, %v1430
      %v1432 = vpop.f32.mrb[0].mxu0
      %v1433 = vpop.f32.mrb[0].mxu0
      %v1434 = vadd.f32 0.0, %v1433
      %v1435 = vpop.f32.mrb[0].mxu0
      %1436 = vmatprep.mubr.bf16.mxu0 0
      %1437 = vmatmul.mubr.bf16.gmra.mrb[0].mxu0 %v1388
      %v1438 = vpop.f32.mrb[0].mxu0
      %v1439 = vadd.f32 0.0, %v1438
      %v1440 = vpop.f32.mrb[0].mxu0
      %v1441 = vpop.f32.mrb[0].mxu0
      %v1442 = vadd.f32 0.0, %v1441
      %v1443 = vpop.f32.mrb[0].mxu0
      %1444 = vmatprep.mubr.bf16.mxu0 0
      %1445 = vmatmul.mubr.bf16.gmra.mrb[0].mxu0 %v1391
      %v1446 = vpop.f32.mrb[0].mxu0
      %v1447 = vadd.f32 0.0, %v1446
      %v1448 = vpop.f32.mrb[0].mxu0
      %v1449 = vpop.f32.mrb[0].mxu0
      %v1450 = vadd.f32 0.0, %v1449
      %v1451 = vpop.f32.mrb[0].mxu0
      %1452 = vmatprep.mubr.bf16.mxu0 0
      %1453 = vmatmul.mubr.bf16.gmra.mrb[0].mxu0 %v1394
      %v1454 = vpop.f32.mrb[0].mxu0
      %v1455 = vadd.f32 0.0, %v1454
      %v1456 = vpop.f32.mrb[0].mxu0
      %v1457 = vpop.f32.mrb[0].mxu0
      %v1458 = vadd.f32 0.0, %v1457
      %v1459 = vpop.f32.mrb[0].mxu0
      %1460 = vdwg.mxu0
      %v1461 = vadd.f32 %v1219, %v1431
      %v1462 = vadd.f32 %v1222, %v1434
      %v1463 = vadd.f32 %v1227, %v1439
      %v1464 = vadd.f32 %v1230, %v1442
      %v1465 = vadd.f32 %v1235, %v1447
      %v1466 = vadd.f32 %v1238, %v1450
      %v1467 = vadd.f32 %v1243, %v1455
      %v1468 = vadd.f32 %v1246, %v1458
      %s1469 = scalar_lea.vmem %s2, 192
      %v1470 = vld [vmem:[%s1469] sm:$0xff]
      %v1471 = vld [vmem:[%s1469 + $0x8] sm:$0xff]
      %v1472 = vld [vmem:[%s1469 + $0x10] sm:$0xff]
      %v1473 = vld [vmem:[%s1469 + $0x18] sm:$0xff]
      %v1474 = vld [vmem:[%s1469 + $0x20] sm:$0xff]
      %v1475 = vld [vmem:[%s1469 + $0x28] sm:$0xff]
      %v1476 = vld [vmem:[%s1469 + $0x30] sm:$0xff]
      %v1477 = vld [vmem:[%s1469 + $0x38] sm:$0xff]
      %v1486 = vunpack.c.l.b16 %v1470
      %v1487 = vunpack.c.h.b16 %v1470
      %v1488 = vunpack.c.l.b16 %v1471
      %v1489 = vunpack.c.h.b16 %v1471
      %v1490 = vunpack.c.l.b16 %v1472
      %v1491 = vunpack.c.h.b16 %v1472
      %v1492 = vunpack.c.l.b16 %v1473
      %v1493 = vunpack.c.h.b16 %v1473
      %v1494 = vunpack.c.l.b16 %v1474
      %v1495 = vunpack.c.h.b16 %v1474
      %v1496 = vunpack.c.l.b16 %v1475
      %v1497 = vunpack.c.h.b16 %v1475
      %v1498 = vunpack.c.l.b16 %v1476
      %v1499 = vunpack.c.h.b16 %v1476
      %v1500 = vunpack.c.l.b16 %v1477
      %v1501 = vunpack.c.h.b16 %v1477
      %v1502 = vpack.c.b16 %v1488, %v1486
      %v1503 = vpack.c.b16 %v1489, %v1487
      %v1504 = vpack.c.b16 %v1492, %v1490
      %v1505 = vpack.c.b16 %v1493, %v1491
      %v1506 = vpack.c.b16 %v1496, %v1494
      %v1507 = vpack.c.b16 %v1497, %v1495
      %v1508 = vpack.c.b16 %v1500, %v1498
      %v1509 = vpack.c.b16 %v1501, %v1499
      %1518 = vmatprep.subr.bf16.mxu0 0
      %1519 = vmatpush1.bf16.msra.mxu0 %v810
      %1520 = vmatprep.subr.bf16.mxu0 0
      %1521 = vmatpush1.bf16.msra.mxu0 %v811
      %1522 = vmatprep.subr.bf16.mxu0 0
      %1523 = vmatpush1.bf16.msra.mxu0 %v812
      %1524 = vmatprep.subr.bf16.mxu0 0
      %1525 = vmatpush1.bf16.msra.mxu0 %v813
      %1526 = vmatprep.subr.bf16.mxu0 0
      %1527 = vmatpush1.bf16.msra.mxu0 %v814
      %1528 = vmatprep.subr.bf16.mxu0 0
      %1529 = vmatpush1.bf16.msra.mxu0 %v815
      %1530 = vmatprep.subr.bf16.mxu0 0
      %1531 = vmatpush1.bf16.msra.mxu0 %v816
      %1532 = vmatprep.subr.bf16.mxu0 0
      %1533 = vmatpush1.bf16.msra.mxu0 %v817
      %1534 = vmatprep.subr.bf16.mxu0 0
      %1535 = vmatpush1.bf16.msra.mxu0 %v818
      %1536 = vmatprep.subr.bf16.mxu0 0
      %1537 = vmatpush1.bf16.msra.mxu0 %v819
      %1538 = vmatprep.subr.bf16.mxu0 0
      %1539 = vmatpush1.bf16.msra.mxu0 %v820
      %1540 = vmatprep.subr.bf16.mxu0 0
      %1541 = vmatpush1.bf16.msra.mxu0 %v821
      %1542 = vmatprep.subr.bf16.mxu0 0
      %1543 = vmatpush1.bf16.msra.mxu0 %v822
      %1544 = vmatprep.subr.bf16.mxu0 0
      %1545 = vmatpush1.bf16.msra.mxu0 %v823
      %1546 = vmatprep.subr.bf16.mxu0 0
      %1547 = vmatpush1.bf16.msra.mxu0 %v824
      %1548 = vmatprep.subr.bf16.mxu0 0
      %1549 = vmatpush1.bf16.msra.mxu0 %v825
      %1550 = vmatprep.mubr.bf16.mxu0 %v1503
      %1551 = vmatmul.mubr.bf16.gmra.mrb[0].mxu0 %v1502
      %v1552 = vpop.f32.mrb[0].mxu0
      %v1553 = vadd.f32 0.0, %v1552
      %v1554 = vpop.f32.mrb[0].mxu0
      %v1555 = vpop.f32.mrb[0].mxu0
      %v1556 = vadd.f32 0.0, %v1555
      %v1557 = vpop.f32.mrb[0].mxu0
      %1558 = vmatprep.mubr.bf16.mxu0 %v1505
      %1559 = vmatmul.mubr.bf16.gmra.mrb[0].mxu0 %v1504
      %v1560 = vpop.f32.mrb[0].mxu0
      %v1561 = vadd.f32 0.0, %v1560
      %v1562 = vpop.f32.mrb[0].mxu0
      %v1563 = vpop.f32.mrb[0].mxu0
      %v1564 = vadd.f32 0.0, %v1563
      %v1565 = vpop.f32.mrb[0].mxu0
      %1566 = vmatprep.mubr.bf16.mxu0 %v1507
      %1567 = vmatmul.mubr.bf16.gmra.mrb[0].mxu0 %v1506
      %v1568 = vpop.f32.mrb[0].mxu0
      %v1569 = vadd.f32 0.0, %v1568
      %v1570 = vpop.f32.mrb[0].mxu0
      %v1571 = vpop.f32.mrb[0].mxu0
      %v1572 = vadd.f32 0.0, %v1571
      %v1573 = vpop.f32.mrb[0].mxu0
      %1574 = vmatprep.mubr.bf16.mxu0 %v1509
      %1575 = vmatmul.mubr.bf16.gmra.mrb[0].mxu0 %v1508
      %v1576 = vpop.f32.mrb[0].mxu0
      %v1577 = vadd.f32 0.0, %v1576
      %v1578 = vpop.f32.mrb[0].mxu0
      %v1579 = vpop.f32.mrb[0].mxu0
      %v1580 = vadd.f32 0.0, %v1579
      %v1581 = vpop.f32.mrb[0].mxu0
      %1582 = vdwg.mxu0
      %v1583 = vpack.c.bf16 %v1556, %v1553
      %v1584 = vpack.c.bf16 %v1564, %v1561
      %v1585 = vpack.c.bf16 %v1572, %v1569
      %v1586 = vpack.c.bf16 %v1580, %v1577
      %s1587 = scalar_lea.vmem %s3, 48
      %v1588 = vld [vmem:[%s1587] sm:$0xf]
      %v1589 = vld [vmem:[%s1587 + $0x4] sm:$0xf]
      %v1590 = vld [vmem:[%s1587 + $0x8] sm:$0xf]
      %v1591 = vld [vmem:[%s1587 + $0xc] sm:$0xf]
      %v1596 = vunpack.c.l.b16 %v1588
      %v1597 = vunpack.c.l.b16 %v1589
      %v1598 = vunpack.c.l.b16 %v1590
      %v1599 = vunpack.c.l.b16 %v1591
      %v1600 = vpack.c.b16 %v1597, %v1596
      %v1601 = vpack.c.b16 %v1599, %v1598
      %v1605 = vsel %vm1082, %v1583, 0
      %v1608 = vsel %vm1082, %v1584, 0
      %v1611 = vsel %vm1082, %v1585, 0
      %v1614 = vsel %vm1082, %v1586, 0
      %1616 = vmatprep.subr.bf16.mxu0 0
      %1617 = vmatpush1.bf16.msra.mxu0 %v1600
      %1618 = vmatprep.subr.bf16.mxu0 0
      %1619 = vmatpush1.bf16.msra.mxu0 %v1601
      %1620 = vmatprep.subr.bf16.mxu0 0
      %1621 = vmatpush1.bf16.msra.mxu0 0
      %1622 = vmatprep.subr.bf16.mxu0 0
      %1623 = vmatpush1.bf16.msra.mxu0 0
      %1624 = vmatprep.subr.bf16.mxu0 0
      %1625 = vmatpush1.bf16.msra.mxu0 0
      %1626 = vmatprep.subr.bf16.mxu0 0
      %1627 = vmatpush1.bf16.msra.mxu0 0
      %1628 = vmatprep.subr.bf16.mxu0 0
      %1629 = vmatpush1.bf16.msra.mxu0 0
      %1630 = vmatprep.subr.bf16.mxu0 0
      %1631 = vmatpush1.bf16.msra.mxu0 0
      %1632 = vmatprep.subr.bf16.mxu0 0
      %1633 = vmatpush1.bf16.msra.mxu0 0
      %1634 = vmatprep.subr.bf16.mxu0 0
      %1635 = vmatpush1.bf16.msra.mxu0 0
      %1636 = vmatprep.subr.bf16.mxu0 0
      %1637 = vmatpush1.bf16.msra.mxu0 0
      %1638 = vmatprep.subr.bf16.mxu0 0
      %1639 = vmatpush1.bf16.msra.mxu0 0
      %1640 = vmatprep.subr.bf16.mxu0 0
      %1641 = vmatpush1.bf16.msra.mxu0 0
      %1642 = vmatprep.subr.bf16.mxu0 0
      %1643 = vmatpush1.bf16.msra.mxu0 0
      %1644 = vmatprep.subr.bf16.mxu0 0
      %1645 = vmatpush1.bf16.msra.mxu0 0
      %1646 = vmatprep.subr.bf16.mxu0 0
      %1647 = vmatpush1.bf16.msra.mxu0 0
      %1648 = vmatprep.mubr.bf16.mxu0 0
      %1649 = vmatmul.mubr.bf16.gmra.mrb[0].mxu0 %v1605
      %v1650 = vpop.f32.mrb[0].mxu0
      %v1651 = vadd.f32 0.0, %v1650
      %v1652 = vpop.f32.mrb[0].mxu0
      %v1653 = vpop.f32.mrb[0].mxu0
      %v1654 = vadd.f32 0.0, %v1653
      %v1655 = vpop.f32.mrb[0].mxu0
      %1656 = vmatprep.mubr.bf16.mxu0 0
      %1657 = vmatmul.mubr.bf16.gmra.mrb[0].mxu0 %v1608
      %v1658 = vpop.f32.mrb[0].mxu0
      %v1659 = vadd.f32 0.0, %v1658
      %v1660 = vpop.f32.mrb[0].mxu0
      %v1661 = vpop.f32.mrb[0].mxu0
      %v1662 = vadd.f32 0.0, %v1661
      %v1663 = vpop.f32.mrb[0].mxu0
      %1664 = vmatprep.mubr.bf16.mxu0 0
      %1665 = vmatmul.mubr.bf16.gmra.mrb[0].mxu0 %v1611
      %v1666 = vpop.f32.mrb[0].mxu0
      %v1667 = vadd.f32 0.0, %v1666
      %v1668 = vpop.f32.mrb[0].mxu0
      %v1669 = vpop.f32.mrb[0].mxu0
      %v1670 = vadd.f32 0.0, %v1669
      %v1671 = vpop.f32.mrb[0].mxu0
      %1672 = vmatprep.mubr.bf16.mxu0 0
      %1673 = vmatmul.mubr.bf16.gmra.mrb[0].mxu0 %v1614
      %v1674 = vpop.f32.mrb[0].mxu0
      %v1675 = vadd.f32 0.0, %v1674
      %v1676 = vpop.f32.mrb[0].mxu0
      %v1677 = vpop.f32.mrb[0].mxu0
      %v1678 = vadd.f32 0.0, %v1677
      %v1679 = vpop.f32.mrb[0].mxu0
      %1680 = vdwg.mxu0
      %v1681 = vadd.f32 %v1461, %v1651
      %v1682 = vadd.f32 %v1462, %v1654
      %v1683 = vadd.f32 %v1463, %v1659
      %v1684 = vadd.f32 %v1464, %v1662
      %v1685 = vadd.f32 %v1465, %v1667
      %v1686 = vadd.f32 %v1466, %v1670
      %v1687 = vadd.f32 %v1467, %v1675
      %v1688 = vadd.f32 %v1468, %v1678
      %s1689 = scalar_lea.vmem %s2, 256
      %v1690 = vld [vmem:[%s1689] sm:$0xff]
      %v1691 = vld [vmem:[%s1689 + $0x8] sm:$0xff]
      %v1692 = vld [vmem:[%s1689 + $0x10] sm:$0xff]
      %v1693 = vld [vmem:[%s1689 + $0x18] sm:$0xff]
      %v1694 = vld [vmem:[%s1689 + $0x20] sm:$0xff]
      %v1695 = vld [vmem:[%s1689 + $0x28] sm:$0xff]
      %v1696 = vld [vmem:[%s1689 + $0x30] sm:$0xff]
      %v1697 = vld [vmem:[%s1689 + $0x38] sm:$0xff]
      %v1706 = vunpack.c.l.b16 %v1690
      %v1707 = vunpack.c.h.b16 %v1690
      %v1708 = vunpack.c.l.b16 %v1691
      %v1709 = vunpack.c.h.b16 %v1691
      %v1710 = vunpack.c.l.b16 %v1692
      %v1711 = vunpack.c.h.b16 %v1692
      %v1712 = vunpack.c.l.b16 %v1693
      %v1713 = vunpack.c.h.b16 %v1693
      %v1714 = vunpack.c.l.b16 %v1694
      %v1715 = vunpack.c.h.b16 %v1694
      %v1716 = vunpack.c.l.b16 %v1695
      %v1717 = vunpack.c.h.b16 %v1695
      %v1718 = vunpack.c.l.b16 %v1696
      %v1719 = vunpack.c.h.b16 %v1696
      %v1720 = vunpack.c.l.b16 %v1697
      %v1721 = vunpack.c.h.b16 %v1697
      %v1722 = vpack.c.b16 %v1708, %v1706
      %v1723 = vpack.c.b16 %v1709, %v1707
      %v1724 = vpack.c.b16 %v1712, %v1710
      %v1725 = vpack.c.b16 %v1713, %v1711
      %v1726 = vpack.c.b16 %v1716, %v1714
      %v1727 = vpack.c.b16 %v1717, %v1715
      %v1728 = vpack.c.b16 %v1720, %v1718
      %v1729 = vpack.c.b16 %v1721, %v1719
      %1738 = vmatprep.subr.bf16.mxu0 0
      %1739 = vmatpush1.bf16.msra.mxu0 %v810
      %1740 = vmatprep.subr.bf16.mxu0 0
      %1741 = vmatpush1.bf16.msra.mxu0 %v811
      %1742 = vmatprep.subr.bf16.mxu0 0
      %1743 = vmatpush1.bf16.msra.mxu0 %v812
      %1744 = vmatprep.subr.bf16.mxu0 0
      %1745 = vmatpush1.bf16.msra.mxu0 %v813
      %1746 = vmatprep.subr.bf16.mxu0 0
      %1747 = vmatpush1.bf16.msra.mxu0 %v814
      %1748 = vmatprep.subr.bf16.mxu0 0
      %1749 = vmatpush1.bf16.msra.mxu0 %v815
      %1750 = vmatprep.subr.bf16.mxu0 0
      %1751 = vmatpush1.bf16.msra.mxu0 %v816
      %1752 = vmatprep.subr.bf16.mxu0 0
      %1753 = vmatpush1.bf16.msra.mxu0 %v817
      %1754 = vmatprep.subr.bf16.mxu0 0
      %1755 = vmatpush1.bf16.msra.mxu0 %v818
      %1756 = vmatprep.subr.bf16.mxu0 0
      %1757 = vmatpush1.bf16.msra.mxu0 %v819
      %1758 = vmatprep.subr.bf16.mxu0 0
      %1759 = vmatpush1.bf16.msra.mxu0 %v820
      %1760 = vmatprep.subr.bf16.mxu0 0
      %1761 = vmatpush1.bf16.msra.mxu0 %v821
      %1762 = vmatprep.subr.bf16.mxu0 0
      %1763 = vmatpush1.bf16.msra.mxu0 %v822
      %1764 = vmatprep.subr.bf16.mxu0 0
      %1765 = vmatpush1.bf16.msra.mxu0 %v823
      %1766 = vmatprep.subr.bf16.mxu0 0
      %1767 = vmatpush1.bf16.msra.mxu0 %v824
      %1768 = vmatprep.subr.bf16.mxu0 0
      %1769 = vmatpush1.bf16.msra.mxu0 %v825
      %1770 = vmatprep.mubr.bf16.mxu0 %v1723
      %1771 = vmatmul.mubr.bf16.gmra.mrb[0].mxu0 %v1722
      %v1772 = vpop.f32.mrb[0].mxu0
      %v1773 = vadd.f32 0.0, %v1772
      %v1774 = vpop.f32.mrb[0].mxu0
      %v1775 = vpop.f32.mrb[0].mxu0
      %v1776 = vadd.f32 0.0, %v1775
      %v1777 = vpop.f32.mrb[0].mxu0
      %1778 = vmatprep.mubr.bf16.mxu0 %v1725
      %1779 = vmatmul.mubr.bf16.gmra.mrb[0].mxu0 %v1724
      %v1780 = vpop.f32.mrb[0].mxu0
      %v1781 = vadd.f32 0.0, %v1780
      %v1782 = vpop.f32.mrb[0].mxu0
      %v1783 = vpop.f32.mrb[0].mxu0
      %v1784 = vadd.f32 0.0, %v1783
      %v1785 = vpop.f32.mrb[0].mxu0
      %1786 = vmatprep.mubr.bf16.mxu0 %v1727
      %1787 = vmatmul.mubr.bf16.gmra.mrb[0].mxu0 %v1726
      %v1788 = vpop.f32.mrb[0].mxu0
      %v1789 = vadd.f32 0.0, %v1788
      %v1790 = vpop.f32.mrb[0].mxu0
      %v1791 = vpop.f32.mrb[0].mxu0
      %v1792 = vadd.f32 0.0, %v1791
      %v1793 = vpop.f32.mrb[0].mxu0
      %1794 = vmatprep.mubr.bf16.mxu0 %v1729
      %1795 = vmatmul.mubr.bf16.gmra.mrb[0].mxu0 %v1728
      %v1796 = vpop.f32.mrb[0].mxu0
      %v1797 = vadd.f32 0.0, %v1796
      %v1798 = vpop.f32.mrb[0].mxu0
      %v1799 = vpop.f32.mrb[0].mxu0
      %v1800 = vadd.f32 0.0, %v1799
      %v1801 = vpop.f32.mrb[0].mxu0
      %1802 = vdwg.mxu0
      %v1803 = vpack.c.bf16 %v1776, %v1773
      %v1804 = vpack.c.bf16 %v1784, %v1781
      %v1805 = vpack.c.bf16 %v1792, %v1789
      %v1806 = vpack.c.bf16 %v1800, %v1797
      %s1807 = scalar_lea.vmem %s3, 64
      %v1808 = vld [vmem:[%s1807] sm:$0xf]
      %v1809 = vld [vmem:[%s1807 + $0x4] sm:$0xf]
      %v1810 = vld [vmem:[%s1807 + $0x8] sm:$0xf]
      %v1811 = vld [vmem:[%s1807 + $0xc] sm:$0xf]
      %v1816 = vunpack.c.l.b16 %v1808
      %v1817 = vunpack.c.l.b16 %v1809
      %v1818 = vunpack.c.l.b16 %v1810
      %v1819 = vunpack.c.l.b16 %v1811
      %v1820 = vpack.c.b16 %v1817, %v1816
      %v1821 = vpack.c.b16 %v1819, %v1818
      %v1825 = vsel %vm1082, %v1803, 0
      %v1828 = vsel %vm1082, %v1804, 0
      %v1831 = vsel %vm1082, %v1805, 0
      %v1834 = vsel %vm1082, %v1806, 0
      %1836 = vmatprep.subr.bf16.mxu0 0
      %1837 = vmatpush1.bf16.msra.mxu0 %v1820
      %1838 = vmatprep.subr.bf16.mxu0 0
      %1839 = vmatpush1.bf16.msra.mxu0 %v1821
      %1840 = vmatprep.subr.bf16.mxu0 0
      %1841 = vmatpush1.bf16.msra.mxu0 0
      %1842 = vmatprep.subr.bf16.mxu0 0
      %1843 = vmatpush1.bf16.msra.mxu0 0
      %1844 = vmatprep.subr.bf16.mxu0 0
      %1845 = vmatpush1.bf16.msra.mxu0 0
      %1846 = vmatprep.subr.bf16.mxu0 0
      %1847 = vmatpush1.bf16.msra.mxu0 0
      %1848 = vmatprep.subr.bf16.mxu0 0
      %1849 = vmatpush1.bf16.msra.mxu0 0
      %1850 = vmatprep.subr.bf16.mxu0 0
      %1851 = vmatpush1.bf16.msra.mxu0 0
      %1852 = vmatprep.subr.bf16.mxu0 0
      %1853 = vmatpush1.bf16.msra.mxu0 0
      %1854 = vmatprep.subr.bf16.mxu0 0
      %1855 = vmatpush1.bf16.msra.mxu0 0
      %1856 = vmatprep.subr.bf16.mxu0 0
      %1857 = vmatpush1.bf16.msra.mxu0 0
      %1858 = vmatprep.subr.bf16.mxu0 0
      %1859 = vmatpush1.bf16.msra.mxu0 0
      %1860 = vmatprep.subr.bf16.mxu0 0
      %1861 = vmatpush1.bf16.msra.mxu0 0
      %1862 = vmatprep.subr.bf16.mxu0 0
      %1863 = vmatpush1.bf16.msra.mxu0 0
      %1864 = vmatprep.subr.bf16.mxu0 0
      %1865 = vmatpush1.bf16.msra.mxu0 0
      %1866 = vmatprep.subr.bf16.mxu0 0
      %1867 = vmatpush1.bf16.msra.mxu0 0
      %1868 = vmatprep.mubr.bf16.mxu0 0
      %1869 = vmatmul.mubr.bf16.gmra.mrb[0].mxu0 %v1825
      %v1870 = vpop.f32.mrb[0].mxu0
      %v1871 = vadd.f32 0.0, %v1870
      %v1872 = vpop.f32.mrb[0].mxu0
      %v1873 = vpop.f32.mrb[0].mxu0
      %v1874 = vadd.f32 0.0, %v1873
      %v1875 = vpop.f32.mrb[0].mxu0
      %1876 = vmatprep.mubr.bf16.mxu0 0
      %1877 = vmatmul.mubr.bf16.gmra.mrb[0].mxu0 %v1828
      %v1878 = vpop.f32.mrb[0].mxu0
      %v1879 = vadd.f32 0.0, %v1878
      %v1880 = vpop.f32.mrb[0].mxu0
      %v1881 = vpop.f32.mrb[0].mxu0
      %v1882 = vadd.f32 0.0, %v1881
      %v1883 = vpop.f32.mrb[0].mxu0
      %1884 = vmatprep.mubr.bf16.mxu0 0
      %1885 = vmatmul.mubr.bf16.gmra.mrb[0].mxu0 %v1831
      %v1886 = vpop.f32.mrb[0].mxu0
      %v1887 = vadd.f32 0.0, %v1886
      %v1888 = vpop.f32.mrb[0].mxu0
      %v1889 = vpop.f32.mrb[0].mxu0
      %v1890 = vadd.f32 0.0, %v1889
      %v1891 = vpop.f32.mrb[0].mxu0
      %1892 = vmatprep.mubr.bf16.mxu0 0
      %1893 = vmatmul.mubr.bf16.gmra.mrb[0].mxu0 %v1834
      %v1894 = vpop.f32.mrb[0].mxu0
      %v1895 = vadd.f32 0.0, %v1894
      %v1896 = vpop.f32.mrb[0].mxu0
      %v1897 = vpop.f32.mrb[0].mxu0
      %v1898 = vadd.f32 0.0, %v1897
      %v1899 = vpop.f32.mrb[0].mxu0
      %1900 = vdwg.mxu0
      %v1901 = vadd.f32 %v1681, %v1871
      %v1902 = vadd.f32 %v1682, %v1874
      %v1903 = vadd.f32 %v1683, %v1879
      %v1904 = vadd.f32 %v1684, %v1882
      %v1905 = vadd.f32 %v1685, %v1887
      %v1906 = vadd.f32 %v1686, %v1890
      %v1907 = vadd.f32 %v1687, %v1895
      %v1908 = vadd.f32 %v1688, %v1898
      %s1909 = scalar_lea.vmem %s2, 320
      %v1910 = vld [vmem:[%s1909] sm:$0xff]
      %v1911 = vld [vmem:[%s1909 + $0x8] sm:$0xff]
      %v1912 = vld [vmem:[%s1909 + $0x10] sm:$0xff]
      %v1913 = vld [vmem:[%s1909 + $0x18] sm:$0xff]
      %v1914 = vld [vmem:[%s1909 + $0x20] sm:$0xff]
      %v1915 = vld [vmem:[%s1909 + $0x28] sm:$0xff]
      %v1916 = vld [vmem:[%s1909 + $0x30] sm:$0xff]
      %v1917 = vld [vmem:[%s1909 + $0x38] sm:$0xff]
      %v1926 = vunpack.c.l.b16 %v1910
      %v1927 = vunpack.c.h.b16 %v1910
      %v1928 = vunpack.c.l.b16 %v1911
      %v1929 = vunpack.c.h.b16 %v1911
      %v1930 = vunpack.c.l.b16 %v1912
      %v1931 = vunpack.c.h.b16 %v1912
      %v1932 = vunpack.c.l.b16 %v1913
      %v1933 = vunpack.c.h.b16 %v1913
      %v1934 = vunpack.c.l.b16 %v1914
      %v1935 = vunpack.c.h.b16 %v1914
      %v1936 = vunpack.c.l.b16 %v1915
      %v1937 = vunpack.c.h.b16 %v1915
      %v1938 = vunpack.c.l.b16 %v1916
      %v1939 = vunpack.c.h.b16 %v1916
      %v1940 = vunpack.c.l.b16 %v1917
      %v1941 = vunpack.c.h.b16 %v1917
      %v1942 = vpack.c.b16 %v1928, %v1926
      %v1943 = vpack.c.b16 %v1929, %v1927
      %v1944 = vpack.c.b16 %v1932, %v1930
      %v1945 = vpack.c.b16 %v1933, %v1931
      %v1946 = vpack.c.b16 %v1936, %v1934
      %v1947 = vpack.c.b16 %v1937, %v1935
      %v1948 = vpack.c.b16 %v1940, %v1938
      %v1949 = vpack.c.b16 %v1941, %v1939
      %1958 = vmatprep.subr.bf16.mxu0 0
      %1959 = vmatpush1.bf16.msra.mxu0 %v810
      %1960 = vmatprep.subr.bf16.mxu0 0
      %1961 = vmatpush1.bf16.msra.mxu0 %v811
      %1962 = vmatprep.subr.bf16.mxu0 0
      %1963 = vmatpush1.bf16.msra.mxu0 %v812
      %1964 = vmatprep.subr.bf16.mxu0 0
      %1965 = vmatpush1.bf16.msra.mxu0 %v813
      %1966 = vmatprep.subr.bf16.mxu0 0
      %1967 = vmatpush1.bf16.msra.mxu0 %v814
      %1968 = vmatprep.subr.bf16.mxu0 0
      %1969 = vmatpush1.bf16.msra.mxu0 %v815
      %1970 = vmatprep.subr.bf16.mxu0 0
      %1971 = vmatpush1.bf16.msra.mxu0 %v816
      %1972 = vmatprep.subr.bf16.mxu0 0
      %1973 = vmatpush1.bf16.msra.mxu0 %v817
      %1974 = vmatprep.subr.bf16.mxu0 0
      %1975 = vmatpush1.bf16.msra.mxu0 %v818
      %1976 = vmatprep.subr.bf16.mxu0 0
      %1977 = vmatpush1.bf16.msra.mxu0 %v819
      %1978 = vmatprep.subr.bf16.mxu0 0
      %1979 = vmatpush1.bf16.msra.mxu0 %v820
      %1980 = vmatprep.subr.bf16.mxu0 0
      %1981 = vmatpush1.bf16.msra.mxu0 %v821
      %1982 = vmatprep.subr.bf16.mxu0 0
      %1983 = vmatpush1.bf16.msra.mxu0 %v822
      %1984 = vmatprep.subr.bf16.mxu0 0
      %1985 = vmatpush1.bf16.msra.mxu0 %v823
      %1986 = vmatprep.subr.bf16.mxu0 0
      %1987 = vmatpush1.bf16.msra.mxu0 %v824
      %1988 = vmatprep.subr.bf16.mxu0 0
      %1989 = vmatpush1.bf16.msra.mxu0 %v825
      %1990 = vmatprep.mubr.bf16.mxu0 %v1943
      %1991 = vmatmul.mubr.bf16.gmra.mrb[0].mxu0 %v1942
      %v1992 = vpop.f32.mrb[0].mxu0
      %v1993 = vadd.f32 0.0, %v1992
      %v1994 = vpop.f32.mrb[0].mxu0
      %v1995 = vpop.f32.mrb[0].mxu0
      %v1996 = vadd.f32 0.0, %v1995
      %v1997 = vpop.f32.mrb[0].mxu0
      %1998 = vmatprep.mubr.bf16.mxu0 %v1945
      %1999 = vmatmul.mubr.bf16.gmra.mrb[0].mxu0 %v1944
      %v2000 = vpop.f32.mrb[0].mxu0
      %v2001 = vadd.f32 0.0, %v2000
      %v2002 = vpop.f32.mrb[0].mxu0
      %v2003 = vpop.f32.mrb[0].mxu0
      %v2004 = vadd.f32 0.0, %v2003
      %v2005 = vpop.f32.mrb[0].mxu0
      %2006 = vmatprep.mubr.bf16.mxu0 %v1947
      %2007 = vmatmul.mubr.bf16.gmra.mrb[0].mxu0 %v1946
      %v2008 = vpop.f32.mrb[0].mxu0
      %v2009 = vadd.f32 0.0, %v2008
      %v2010 = vpop.f32.mrb[0].mxu0
      %v2011 = vpop.f32.mrb[0].mxu0
      %v2012 = vadd.f32 0.0, %v2011
      %v2013 = vpop.f32.mrb[0].mxu0
      %2014 = vmatprep.mubr.bf16.mxu0 %v1949
      %2015 = vmatmul.mubr.bf16.gmra.mrb[0].mxu0 %v1948
      %v2016 = vpop.f32.mrb[0].mxu0
      %v2017 = vadd.f32 0.0, %v2016
      %v2018 = vpop.f32.mrb[0].mxu0
      %v2019 = vpop.f32.mrb[0].mxu0
      %v2020 = vadd.f32 0.0, %v2019
      %v2021 = vpop.f32.mrb[0].mxu0
      %2022 = vdwg.mxu0
      %v2023 = vpack.c.bf16 %v1996, %v1993
      %v2024 = vpack.c.bf16 %v2004, %v2001
      %v2025 = vpack.c.bf16 %v2012, %v2009
      %v2026 = vpack.c.bf16 %v2020, %v2017
      %s2027 = scalar_lea.vmem %s3, 80
      %v2028 = vld [vmem:[%s2027] sm:$0xf]
      %v2029 = vld [vmem:[%s2027 + $0x4] sm:$0xf]
      %v2030 = vld [vmem:[%s2027 + $0x8] sm:$0xf]
      %v2031 = vld [vmem:[%s2027 + $0xc] sm:$0xf]
      %v2036 = vunpack.c.l.b16 %v2028
      %v2037 = vunpack.c.l.b16 %v2029
      %v2038 = vunpack.c.l.b16 %v2030
      %v2039 = vunpack.c.l.b16 %v2031
      %v2040 = vpack.c.b16 %v2037, %v2036
      %v2041 = vpack.c.b16 %v2039, %v2038
      %v2045 = vsel %vm1082, %v2023, 0
      %v2048 = vsel %vm1082, %v2024, 0
      %v2051 = vsel %vm1082, %v2025, 0
      %v2054 = vsel %vm1082, %v2026, 0
      %2056 = vmatprep.subr.bf16.mxu0 0
      %2057 = vmatpush1.bf16.msra.mxu0 %v2040
      %2058 = vmatprep.subr.bf16.mxu0 0
      %2059 = vmatpush1.bf16.msra.mxu0 %v2041
      %2060 = vmatprep.subr.bf16.mxu0 0
      %2061 = vmatpush1.bf16.msra.mxu0 0
      %2062 = vmatprep.subr.bf16.mxu0 0
      %2063 = vmatpush1.bf16.msra.mxu0 0
      %2064 = vmatprep.subr.bf16.mxu0 0
      %2065 = vmatpush1.bf16.msra.mxu0 0
      %2066 = vmatprep.subr.bf16.mxu0 0
      %2067 = vmatpush1.bf16.msra.mxu0 0
      %2068 = vmatprep.subr.bf16.mxu0 0
      %2069 = vmatpush1.bf16.msra.mxu0 0
      %2070 = vmatprep.subr.bf16.mxu0 0
      %2071 = vmatpush1.bf16.msra.mxu0 0
      %2072 = vmatprep.subr.bf16.mxu0 0
      %2073 = vmatpush1.bf16.msra.mxu0 0
      %2074 = vmatprep.subr.bf16.mxu0 0
      %2075 = vmatpush1.bf16.msra.mxu0 0
      %2076 = vmatprep.subr.bf16.mxu0 0
      %2077 = vmatpush1.bf16.msra.mxu0 0
      %2078 = vmatprep.subr.bf16.mxu0 0
      %2079 = vmatpush1.bf16.msra.mxu0 0
      %2080 = vmatprep.subr.bf16.mxu0 0
      %2081 = vmatpush1.bf16.msra.mxu0 0
      %2082 = vmatprep.subr.bf16.mxu0 0
      %2083 = vmatpush1.bf16.msra.mxu0 0
      %2084 = vmatprep.subr.bf16.mxu0 0
      %2085 = vmatpush1.bf16.msra.mxu0 0
      %2086 = vmatprep.subr.bf16.mxu0 0
      %2087 = vmatpush1.bf16.msra.mxu0 0
      %2088 = vmatprep.mubr.bf16.mxu0 0
      %2089 = vmatmul.mubr.bf16.gmra.mrb[0].mxu0 %v2045
      %v2090 = vpop.f32.mrb[0].mxu0
      %v2091 = vadd.f32 0.0, %v2090
      %v2092 = vpop.f32.mrb[0].mxu0
      %v2093 = vpop.f32.mrb[0].mxu0
      %v2094 = vadd.f32 0.0, %v2093
      %v2095 = vpop.f32.mrb[0].mxu0
      %2096 = vmatprep.mubr.bf16.mxu0 0
      %2097 = vmatmul.mubr.bf16.gmra.mrb[0].mxu0 %v2048
      %v2098 = vpop.f32.mrb[0].mxu0
      %v2099 = vadd.f32 0.0, %v2098
      %v2100 = vpop.f32.mrb[0].mxu0
      %v2101 = vpop.f32.mrb[0].mxu0
      %v2102 = vadd.f32 0.0, %v2101
      %v2103 = vpop.f32.mrb[0].mxu0
      %2104 = vmatprep.mubr.bf16.mxu0 0
      %2105 = vmatmul.mubr.bf16.gmra.mrb[0].mxu0 %v2051
      %v2106 = vpop.f32.mrb[0].mxu0
      %v2107 = vadd.f32 0.0, %v2106
      %v2108 = vpop.f32.mrb[0].mxu0
      %v2109 = vpop.f32.mrb[0].mxu0
      %v2110 = vadd.f32 0.0, %v2109
      %v2111 = vpop.f32.mrb[0].mxu0
      %2112 = vmatprep.mubr.bf16.mxu0 0
      %2113 = vmatmul.mubr.bf16.gmra.mrb[0].mxu0 %v2054
      %v2114 = vpop.f32.mrb[0].mxu0
      %v2115 = vadd.f32 0.0, %v2114
      %v2116 = vpop.f32.mrb[0].mxu0
      %v2117 = vpop.f32.mrb[0].mxu0
      %v2118 = vadd.f32 0.0, %v2117
      %v2119 = vpop.f32.mrb[0].mxu0
      %2120 = vdwg.mxu0
      %v2121 = vadd.f32 %v1901, %v2091
      %v2122 = vadd.f32 %v1902, %v2094
      %v2123 = vadd.f32 %v1903, %v2099
      %v2124 = vadd.f32 %v1904, %v2102
      %v2125 = vadd.f32 %v1905, %v2107
      %v2126 = vadd.f32 %v1906, %v2110
      %v2127 = vadd.f32 %v1907, %v2115
      %v2128 = vadd.f32 %v1908, %v2118
      %s2129 = scalar_lea.vmem %s2, 384
      %v2130 = vld [vmem:[%s2129] sm:$0xff]
      %v2131 = vld [vmem:[%s2129 + $0x8] sm:$0xff]
      %v2132 = vld [vmem:[%s2129 + $0x10] sm:$0xff]
      %v2133 = vld [vmem:[%s2129 + $0x18] sm:$0xff]
      %v2134 = vld [vmem:[%s2129 + $0x20] sm:$0xff]
      %v2135 = vld [vmem:[%s2129 + $0x28] sm:$0xff]
      %v2136 = vld [vmem:[%s2129 + $0x30] sm:$0xff]
      %v2137 = vld [vmem:[%s2129 + $0x38] sm:$0xff]
      %v2146 = vunpack.c.l.b16 %v2130
      %v2147 = vunpack.c.h.b16 %v2130
      %v2148 = vunpack.c.l.b16 %v2131
      %v2149 = vunpack.c.h.b16 %v2131
      %v2150 = vunpack.c.l.b16 %v2132
      %v2151 = vunpack.c.h.b16 %v2132
      %v2152 = vunpack.c.l.b16 %v2133
      %v2153 = vunpack.c.h.b16 %v2133
      %v2154 = vunpack.c.l.b16 %v2134
      %v2155 = vunpack.c.h.b16 %v2134
      %v2156 = vunpack.c.l.b16 %v2135
      %v2157 = vunpack.c.h.b16 %v2135
      %v2158 = vunpack.c.l.b16 %v2136
      %v2159 = vunpack.c.h.b16 %v2136
      %v2160 = vunpack.c.l.b16 %v2137
      %v2161 = vunpack.c.h.b16 %v2137
      %v2162 = vpack.c.b16 %v2148, %v2146
      %v2163 = vpack.c.b16 %v2149, %v2147
      %v2164 = vpack.c.b16 %v2152, %v2150
      %v2165 = vpack.c.b16 %v2153, %v2151
      %v2166 = vpack.c.b16 %v2156, %v2154
      %v2167 = vpack.c.b16 %v2157, %v2155
      %v2168 = vpack.c.b16 %v2160, %v2158
      %v2169 = vpack.c.b16 %v2161, %v2159
      %2178 = vmatprep.subr.bf16.mxu0 0
      %2179 = vmatpush1.bf16.msra.mxu0 %v810
      %2180 = vmatprep.subr.bf16.mxu0 0
      %2181 = vmatpush1.bf16.msra.mxu0 %v811
      %2182 = vmatprep.subr.bf16.mxu0 0
      %2183 = vmatpush1.bf16.msra.mxu0 %v812
      %2184 = vmatprep.subr.bf16.mxu0 0
      %2185 = vmatpush1.bf16.msra.mxu0 %v813
      %2186 = vmatprep.subr.bf16.mxu0 0
      %2187 = vmatpush1.bf16.msra.mxu0 %v814
      %2188 = vmatprep.subr.bf16.mxu0 0
      %2189 = vmatpush1.bf16.msra.mxu0 %v815
      %2190 = vmatprep.subr.bf16.mxu0 0
      %2191 = vmatpush1.bf16.msra.mxu0 %v816
      %2192 = vmatprep.subr.bf16.mxu0 0
      %2193 = vmatpush1.bf16.msra.mxu0 %v817
      %2194 = vmatprep.subr.bf16.mxu0 0
      %2195 = vmatpush1.bf16.msra.mxu0 %v818
      %2196 = vmatprep.subr.bf16.mxu0 0
      %2197 = vmatpush1.bf16.msra.mxu0 %v819
      %2198 = vmatprep.subr.bf16.mxu0 0
      %2199 = vmatpush1.bf16.msra.mxu0 %v820
      %2200 = vmatprep.subr.bf16.mxu0 0
      %2201 = vmatpush1.bf16.msra.mxu0 %v821
      %2202 = vmatprep.subr.bf16.mxu0 0
      %2203 = vmatpush1.bf16.msra.mxu0 %v822
      %2204 = vmatprep.subr.bf16.mxu0 0
      %2205 = vmatpush1.bf16.msra.mxu0 %v823
      %2206 = vmatprep.subr.bf16.mxu0 0
      %2207 = vmatpush1.bf16.msra.mxu0 %v824
      %2208 = vmatprep.subr.bf16.mxu0 0
      %2209 = vmatpush1.bf16.msra.mxu0 %v825
      %2210 = vmatprep.mubr.bf16.mxu0 %v2163
      %2211 = vmatmul.mubr.bf16.gmra.mrb[0].mxu0 %v2162
      %v2212 = vpop.f32.mrb[0].mxu0
      %v2213 = vadd.f32 0.0, %v2212
      %v2214 = vpop.f32.mrb[0].mxu0
      %v2215 = vpop.f32.mrb[0].mxu0
      %v2216 = vadd.f32 0.0, %v2215
      %v2217 = vpop.f32.mrb[0].mxu0
      %2218 = vmatprep.mubr.bf16.mxu0 %v2165
      %2219 = vmatmul.mubr.bf16.gmra.mrb[0].mxu0 %v2164
      %v2220 = vpop.f32.mrb[0].mxu0
      %v2221 = vadd.f32 0.0, %v2220
      %v2222 = vpop.f32.mrb[0].mxu0
      %v2223 = vpop.f32.mrb[0].mxu0
      %v2224 = vadd.f32 0.0, %v2223
      %v2225 = vpop.f32.mrb[0].mxu0
      %2226 = vmatprep.mubr.bf16.mxu0 %v2167
      %2227 = vmatmul.mubr.bf16.gmra.mrb[0].mxu0 %v2166
      %v2228 = vpop.f32.mrb[0].mxu0
      %v2229 = vadd.f32 0.0, %v2228
      %v2230 = vpop.f32.mrb[0].mxu0
      %v2231 = vpop.f32.mrb[0].mxu0
      %v2232 = vadd.f32 0.0, %v2231
      %v2233 = vpop.f32.mrb[0].mxu0
      %2234 = vmatprep.mubr.bf16.mxu0 %v2169
      %2235 = vmatmul.mubr.bf16.gmra.mrb[0].mxu0 %v2168
      %v2236 = vpop.f32.mrb[0].mxu0
      %v2237 = vadd.f32 0.0, %v2236
      %v2238 = vpop.f32.mrb[0].mxu0
      %v2239 = vpop.f32.mrb[0].mxu0
      %v2240 = vadd.f32 0.0, %v2239
      %v2241 = vpop.f32.mrb[0].mxu0
      %2242 = vdwg.mxu0
      %v2243 = vpack.c.bf16 %v2216, %v2213
      %v2244 = vpack.c.bf16 %v2224, %v2221
      %v2245 = vpack.c.bf16 %v2232, %v2229
      %v2246 = vpack.c.bf16 %v2240, %v2237
      %s2247 = scalar_lea.vmem %s3, 96
      %v2248 = vld [vmem:[%s2247] sm:$0xf]
      %v2249 = vld [vmem:[%s2247 + $0x4] sm:$0xf]
      %v2250 = vld [vmem:[%s2247 + $0x8] sm:$0xf]
      %v2251 = vld [vmem:[%s2247 + $0xc] sm:$0xf]
      %v2256 = vunpack.c.l.b16 %v2248
      %v2257 = vunpack.c.l.b16 %v2249
      %v2258 = vunpack.c.l.b16 %v2250
      %v2259 = vunpack.c.l.b16 %v2251
      %v2260 = vpack.c.b16 %v2257, %v2256
      %v2261 = vpack.c.b16 %v2259, %v2258
      %v2265 = vsel %vm1082, %v2243, 0
      %v2268 = vsel %vm1082, %v2244, 0
      %v2271 = vsel %vm1082, %v2245, 0
      %v2274 = vsel %vm1082, %v2246, 0
      %2276 = vmatprep.subr.bf16.mxu0 0
      %2277 = vmatpush1.bf16.msra.mxu0 %v2260
      %2278 = vmatprep.subr.bf16.mxu0 0
      %2279 = vmatpush1.bf16.msra.mxu0 %v2261
      %2280 = vmatprep.subr.bf16.mxu0 0
      %2281 = vmatpush1.bf16.msra.mxu0 0
      %2282 = vmatprep.subr.bf16.mxu0 0
      %2283 = vmatpush1.bf16.msra.mxu0 0
      %2284 = vmatprep.subr.bf16.mxu0 0
      %2285 = vmatpush1.bf16.msra.mxu0 0
      %2286 = vmatprep.subr.bf16.mxu0 0
      %2287 = vmatpush1.bf16.msra.mxu0 0
      %2288 = vmatprep.subr.bf16.mxu0 0
      %2289 = vmatpush1.bf16.msra.mxu0 0
      %2290 = vmatprep.subr.bf16.mxu0 0
      %2291 = vmatpush1.bf16.msra.mxu0 0
      %2292 = vmatprep.subr.bf16.mxu0 0
      %2293 = vmatpush1.bf16.msra.mxu0 0
      %2294 = vmatprep.subr.bf16.mxu0 0
      %2295 = vmatpush1.bf16.msra.mxu0 0
      %2296 = vmatprep.subr.bf16.mxu0 0
      %2297 = vmatpush1.bf16.msra.mxu0 0
      %2298 = vmatprep.subr.bf16.mxu0 0
      %2299 = vmatpush1.bf16.msra.mxu0 0
      %2300 = vmatprep.subr.bf16.mxu0 0
      %2301 = vmatpush1.bf16.msra.mxu0 0
      %2302 = vmatprep.subr.bf16.mxu0 0
      %2303 = vmatpush1.bf16.msra.mxu0 0
      %2304 = vmatprep.subr.bf16.mxu0 0
      %2305 = vmatpush1.bf16.msra.mxu0 0
      %2306 = vmatprep.subr.bf16.mxu0 0
      %2307 = vmatpush1.bf16.msra.mxu0 0
      %2308 = vmatprep.mubr.bf16.mxu0 0
      %2309 = vmatmul.mubr.bf16.gmra.mrb[0].mxu0 %v2265
      %v2310 = vpop.f32.mrb[0].mxu0
      %v2311 = vadd.f32 0.0, %v2310
      %v2312 = vpop.f32.mrb[0].mxu0
      %v2313 = vpop.f32.mrb[0].mxu0
      %v2314 = vadd.f32 0.0, %v2313
      %v2315 = vpop.f32.mrb[0].mxu0
      %2316 = vmatprep.mubr.bf16.mxu0 0
      %2317 = vmatmul.mubr.bf16.gmra.mrb[0].mxu0 %v2268
      %v2318 = vpop.f32.mrb[0].mxu0
      %v2319 = vadd.f32 0.0, %v2318
      %v2320 = vpop.f32.mrb[0].mxu0
      %v2321 = vpop.f32.mrb[0].mxu0
      %v2322 = vadd.f32 0.0, %v2321
      %v2323 = vpop.f32.mrb[0].mxu0
      %2324 = vmatprep.mubr.bf16.mxu0 0
      %2325 = vmatmul.mubr.bf16.gmra.mrb[0].mxu0 %v2271
      %v2326 = vpop.f32.mrb[0].mxu0
      %v2327 = vadd.f32 0.0, %v2326
      %v2328 = vpop.f32.mrb[0].mxu0
      %v2329 = vpop.f32.mrb[0].mxu0
      %v2330 = vadd.f32 0.0, %v2329
      %v2331 = vpop.f32.mrb[0].mxu0
      %2332 = vmatprep.mubr.bf16.mxu0 0
      %2333 = vmatmul.mubr.bf16.gmra.mrb[0].mxu0 %v2274
      %v2334 = vpop.f32.mrb[0].mxu0
      %v2335 = vadd.f32 0.0, %v2334
      %v2336 = vpop.f32.mrb[0].mxu0
      %v2337 = vpop.f32.mrb[0].mxu0
      %v2338 = vadd.f32 0.0, %v2337
      %v2339 = vpop.f32.mrb[0].mxu0
      %2340 = vdwg.mxu0
      %v2341 = vadd.f32 %v2121, %v2311
      %v2342 = vadd.f32 %v2122, %v2314
      %v2343 = vadd.f32 %v2123, %v2319
      %v2344 = vadd.f32 %v2124, %v2322
      %v2345 = vadd.f32 %v2125, %v2327
      %v2346 = vadd.f32 %v2126, %v2330
      %v2347 = vadd.f32 %v2127, %v2335
      %v2348 = vadd.f32 %v2128, %v2338
      %s2349 = scalar_lea.vmem %s2, 448
      %v2350 = vld [vmem:[%s2349] sm:$0xff]
      %v2351 = vld [vmem:[%s2349 + $0x8] sm:$0xff]
      %v2352 = vld [vmem:[%s2349 + $0x10] sm:$0xff]
      %v2353 = vld [vmem:[%s2349 + $0x18] sm:$0xff]
      %v2354 = vld [vmem:[%s2349 + $0x20] sm:$0xff]
      %v2355 = vld [vmem:[%s2349 + $0x28] sm:$0xff]
      %v2356 = vld [vmem:[%s2349 + $0x30] sm:$0xff]
      %v2357 = vld [vmem:[%s2349 + $0x38] sm:$0xff]
      %v2366 = vunpack.c.l.b16 %v2350
      %v2367 = vunpack.c.h.b16 %v2350
      %v2368 = vunpack.c.l.b16 %v2351
      %v2369 = vunpack.c.h.b16 %v2351
      %v2370 = vunpack.c.l.b16 %v2352
      %v2371 = vunpack.c.h.b16 %v2352
      %v2372 = vunpack.c.l.b16 %v2353
      %v2373 = vunpack.c.h.b16 %v2353
      %v2374 = vunpack.c.l.b16 %v2354
      %v2375 = vunpack.c.h.b16 %v2354
      %v2376 = vunpack.c.l.b16 %v2355
      %v2377 = vunpack.c.h.b16 %v2355
      %v2378 = vunpack.c.l.b16 %v2356
      %v2379 = vunpack.c.h.b16 %v2356
      %v2380 = vunpack.c.l.b16 %v2357
      %v2381 = vunpack.c.h.b16 %v2357
      %v2382 = vpack.c.b16 %v2368, %v2366
      %v2383 = vpack.c.b16 %v2369, %v2367
      %v2384 = vpack.c.b16 %v2372, %v2370
      %v2385 = vpack.c.b16 %v2373, %v2371
      %v2386 = vpack.c.b16 %v2376, %v2374
      %v2387 = vpack.c.b16 %v2377, %v2375
      %v2388 = vpack.c.b16 %v2380, %v2378
      %v2389 = vpack.c.b16 %v2381, %v2379
      %2398 = vmatprep.subr.bf16.mxu0 0
      %2399 = vmatpush1.bf16.msra.mxu0 %v810
      %2400 = vmatprep.subr.bf16.mxu0 0
      %2401 = vmatpush1.bf16.msra.mxu0 %v811
      %2402 = vmatprep.subr.bf16.mxu0 0
      %2403 = vmatpush1.bf16.msra.mxu0 %v812
      %2404 = vmatprep.subr.bf16.mxu0 0
      %2405 = vmatpush1.bf16.msra.mxu0 %v813
      %2406 = vmatprep.subr.bf16.mxu0 0
      %2407 = vmatpush1.bf16.msra.mxu0 %v814
      %2408 = vmatprep.subr.bf16.mxu0 0
      %2409 = vmatpush1.bf16.msra.mxu0 %v815
      %2410 = vmatprep.subr.bf16.mxu0 0
      %2411 = vmatpush1.bf16.msra.mxu0 %v816
      %2412 = vmatprep.subr.bf16.mxu0 0
      %2413 = vmatpush1.bf16.msra.mxu0 %v817
      %2414 = vmatprep.subr.bf16.mxu0 0
      %2415 = vmatpush1.bf16.msra.mxu0 %v818
      %2416 = vmatprep.subr.bf16.mxu0 0
      %2417 = vmatpush1.bf16.msra.mxu0 %v819
      %2418 = vmatprep.subr.bf16.mxu0 0
      %2419 = vmatpush1.bf16.msra.mxu0 %v820
      %2420 = vmatprep.subr.bf16.mxu0 0
      %2421 = vmatpush1.bf16.msra.mxu0 %v821
      %2422 = vmatprep.subr.bf16.mxu0 0
      %2423 = vmatpush1.bf16.msra.mxu0 %v822
      %2424 = vmatprep.subr.bf16.mxu0 0
      %2425 = vmatpush1.bf16.msra.mxu0 %v823
      %2426 = vmatprep.subr.bf16.mxu0 0
      %2427 = vmatpush1.bf16.msra.mxu0 %v824
      %2428 = vmatprep.subr.bf16.mxu0 0
      %2429 = vmatpush1.bf16.msra.mxu0 %v825
      %2430 = vmatprep.mubr.bf16.mxu0 %v2383
      %2431 = vmatmul.mubr.bf16.gmra.mrb[0].mxu0 %v2382
      %v2432 = vpop.f32.mrb[0].mxu0
      %v2433 = vadd.f32 0.0, %v2432
      %v2434 = vpop.f32.mrb[0].mxu0
      %v2435 = vpop.f32.mrb[0].mxu0
      %v2436 = vadd.f32 0.0, %v2435
      %v2437 = vpop.f32.mrb[0].mxu0
      %2438 = vmatprep.mubr.bf16.mxu0 %v2385
      %2439 = vmatmul.mubr.bf16.gmra.mrb[0].mxu0 %v2384
      %v2440 = vpop.f32.mrb[0].mxu0
      %v2441 = vadd.f32 0.0, %v2440
      %v2442 = vpop.f32.mrb[0].mxu0
      %v2443 = vpop.f32.mrb[0].mxu0
      %v2444 = vadd.f32 0.0, %v2443
      %v2445 = vpop.f32.mrb[0].mxu0
      %2446 = vmatprep.mubr.bf16.mxu0 %v2387
      %2447 = vmatmul.mubr.bf16.gmra.mrb[0].mxu0 %v2386
      %v2448 = vpop.f32.mrb[0].mxu0
      %v2449 = vadd.f32 0.0, %v2448
      %v2450 = vpop.f32.mrb[0].mxu0
      %v2451 = vpop.f32.mrb[0].mxu0
      %v2452 = vadd.f32 0.0, %v2451
      %v2453 = vpop.f32.mrb[0].mxu0
      %2454 = vmatprep.mubr.bf16.mxu0 %v2389
      %2455 = vmatmul.mubr.bf16.gmra.mrb[0].mxu0 %v2388
      %v2456 = vpop.f32.mrb[0].mxu0
      %v2457 = vadd.f32 0.0, %v2456
      %v2458 = vpop.f32.mrb[0].mxu0
      %v2459 = vpop.f32.mrb[0].mxu0
      %v2460 = vadd.f32 0.0, %v2459
      %v2461 = vpop.f32.mrb[0].mxu0
      %2462 = vdwg.mxu0
      %v2463 = vpack.c.bf16 %v2436, %v2433
      %v2464 = vpack.c.bf16 %v2444, %v2441
      %v2465 = vpack.c.bf16 %v2452, %v2449
      %v2466 = vpack.c.bf16 %v2460, %v2457
      %s2467 = scalar_lea.vmem %s3, 112
      %v2468 = vld [vmem:[%s2467] sm:$0xf]
      %v2469 = vld [vmem:[%s2467 + $0x4] sm:$0xf]
      %v2470 = vld [vmem:[%s2467 + $0x8] sm:$0xf]
      %v2471 = vld [vmem:[%s2467 + $0xc] sm:$0xf]
      %v2476 = vunpack.c.l.b16 %v2468
      %v2477 = vunpack.c.l.b16 %v2469
      %v2478 = vunpack.c.l.b16 %v2470
      %v2479 = vunpack.c.l.b16 %v2471
      %v2480 = vpack.c.b16 %v2477, %v2476
      %v2481 = vpack.c.b16 %v2479, %v2478
      %v2485 = vsel %vm1082, %v2463, 0
      %v2488 = vsel %vm1082, %v2464, 0
      %v2491 = vsel %vm1082, %v2465, 0
      %v2494 = vsel %vm1082, %v2466, 0
      %2496 = vmatprep.subr.bf16.mxu0 0
      %2497 = vmatpush1.bf16.msra.mxu0 %v2480
      %2498 = vmatprep.subr.bf16.mxu0 0
      %2499 = vmatpush1.bf16.msra.mxu0 %v2481
      %2500 = vmatprep.subr.bf16.mxu0 0
      %2501 = vmatpush1.bf16.msra.mxu0 0
      %2502 = vmatprep.subr.bf16.mxu0 0
      %2503 = vmatpush1.bf16.msra.mxu0 0
      %2504 = vmatprep.subr.bf16.mxu0 0
      %2505 = vmatpush1.bf16.msra.mxu0 0
      %2506 = vmatprep.subr.bf16.mxu0 0
      %2507 = vmatpush1.bf16.msra.mxu0 0
      %2508 = vmatprep.subr.bf16.mxu0 0
      %2509 = vmatpush1.bf16.msra.mxu0 0
      %2510 = vmatprep.subr.bf16.mxu0 0
      %2511 = vmatpush1.bf16.msra.mxu0 0
      %2512 = vmatprep.subr.bf16.mxu0 0
      %2513 = vmatpush1.bf16.msra.mxu0 0
      %2514 = vmatprep.subr.bf16.mxu0 0
      %2515 = vmatpush1.bf16.msra.mxu0 0
      %2516 = vmatprep.subr.bf16.mxu0 0
      %2517 = vmatpush1.bf16.msra.mxu0 0
      %2518 = vmatprep.subr.bf16.mxu0 0
      %2519 = vmatpush1.bf16.msra.mxu0 0
      %2520 = vmatprep.subr.bf16.mxu0 0
      %2521 = vmatpush1.bf16.msra.mxu0 0
      %2522 = vmatprep.subr.bf16.mxu0 0
      %2523 = vmatpush1.bf16.msra.mxu0 0
      %2524 = vmatprep.subr.bf16.mxu0 0
      %2525 = vmatpush1.bf16.msra.mxu0 0
      %2526 = vmatprep.subr.bf16.mxu0 0
      %2527 = vmatpush1.bf16.msra.mxu0 0
      %2528 = vmatprep.mubr.bf16.mxu0 0
      %2529 = vmatmul.mubr.bf16.gmra.mrb[0].mxu0 %v2485
      %v2530 = vpop.f32.mrb[0].mxu0
      %v2531 = vadd.f32 0.0, %v2530
      %v2532 = vpop.f32.mrb[0].mxu0
      %v2533 = vpop.f32.mrb[0].mxu0
      %v2534 = vadd.f32 0.0, %v2533
      %v2535 = vpop.f32.mrb[0].mxu0
      %2536 = vmatprep.mubr.bf16.mxu0 0
      %2537 = vmatmul.mubr.bf16.gmra.mrb[0].mxu0 %v2488
      %v2538 = vpop.f32.mrb[0].mxu0
      %v2539 = vadd.f32 0.0, %v2538
      %v2540 = vpop.f32.mrb[0].mxu0
      %v2541 = vpop.f32.mrb[0].mxu0
      %v2542 = vadd.f32 0.0, %v2541
      %v2543 = vpop.f32.mrb[0].mxu0
      %2544 = vmatprep.mubr.bf16.mxu0 0
      %2545 = vmatmul.mubr.bf16.gmra.mrb[0].mxu0 %v2491
      %v2546 = vpop.f32.mrb[0].mxu0
      %v2547 = vadd.f32 0.0, %v2546
      %v2548 = vpop.f32.mrb[0].mxu0
      %v2549 = vpop.f32.mrb[0].mxu0
      %v2550 = vadd.f32 0.0, %v2549
      %v2551 = vpop.f32.mrb[0].mxu0
      %2552 = vmatprep.mubr.bf16.mxu0 0
      %2553 = vmatmul.mubr.bf16.gmra.mrb[0].mxu0 %v2494
      %v2554 = vpop.f32.mrb[0].mxu0
      %v2555 = vadd.f32 0.0, %v2554
      %v2556 = vpop.f32.mrb[0].mxu0
      %v2557 = vpop.f32.mrb[0].mxu0
      %v2558 = vadd.f32 0.0, %v2557
      %v2559 = vpop.f32.mrb[0].mxu0
      %2560 = vdwg.mxu0
      %v2561 = vadd.f32 %v2341, %v2531
      %v2562 = vadd.f32 %v2342, %v2534
      %v2563 = vadd.f32 %v2343, %v2539
      %v2564 = vadd.f32 %v2344, %v2542
      %v2565 = vadd.f32 %v2345, %v2547
      %v2566 = vadd.f32 %v2346, %v2550
      %v2567 = vadd.f32 %v2347, %v2555
      %v2568 = vadd.f32 %v2348, %v2558
      %s2569 = scalar_lea.vmem %s2, 512
      %v2570 = vld [vmem:[%s2569] sm:$0xff]
      %v2571 = vld [vmem:[%s2569 + $0x8] sm:$0xff]
      %v2572 = vld [vmem:[%s2569 + $0x10] sm:$0xff]
      %v2573 = vld [vmem:[%s2569 + $0x18] sm:$0xff]
      %v2574 = vld [vmem:[%s2569 + $0x20] sm:$0xff]
      %v2575 = vld [vmem:[%s2569 + $0x28] sm:$0xff]
      %v2576 = vld [vmem:[%s2569 + $0x30] sm:$0xff]
      %v2577 = vld [vmem:[%s2569 + $0x38] sm:$0xff]
      %v2586 = vunpack.c.l.b16 %v2570
      %v2587 = vunpack.c.h.b16 %v2570
      %v2588 = vunpack.c.l.b16 %v2571
      %v2589 = vunpack.c.h.b16 %v2571
      %v2590 = vunpack.c.l.b16 %v2572
      %v2591 = vunpack.c.h.b16 %v2572
      %v2592 = vunpack.c.l.b16 %v2573
      %v2593 = vunpack.c.h.b16 %v2573
      %v2594 = vunpack.c.l.b16 %v2574
      %v2595 = vunpack.c.h.b16 %v2574
      %v2596 = vunpack.c.l.b16 %v2575
      %v2597 = vunpack.c.h.b16 %v2575
      %v2598 = vunpack.c.l.b16 %v2576
      %v2599 = vunpack.c.h.b16 %v2576
      %v2600 = vunpack.c.l.b16 %v2577
      %v2601 = vunpack.c.h.b16 %v2577
      %v2602 = vpack.c.b16 %v2588, %v2586
      %v2603 = vpack.c.b16 %v2589, %v2587
      %v2604 = vpack.c.b16 %v2592, %v2590
      %v2605 = vpack.c.b16 %v2593, %v2591
      %v2606 = vpack.c.b16 %v2596, %v2594
      %v2607 = vpack.c.b16 %v2597, %v2595
      %v2608 = vpack.c.b16 %v2600, %v2598
      %v2609 = vpack.c.b16 %v2601, %v2599
      %2618 = vmatprep.subr.bf16.mxu0 0
      %2619 = vmatpush1.bf16.msra.mxu0 %v810
      %2620 = vmatprep.subr.bf16.mxu0 0
      %2621 = vmatpush1.bf16.msra.mxu0 %v811
      %2622 = vmatprep.subr.bf16.mxu0 0
      %2623 = vmatpush1.bf16.msra.mxu0 %v812
      %2624 = vmatprep.subr.bf16.mxu0 0
      %2625 = vmatpush1.bf16.msra.mxu0 %v813
      %2626 = vmatprep.subr.bf16.mxu0 0
      %2627 = vmatpush1.bf16.msra.mxu0 %v814
      %2628 = vmatprep.subr.bf16.mxu0 0
      %2629 = vmatpush1.bf16.msra.mxu0 %v815
      %2630 = vmatprep.subr.bf16.mxu0 0
      %2631 = vmatpush1.bf16.msra.mxu0 %v816
      %2632 = vmatprep.subr.bf16.mxu0 0
      %2633 = vmatpush1.bf16.msra.mxu0 %v817
      %2634 = vmatprep.subr.bf16.mxu0 0
      %2635 = vmatpush1.bf16.msra.mxu0 %v818
      %2636 = vmatprep.subr.bf16.mxu0 0
      %2637 = vmatpush1.bf16.msra.mxu0 %v819
      %2638 = vmatprep.subr.bf16.mxu0 0
      %2639 = vmatpush1.bf16.msra.mxu0 %v820
      %2640 = vmatprep.subr.bf16.mxu0 0
      %2641 = vmatpush1.bf16.msra.mxu0 %v821
      %2642 = vmatprep.subr.bf16.mxu0 0
      %2643 = vmatpush1.bf16.msra.mxu0 %v822
      %2644 = vmatprep.subr.bf16.mxu0 0
      %2645 = vmatpush1.bf16.msra.mxu0 %v823
      %2646 = vmatprep.subr.bf16.mxu0 0
      %2647 = vmatpush1.bf16.msra.mxu0 %v824
      %2648 = vmatprep.subr.bf16.mxu0 0
      %2649 = vmatpush1.bf16.msra.mxu0 %v825
      %2650 = vmatprep.mubr.bf16.mxu0 %v2603
      %2651 = vmatmul.mubr.bf16.gmra.mrb[0].mxu0 %v2602
      %v2652 = vpop.f32.mrb[0].mxu0
      %v2653 = vadd.f32 0.0, %v2652
      %v2654 = vpop.f32.mrb[0].mxu0
      %v2655 = vpop.f32.mrb[0].mxu0
      %v2656 = vadd.f32 0.0, %v2655
      %v2657 = vpop.f32.mrb[0].mxu0
      %2658 = vmatprep.mubr.bf16.mxu0 %v2605
      %2659 = vmatmul.mubr.bf16.gmra.mrb[0].mxu0 %v2604
      %v2660 = vpop.f32.mrb[0].mxu0
      %v2661 = vadd.f32 0.0, %v2660
      %v2662 = vpop.f32.mrb[0].mxu0
      %v2663 = vpop.f32.mrb[0].mxu0
      %v2664 = vadd.f32 0.0, %v2663
      %v2665 = vpop.f32.mrb[0].mxu0
      %2666 = vmatprep.mubr.bf16.mxu0 %v2607
      %2667 = vmatmul.mubr.bf16.gmra.mrb[0].mxu0 %v2606
      %v2668 = vpop.f32.mrb[0].mxu0
      %v2669 = vadd.f32 0.0, %v2668
      %v2670 = vpop.f32.mrb[0].mxu0
      %v2671 = vpop.f32.mrb[0].mxu0
      %v2672 = vadd.f32 0.0, %v2671
      %v2673 = vpop.f32.mrb[0].mxu0
      %2674 = vmatprep.mubr.bf16.mxu0 %v2609
      %2675 = vmatmul.mubr.bf16.gmra.mrb[0].mxu0 %v2608
      %v2676 = vpop.f32.mrb[0].mxu0
      %v2677 = vadd.f32 0.0, %v2676
      %v2678 = vpop.f32.mrb[0].mxu0
      %v2679 = vpop.f32.mrb[0].mxu0
      %v2680 = vadd.f32 0.0, %v2679
      %v2681 = vpop.f32.mrb[0].mxu0
      %2682 = vdwg.mxu0
      %v2683 = vpack.c.bf16 %v2656, %v2653
      %v2684 = vpack.c.bf16 %v2664, %v2661
      %v2685 = vpack.c.bf16 %v2672, %v2669
      %v2686 = vpack.c.bf16 %v2680, %v2677
      %s2687 = scalar_lea.vmem %s3, 128
      %v2688 = vld [vmem:[%s2687] sm:$0xf]
      %v2689 = vld [vmem:[%s2687 + $0x4] sm:$0xf]
      %v2690 = vld [vmem:[%s2687 + $0x8] sm:$0xf]
      %v2691 = vld [vmem:[%s2687 + $0xc] sm:$0xf]
      %v2696 = vunpack.c.l.b16 %v2688
      %v2697 = vunpack.c.l.b16 %v2689
      %v2698 = vunpack.c.l.b16 %v2690
      %v2699 = vunpack.c.l.b16 %v2691
      %v2700 = vpack.c.b16 %v2697, %v2696
      %v2701 = vpack.c.b16 %v2699, %v2698
      %v2705 = vsel %vm1082, %v2683, 0
      %v2708 = vsel %vm1082, %v2684, 0
      %v2711 = vsel %vm1082, %v2685, 0
      %v2714 = vsel %vm1082, %v2686, 0
      %2716 = vmatprep.subr.bf16.mxu0 0
      %2717 = vmatpush1.bf16.msra.mxu0 %v2700
      %2718 = vmatprep.subr.bf16.mxu0 0
      %2719 = vmatpush1.bf16.msra.mxu0 %v2701
      %2720 = vmatprep.subr.bf16.mxu0 0
      %2721 = vmatpush1.bf16.msra.mxu0 0
      %2722 = vmatprep.subr.bf16.mxu0 0
      %2723 = vmatpush1.bf16.msra.mxu0 0
      %2724 = vmatprep.subr.bf16.mxu0 0
      %2725 = vmatpush1.bf16.msra.mxu0 0
      %2726 = vmatprep.subr.bf16.mxu0 0
      %2727 = vmatpush1.bf16.msra.mxu0 0
      %2728 = vmatprep.subr.bf16.mxu0 0
      %2729 = vmatpush1.bf16.msra.mxu0 0
      %2730 = vmatprep.subr.bf16.mxu0 0
      %2731 = vmatpush1.bf16.msra.mxu0 0
      %2732 = vmatprep.subr.bf16.mxu0 0
      %2733 = vmatpush1.bf16.msra.mxu0 0
      %2734 = vmatprep.subr.bf16.mxu0 0
      %2735 = vmatpush1.bf16.msra.mxu0 0
      %2736 = vmatprep.subr.bf16.mxu0 0
      %2737 = vmatpush1.bf16.msra.mxu0 0
      %2738 = vmatprep.subr.bf16.mxu0 0
      %2739 = vmatpush1.bf16.msra.mxu0 0
      %2740 = vmatprep.subr.bf16.mxu0 0
      %2741 = vmatpush1.bf16.msra.mxu0 0
      %2742 = vmatprep.subr.bf16.mxu0 0
      %2743 = vmatpush1.bf16.msra.mxu0 0
      %2744 = vmatprep.subr.bf16.mxu0 0
      %2745 = vmatpush1.bf16.msra.mxu0 0
      %2746 = vmatprep.subr.bf16.mxu0 0
      %2747 = vmatpush1.bf16.msra.mxu0 0
      %2748 = vmatprep.mubr.bf16.mxu0 0
      %2749 = vmatmul.mubr.bf16.gmra.mrb[0].mxu0 %v2705
      %v2750 = vpop.f32.mrb[0].mxu0
      %v2751 = vadd.f32 0.0, %v2750
      %v2752 = vpop.f32.mrb[0].mxu0
      %v2753 = vpop.f32.mrb[0].mxu0
      %v2754 = vadd.f32 0.0, %v2753
      %v2755 = vpop.f32.mrb[0].mxu0
      %2756 = vmatprep.mubr.bf16.mxu0 0
      %2757 = vmatmul.mubr.bf16.gmra.mrb[0].mxu0 %v2708
      %v2758 = vpop.f32.mrb[0].mxu0
      %v2759 = vadd.f32 0.0, %v2758
      %v2760 = vpop.f32.mrb[0].mxu0
      %v2761 = vpop.f32.mrb[0].mxu0
      %v2762 = vadd.f32 0.0, %v2761
      %v2763 = vpop.f32.mrb[0].mxu0
      %2764 = vmatprep.mubr.bf16.mxu0 0
      %2765 = vmatmul.mubr.bf16.gmra.mrb[0].mxu0 %v2711
      %v2766 = vpop.f32.mrb[0].mxu0
      %v2767 = vadd.f32 0.0, %v2766
      %v2768 = vpop.f32.mrb[0].mxu0
      %v2769 = vpop.f32.mrb[0].mxu0
      %v2770 = vadd.f32 0.0, %v2769
      %v2771 = vpop.f32.mrb[0].mxu0
      %2772 = vmatprep.mubr.bf16.mxu0 0
      %2773 = vmatmul.mubr.bf16.gmra.mrb[0].mxu0 %v2714
      %v2774 = vpop.f32.mrb[0].mxu0
      %v2775 = vadd.f32 0.0, %v2774
      %v2776 = vpop.f32.mrb[0].mxu0
      %v2777 = vpop.f32.mrb[0].mxu0
      %v2778 = vadd.f32 0.0, %v2777
      %v2779 = vpop.f32.mrb[0].mxu0
      %2780 = vdwg.mxu0
      %v2781 = vadd.f32 %v2561, %v2751
      %v2782 = vadd.f32 %v2562, %v2754
      %v2783 = vadd.f32 %v2563, %v2759
      %v2784 = vadd.f32 %v2564, %v2762
      %v2785 = vadd.f32 %v2565, %v2767
      %v2786 = vadd.f32 %v2566, %v2770
      %v2787 = vadd.f32 %v2567, %v2775
      %v2788 = vadd.f32 %v2568, %v2778
      %s2789 = scalar_lea.vmem %s2, 576
      %v2790 = vld [vmem:[%s2789] sm:$0xff]
      %v2791 = vld [vmem:[%s2789 + $0x8] sm:$0xff]
      %v2792 = vld [vmem:[%s2789 + $0x10] sm:$0xff]
      %v2793 = vld [vmem:[%s2789 + $0x18] sm:$0xff]
      %v2794 = vld [vmem:[%s2789 + $0x20] sm:$0xff]
      %v2795 = vld [vmem:[%s2789 + $0x28] sm:$0xff]
      %v2796 = vld [vmem:[%s2789 + $0x30] sm:$0xff]
      %v2797 = vld [vmem:[%s2789 + $0x38] sm:$0xff]
      %v2806 = vunpack.c.l.b16 %v2790
      %v2807 = vunpack.c.h.b16 %v2790
      %v2808 = vunpack.c.l.b16 %v2791
      %v2809 = vunpack.c.h.b16 %v2791
      %v2810 = vunpack.c.l.b16 %v2792
      %v2811 = vunpack.c.h.b16 %v2792
      %v2812 = vunpack.c.l.b16 %v2793
      %v2813 = vunpack.c.h.b16 %v2793
      %v2814 = vunpack.c.l.b16 %v2794
      %v2815 = vunpack.c.h.b16 %v2794
      %v2816 = vunpack.c.l.b16 %v2795
      %v2817 = vunpack.c.h.b16 %v2795
      %v2818 = vunpack.c.l.b16 %v2796
      %v2819 = vunpack.c.h.b16 %v2796
      %v2820 = vunpack.c.l.b16 %v2797
      %v2821 = vunpack.c.h.b16 %v2797
      %v2822 = vpack.c.b16 %v2808, %v2806
      %v2823 = vpack.c.b16 %v2809, %v2807
      %v2824 = vpack.c.b16 %v2812, %v2810
      %v2825 = vpack.c.b16 %v2813, %v2811
      %v2826 = vpack.c.b16 %v2816, %v2814
      %v2827 = vpack.c.b16 %v2817, %v2815
      %v2828 = vpack.c.b16 %v2820, %v2818
      %v2829 = vpack.c.b16 %v2821, %v2819
      %2838 = vmatprep.subr.bf16.mxu0 0
      %2839 = vmatpush1.bf16.msra.mxu0 %v810
      %2840 = vmatprep.subr.bf16.mxu0 0
      %2841 = vmatpush1.bf16.msra.mxu0 %v811
      %2842 = vmatprep.subr.bf16.mxu0 0
      %2843 = vmatpush1.bf16.msra.mxu0 %v812
      %2844 = vmatprep.subr.bf16.mxu0 0
      %2845 = vmatpush1.bf16.msra.mxu0 %v813
      %2846 = vmatprep.subr.bf16.mxu0 0
      %2847 = vmatpush1.bf16.msra.mxu0 %v814
      %2848 = vmatprep.subr.bf16.mxu0 0
      %2849 = vmatpush1.bf16.msra.mxu0 %v815
      %2850 = vmatprep.subr.bf16.mxu0 0
      %2851 = vmatpush1.bf16.msra.mxu0 %v816
      %2852 = vmatprep.subr.bf16.mxu0 0
      %2853 = vmatpush1.bf16.msra.mxu0 %v817
      %2854 = vmatprep.subr.bf16.mxu0 0
      %2855 = vmatpush1.bf16.msra.mxu0 %v818
      %2856 = vmatprep.subr.bf16.mxu0 0
      %2857 = vmatpush1.bf16.msra.mxu0 %v819
      %2858 = vmatprep.subr.bf16.mxu0 0
      %2859 = vmatpush1.bf16.msra.mxu0 %v820
      %2860 = vmatprep.subr.bf16.mxu0 0
      %2861 = vmatpush1.bf16.msra.mxu0 %v821
      %2862 = vmatprep.subr.bf16.mxu0 0
      %2863 = vmatpush1.bf16.msra.mxu0 %v822
      %2864 = vmatprep.subr.bf16.mxu0 0
      %2865 = vmatpush1.bf16.msra.mxu0 %v823
      %2866 = vmatprep.subr.bf16.mxu0 0
      %2867 = vmatpush1.bf16.msra.mxu0 %v824
      %2868 = vmatprep.subr.bf16.mxu0 0
      %2869 = vmatpush1.bf16.msra.mxu0 %v825
      %2870 = vmatprep.mubr.bf16.mxu0 %v2823
      %2871 = vmatmul.mubr.bf16.gmra.mrb[0].mxu0 %v2822
      %v2872 = vpop.f32.mrb[0].mxu0
      %v2873 = vadd.f32 0.0, %v2872
      %v2874 = vpop.f32.mrb[0].mxu0
      %v2875 = vpop.f32.mrb[0].mxu0
      %v2876 = vadd.f32 0.0, %v2875
      %v2877 = vpop.f32.mrb[0].mxu0
      %2878 = vmatprep.mubr.bf16.mxu0 %v2825
      %2879 = vmatmul.mubr.bf16.gmra.mrb[0].mxu0 %v2824
      %v2880 = vpop.f32.mrb[0].mxu0
      %v2881 = vadd.f32 0.0, %v2880
      %v2882 = vpop.f32.mrb[0].mxu0
      %v2883 = vpop.f32.mrb[0].mxu0
      %v2884 = vadd.f32 0.0, %v2883
      %v2885 = vpop.f32.mrb[0].mxu0
      %2886 = vmatprep.mubr.bf16.mxu0 %v2827
      %2887 = vmatmul.mubr.bf16.gmra.mrb[0].mxu0 %v2826
      %v2888 = vpop.f32.mrb[0].mxu0
      %v2889 = vadd.f32 0.0, %v2888
      %v2890 = vpop.f32.mrb[0].mxu0
      %v2891 = vpop.f32.mrb[0].mxu0
      %v2892 = vadd.f32 0.0, %v2891
      %v2893 = vpop.f32.mrb[0].mxu0
      %2894 = vmatprep.mubr.bf16.mxu0 %v2829
      %2895 = vmatmul.mubr.bf16.gmra.mrb[0].mxu0 %v2828
      %v2896 = vpop.f32.mrb[0].mxu0
      %v2897 = vadd.f32 0.0, %v2896
      %v2898 = vpop.f32.mrb[0].mxu0
      %v2899 = vpop.f32.mrb[0].mxu0
      %v2900 = vadd.f32 0.0, %v2899
      %v2901 = vpop.f32.mrb[0].mxu0
      %2902 = vdwg.mxu0
      %v2903 = vpack.c.bf16 %v2876, %v2873
      %v2904 = vpack.c.bf16 %v2884, %v2881
      %v2905 = vpack.c.bf16 %v2892, %v2889
      %v2906 = vpack.c.bf16 %v2900, %v2897
      %s2907 = scalar_lea.vmem %s3, 144
      %v2908 = vld [vmem:[%s2907] sm:$0xf]
      %v2909 = vld [vmem:[%s2907 + $0x4] sm:$0xf]
      %v2910 = vld [vmem:[%s2907 + $0x8] sm:$0xf]
      %v2911 = vld [vmem:[%s2907 + $0xc] sm:$0xf]
      %v2916 = vunpack.c.l.b16 %v2908
      %v2917 = vunpack.c.l.b16 %v2909
      %v2918 = vunpack.c.l.b16 %v2910
      %v2919 = vunpack.c.l.b16 %v2911
      %v2920 = vpack.c.b16 %v2917, %v2916
      %v2921 = vpack.c.b16 %v2919, %v2918
      %v2925 = vsel %vm1082, %v2903, 0
      %v2928 = vsel %vm1082, %v2904, 0
      %v2931 = vsel %vm1082, %v2905, 0
      %v2934 = vsel %vm1082, %v2906, 0
      %2936 = vmatprep.subr.bf16.mxu0 0
      %2937 = vmatpush1.bf16.msra.mxu0 %v2920
      %2938 = vmatprep.subr.bf16.mxu0 0
      %2939 = vmatpush1.bf16.msra.mxu0 %v2921
      %2940 = vmatprep.subr.bf16.mxu0 0
      %2941 = vmatpush1.bf16.msra.mxu0 0
      %2942 = vmatprep.subr.bf16.mxu0 0
      %2943 = vmatpush1.bf16.msra.mxu0 0
      %2944 = vmatprep.subr.bf16.mxu0 0
      %2945 = vmatpush1.bf16.msra.mxu0 0
      %2946 = vmatprep.subr.bf16.mxu0 0
      %2947 = vmatpush1.bf16.msra.mxu0 0
      %2948 = vmatprep.subr.bf16.mxu0 0
      %2949 = vmatpush1.bf16.msra.mxu0 0
      %2950 = vmatprep.subr.bf16.mxu0 0
      %2951 = vmatpush1.bf16.msra.mxu0 0
      %2952 = vmatprep.subr.bf16.mxu0 0
      %2953 = vmatpush1.bf16.msra.mxu0 0
      %2954 = vmatprep.subr.bf16.mxu0 0
      %2955 = vmatpush1.bf16.msra.mxu0 0
      %2956 = vmatprep.subr.bf16.mxu0 0
      %2957 = vmatpush1.bf16.msra.mxu0 0
      %2958 = vmatprep.subr.bf16.mxu0 0
      %2959 = vmatpush1.bf16.msra.mxu0 0
      %2960 = vmatprep.subr.bf16.mxu0 0
      %2961 = vmatpush1.bf16.msra.mxu0 0
      %2962 = vmatprep.subr.bf16.mxu0 0
      %2963 = vmatpush1.bf16.msra.mxu0 0
      %2964 = vmatprep.subr.bf16.mxu0 0
      %2965 = vmatpush1.bf16.msra.mxu0 0
      %2966 = vmatprep.subr.bf16.mxu0 0
      %2967 = vmatpush1.bf16.msra.mxu0 0
      %2968 = vmatprep.mubr.bf16.mxu0 0
      %2969 = vmatmul.mubr.bf16.gmra.mrb[0].mxu0 %v2925
      %v2970 = vpop.f32.mrb[0].mxu0
      %v2971 = vadd.f32 0.0, %v2970
      %v2972 = vpop.f32.mrb[0].mxu0
      %v2973 = vpop.f32.mrb[0].mxu0
      %v2974 = vadd.f32 0.0, %v2973
      %v2975 = vpop.f32.mrb[0].mxu0
      %2976 = vmatprep.mubr.bf16.mxu0 0
      %2977 = vmatmul.mubr.bf16.gmra.mrb[0].mxu0 %v2928
      %v2978 = vpop.f32.mrb[0].mxu0
      %v2979 = vadd.f32 0.0, %v2978
      %v2980 = vpop.f32.mrb[0].mxu0
      %v2981 = vpop.f32.mrb[0].mxu0
      %v2982 = vadd.f32 0.0, %v2981
      %v2983 = vpop.f32.mrb[0].mxu0
      %2984 = vmatprep.mubr.bf16.mxu0 0
      %2985 = vmatmul.mubr.bf16.gmra.mrb[0].mxu0 %v2931
      %v2986 = vpop.f32.mrb[0].mxu0
      %v2987 = vadd.f32 0.0, %v2986
      %v2988 = vpop.f32.mrb[0].mxu0
      %v2989 = vpop.f32.mrb[0].mxu0
      %v2990 = vadd.f32 0.0, %v2989
      %v2991 = vpop.f32.mrb[0].mxu0
      %2992 = vmatprep.mubr.bf16.mxu0 0
      %2993 = vmatmul.mubr.bf16.gmra.mrb[0].mxu0 %v2934
      %v2994 = vpop.f32.mrb[0].mxu0
      %v2995 = vadd.f32 0.0, %v2994
      %v2996 = vpop.f32.mrb[0].mxu0
      %v2997 = vpop.f32.mrb[0].mxu0
      %v2998 = vadd.f32 0.0, %v2997
      %v2999 = vpop.f32.mrb[0].mxu0
      %3000 = vdwg.mxu0
      %v3001 = vadd.f32 %v2781, %v2971
      %v3002 = vadd.f32 %v2782, %v2974
      %v3003 = vadd.f32 %v2783, %v2979
      %v3004 = vadd.f32 %v2784, %v2982
      %v3005 = vadd.f32 %v2785, %v2987
      %v3006 = vadd.f32 %v2786, %v2990
      %v3007 = vadd.f32 %v2787, %v2995
      %v3008 = vadd.f32 %v2788, %v2998
      %s3009 = scalar_lea.vmem %s2, 640
      %v3010 = vld [vmem:[%s3009] sm:$0xff]
      %v3011 = vld [vmem:[%s3009 + $0x8] sm:$0xff]
      %v3012 = vld [vmem:[%s3009 + $0x10] sm:$0xff]
      %v3013 = vld [vmem:[%s3009 + $0x18] sm:$0xff]
      %v3014 = vld [vmem:[%s3009 + $0x20] sm:$0xff]
      %v3015 = vld [vmem:[%s3009 + $0x28] sm:$0xff]
      %v3016 = vld [vmem:[%s3009 + $0x30] sm:$0xff]
      %v3017 = vld [vmem:[%s3009 + $0x38] sm:$0xff]
      %v3026 = vunpack.c.l.b16 %v3010
      %v3027 = vunpack.c.h.b16 %v3010
      %v3028 = vunpack.c.l.b16 %v3011
      %v3029 = vunpack.c.h.b16 %v3011
      %v3030 = vunpack.c.l.b16 %v3012
      %v3031 = vunpack.c.h.b16 %v3012
      %v3032 = vunpack.c.l.b16 %v3013
      %v3033 = vunpack.c.h.b16 %v3013
      %v3034 = vunpack.c.l.b16 %v3014
      %v3035 = vunpack.c.h.b16 %v3014
      %v3036 = vunpack.c.l.b16 %v3015
      %v3037 = vunpack.c.h.b16 %v3015
      %v3038 = vunpack.c.l.b16 %v3016
      %v3039 = vunpack.c.h.b16 %v3016
      %v3040 = vunpack.c.l.b16 %v3017
      %v3041 = vunpack.c.h.b16 %v3017
      %v3042 = vpack.c.b16 %v3028, %v3026
      %v3043 = vpack.c.b16 %v3029, %v3027
      %v3044 = vpack.c.b16 %v3032, %v3030
      %v3045 = vpack.c.b16 %v3033, %v3031
      %v3046 = vpack.c.b16 %v3036, %v3034
      %v3047 = vpack.c.b16 %v3037, %v3035
      %v3048 = vpack.c.b16 %v3040, %v3038
      %v3049 = vpack.c.b16 %v3041, %v3039
      %3058 = vmatprep.subr.bf16.mxu0 0
      %3059 = vmatpush1.bf16.msra.mxu0 %v810
      %3060 = vmatprep.subr.bf16.mxu0 0
      %3061 = vmatpush1.bf16.msra.mxu0 %v811
      %3062 = vmatprep.subr.bf16.mxu0 0
      %3063 = vmatpush1.bf16.msra.mxu0 %v812
      %3064 = vmatprep.subr.bf16.mxu0 0
      %3065 = vmatpush1.bf16.msra.mxu0 %v813
      %3066 = vmatprep.subr.bf16.mxu0 0
      %3067 = vmatpush1.bf16.msra.mxu0 %v814
      %3068 = vmatprep.subr.bf16.mxu0 0
      %3069 = vmatpush1.bf16.msra.mxu0 %v815
      %3070 = vmatprep.subr.bf16.mxu0 0
      %3071 = vmatpush1.bf16.msra.mxu0 %v816
      %3072 = vmatprep.subr.bf16.mxu0 0
      %3073 = vmatpush1.bf16.msra.mxu0 %v817
      %3074 = vmatprep.subr.bf16.mxu0 0
      %3075 = vmatpush1.bf16.msra.mxu0 %v818
      %3076 = vmatprep.subr.bf16.mxu0 0
      %3077 = vmatpush1.bf16.msra.mxu0 %v819
      %3078 = vmatprep.subr.bf16.mxu0 0
      %3079 = vmatpush1.bf16.msra.mxu0 %v820
      %3080 = vmatprep.subr.bf16.mxu0 0
      %3081 = vmatpush1.bf16.msra.mxu0 %v821
      %3082 = vmatprep.subr.bf16.mxu0 0
      %3083 = vmatpush1.bf16.msra.mxu0 %v822
      %3084 = vmatprep.subr.bf16.mxu0 0
      %3085 = vmatpush1.bf16.msra.mxu0 %v823
      %3086 = vmatprep.subr.bf16.mxu0 0
      %3087 = vmatpush1.bf16.msra.mxu0 %v824
      %3088 = vmatprep.subr.bf16.mxu0 0
      %3089 = vmatpush1.bf16.msra.mxu0 %v825
      %3090 = vmatprep.mubr.bf16.mxu0 %v3043
      %3091 = vmatmul.mubr.bf16.gmra.mrb[0].mxu0 %v3042
      %v3092 = vpop.f32.mrb[0].mxu0
      %v3093 = vadd.f32 0.0, %v3092
      %v3094 = vpop.f32.mrb[0].mxu0
      %v3095 = vpop.f32.mrb[0].mxu0
      %v3096 = vadd.f32 0.0, %v3095
      %v3097 = vpop.f32.mrb[0].mxu0
      %3098 = vmatprep.mubr.bf16.mxu0 %v3045
      %3099 = vmatmul.mubr.bf16.gmra.mrb[0].mxu0 %v3044
      %v3100 = vpop.f32.mrb[0].mxu0
      %v3101 = vadd.f32 0.0, %v3100
      %v3102 = vpop.f32.mrb[0].mxu0
      %v3103 = vpop.f32.mrb[0].mxu0
      %v3104 = vadd.f32 0.0, %v3103
      %v3105 = vpop.f32.mrb[0].mxu0
      %3106 = vmatprep.mubr.bf16.mxu0 %v3047
      %3107 = vmatmul.mubr.bf16.gmra.mrb[0].mxu0 %v3046
      %v3108 = vpop.f32.mrb[0].mxu0
      %v3109 = vadd.f32 0.0, %v3108
      %v3110 = vpop.f32.mrb[0].mxu0
      %v3111 = vpop.f32.mrb[0].mxu0
      %v3112 = vadd.f32 0.0, %v3111
      %v3113 = vpop.f32.mrb[0].mxu0
      %3114 = vmatprep.mubr.bf16.mxu0 %v3049
      %3115 = vmatmul.mubr.bf16.gmra.mrb[0].mxu0 %v3048
      %v3116 = vpop.f32.mrb[0].mxu0
      %v3117 = vadd.f32 0.0, %v3116
      %v3118 = vpop.f32.mrb[0].mxu0
      %v3119 = vpop.f32.mrb[0].mxu0
      %v3120 = vadd.f32 0.0, %v3119
      %v3121 = vpop.f32.mrb[0].mxu0
      %3122 = vdwg.mxu0
      %v3123 = vpack.c.bf16 %v3096, %v3093
      %v3124 = vpack.c.bf16 %v3104, %v3101
      %v3125 = vpack.c.bf16 %v3112, %v3109
      %v3126 = vpack.c.bf16 %v3120, %v3117
      %s3127 = scalar_lea.vmem %s3, 160
      %v3128 = vld [vmem:[%s3127] sm:$0xf]
      %v3129 = vld [vmem:[%s3127 + $0x4] sm:$0xf]
      %v3130 = vld [vmem:[%s3127 + $0x8] sm:$0xf]
      %v3131 = vld [vmem:[%s3127 + $0xc] sm:$0xf]
      %v3136 = vunpack.c.l.b16 %v3128
      %v3137 = vunpack.c.l.b16 %v3129
      %v3138 = vunpack.c.l.b16 %v3130
      %v3139 = vunpack.c.l.b16 %v3131
      %v3140 = vpack.c.b16 %v3137, %v3136
      %v3141 = vpack.c.b16 %v3139, %v3138
      %v3145 = vsel %vm1082, %v3123, 0
      %v3148 = vsel %vm1082, %v3124, 0
      %v3151 = vsel %vm1082, %v3125, 0
      %v3154 = vsel %vm1082, %v3126, 0
      %3156 = vmatprep.subr.bf16.mxu0 0
      %3157 = vmatpush1.bf16.msra.mxu0 %v3140
      %3158 = vmatprep.subr.bf16.mxu0 0
      %3159 = vmatpush1.bf16.msra.mxu0 %v3141
      %3160 = vmatprep.subr.bf16.mxu0 0
      %3161 = vmatpush1.bf16.msra.mxu0 0
      %3162 = vmatprep.subr.bf16.mxu0 0
      %3163 = vmatpush1.bf16.msra.mxu0 0
      %3164 = vmatprep.subr.bf16.mxu0 0
      %3165 = vmatpush1.bf16.msra.mxu0 0
      %3166 = vmatprep.subr.bf16.mxu0 0
      %3167 = vmatpush1.bf16.msra.mxu0 0
      %3168 = vmatprep.subr.bf16.mxu0 0
      %3169 = vmatpush1.bf16.msra.mxu0 0
      %3170 = vmatprep.subr.bf16.mxu0 0
      %3171 = vmatpush1.bf16.msra.mxu0 0
      %3172 = vmatprep.subr.bf16.mxu0 0
      %3173 = vmatpush1.bf16.msra.mxu0 0
      %3174 = vmatprep.subr.bf16.mxu0 0
      %3175 = vmatpush1.bf16.msra.mxu0 0
      %3176 = vmatprep.subr.bf16.mxu0 0
      %3177 = vmatpush1.bf16.msra.mxu0 0
      %3178 = vmatprep.subr.bf16.mxu0 0
      %3179 = vmatpush1.bf16.msra.mxu0 0
      %3180 = vmatprep.subr.bf16.mxu0 0
      %3181 = vmatpush1.bf16.msra.mxu0 0
      %3182 = vmatprep.subr.bf16.mxu0 0
      %3183 = vmatpush1.bf16.msra.mxu0 0
      %3184 = vmatprep.subr.bf16.mxu0 0
      %3185 = vmatpush1.bf16.msra.mxu0 0
      %3186 = vmatprep.subr.bf16.mxu0 0
      %3187 = vmatpush1.bf16.msra.mxu0 0
      %3188 = vmatprep.mubr.bf16.mxu0 0
      %3189 = vmatmul.mubr.bf16.gmra.mrb[0].mxu0 %v3145
      %v3190 = vpop.f32.mrb[0].mxu0
      %v3191 = vadd.f32 0.0, %v3190
      %v3192 = vpop.f32.mrb[0].mxu0
      %v3193 = vpop.f32.mrb[0].mxu0
      %v3194 = vadd.f32 0.0, %v3193
      %v3195 = vpop.f32.mrb[0].mxu0
      %3196 = vmatprep.mubr.bf16.mxu0 0
      %3197 = vmatmul.mubr.bf16.gmra.mrb[0].mxu0 %v3148
      %v3198 = vpop.f32.mrb[0].mxu0
      %v3199 = vadd.f32 0.0, %v3198
      %v3200 = vpop.f32.mrb[0].mxu0
      %v3201 = vpop.f32.mrb[0].mxu0
      %v3202 = vadd.f32 0.0, %v3201
      %v3203 = vpop.f32.mrb[0].mxu0
      %3204 = vmatprep.mubr.bf16.mxu0 0
      %3205 = vmatmul.mubr.bf16.gmra.mrb[0].mxu0 %v3151
      %v3206 = vpop.f32.mrb[0].mxu0
      %v3207 = vadd.f32 0.0, %v3206
      %v3208 = vpop.f32.mrb[0].mxu0
      %v3209 = vpop.f32.mrb[0].mxu0
      %v3210 = vadd.f32 0.0, %v3209
      %v3211 = vpop.f32.mrb[0].mxu0
      %3212 = vmatprep.mubr.bf16.mxu0 0
      %3213 = vmatmul.mubr.bf16.gmra.mrb[0].mxu0 %v3154
      %v3214 = vpop.f32.mrb[0].mxu0
      %v3215 = vadd.f32 0.0, %v3214
      %v3216 = vpop.f32.mrb[0].mxu0
      %v3217 = vpop.f32.mrb[0].mxu0
      %v3218 = vadd.f32 0.0, %v3217
      %v3219 = vpop.f32.mrb[0].mxu0
      %3220 = vdwg.mxu0
      %v3221 = vadd.f32 %v3001, %v3191
      %v3222 = vadd.f32 %v3002, %v3194
      %v3223 = vadd.f32 %v3003, %v3199
      %v3224 = vadd.f32 %v3004, %v3202
      %v3225 = vadd.f32 %v3005, %v3207
      %v3226 = vadd.f32 %v3006, %v3210
      %v3227 = vadd.f32 %v3007, %v3215
      %v3228 = vadd.f32 %v3008, %v3218
      %s3229 = scalar_lea.vmem %s2, 704
      %v3230 = vld [vmem:[%s3229] sm:$0xff]
      %v3231 = vld [vmem:[%s3229 + $0x8] sm:$0xff]
      %v3232 = vld [vmem:[%s3229 + $0x10] sm:$0xff]
      %v3233 = vld [vmem:[%s3229 + $0x18] sm:$0xff]
      %v3234 = vld [vmem:[%s3229 + $0x20] sm:$0xff]
      %v3235 = vld [vmem:[%s3229 + $0x28] sm:$0xff]
      %v3236 = vld [vmem:[%s3229 + $0x30] sm:$0xff]
      %v3237 = vld [vmem:[%s3229 + $0x38] sm:$0xff]
      %v3246 = vunpack.c.l.b16 %v3230
      %v3247 = vunpack.c.h.b16 %v3230
      %v3248 = vunpack.c.l.b16 %v3231
      %v3249 = vunpack.c.h.b16 %v3231
      %v3250 = vunpack.c.l.b16 %v3232
      %v3251 = vunpack.c.h.b16 %v3232
      %v3252 = vunpack.c.l.b16 %v3233
      %v3253 = vunpack.c.h.b16 %v3233
      %v3254 = vunpack.c.l.b16 %v3234
      %v3255 = vunpack.c.h.b16 %v3234
      %v3256 = vunpack.c.l.b16 %v3235
      %v3257 = vunpack.c.h.b16 %v3235
      %v3258 = vunpack.c.l.b16 %v3236
      %v3259 = vunpack.c.h.b16 %v3236
      %v3260 = vunpack.c.l.b16 %v3237
      %v3261 = vunpack.c.h.b16 %v3237
      %v3262 = vpack.c.b16 %v3248, %v3246
      %v3263 = vpack.c.b16 %v3249, %v3247
      %v3264 = vpack.c.b16 %v3252, %v3250
      %v3265 = vpack.c.b16 %v3253, %v3251
      %v3266 = vpack.c.b16 %v3256, %v3254
      %v3267 = vpack.c.b16 %v3257, %v3255
      %v3268 = vpack.c.b16 %v3260, %v3258
      %v3269 = vpack.c.b16 %v3261, %v3259
      %3278 = vmatprep.subr.bf16.mxu0 0
      %3279 = vmatpush1.bf16.msra.mxu0 %v810
      %3280 = vmatprep.subr.bf16.mxu0 0
      %3281 = vmatpush1.bf16.msra.mxu0 %v811
      %3282 = vmatprep.subr.bf16.mxu0 0
      %3283 = vmatpush1.bf16.msra.mxu0 %v812
      %3284 = vmatprep.subr.bf16.mxu0 0
      %3285 = vmatpush1.bf16.msra.mxu0 %v813
      %3286 = vmatprep.subr.bf16.mxu0 0
      %3287 = vmatpush1.bf16.msra.mxu0 %v814
      %3288 = vmatprep.subr.bf16.mxu0 0
      %3289 = vmatpush1.bf16.msra.mxu0 %v815
      %3290 = vmatprep.subr.bf16.mxu0 0
      %3291 = vmatpush1.bf16.msra.mxu0 %v816
      %3292 = vmatprep.subr.bf16.mxu0 0
      %3293 = vmatpush1.bf16.msra.mxu0 %v817
      %3294 = vmatprep.subr.bf16.mxu0 0
      %3295 = vmatpush1.bf16.msra.mxu0 %v818
      %3296 = vmatprep.subr.bf16.mxu0 0
      %3297 = vmatpush1.bf16.msra.mxu0 %v819
      %3298 = vmatprep.subr.bf16.mxu0 0
      %3299 = vmatpush1.bf16.msra.mxu0 %v820
      %3300 = vmatprep.subr.bf16.mxu0 0
      %3301 = vmatpush1.bf16.msra.mxu0 %v821
      %3302 = vmatprep.subr.bf16.mxu0 0
      %3303 = vmatpush1.bf16.msra.mxu0 %v822
      %3304 = vmatprep.subr.bf16.mxu0 0
      %3305 = vmatpush1.bf16.msra.mxu0 %v823
      %3306 = vmatprep.subr.bf16.mxu0 0
      %3307 = vmatpush1.bf16.msra.mxu0 %v824
      %3308 = vmatprep.subr.bf16.mxu0 0
      %3309 = vmatpush1.bf16.msra.mxu0 %v825
      %3310 = vmatprep.mubr.bf16.mxu0 %v3263
      %3311 = vmatmul.mubr.bf16.gmra.mrb[0].mxu0 %v3262
      %v3312 = vpop.f32.mrb[0].mxu0
      %v3313 = vadd.f32 0.0, %v3312
      %v3314 = vpop.f32.mrb[0].mxu0
      %v3315 = vpop.f32.mrb[0].mxu0
      %v3316 = vadd.f32 0.0, %v3315
      %v3317 = vpop.f32.mrb[0].mxu0
      %3318 = vmatprep.mubr.bf16.mxu0 %v3265
      %3319 = vmatmul.mubr.bf16.gmra.mrb[0].mxu0 %v3264
      %v3320 = vpop.f32.mrb[0].mxu0
      %v3321 = vadd.f32 0.0, %v3320
      %v3322 = vpop.f32.mrb[0].mxu0
      %v3323 = vpop.f32.mrb[0].mxu0
      %v3324 = vadd.f32 0.0, %v3323
      %v3325 = vpop.f32.mrb[0].mxu0
      %3326 = vmatprep.mubr.bf16.mxu0 %v3267
      %3327 = vmatmul.mubr.bf16.gmra.mrb[0].mxu0 %v3266
      %v3328 = vpop.f32.mrb[0].mxu0
      %v3329 = vadd.f32 0.0, %v3328
      %v3330 = vpop.f32.mrb[0].mxu0
      %v3331 = vpop.f32.mrb[0].mxu0
      %v3332 = vadd.f32 0.0, %v3331
      %v3333 = vpop.f32.mrb[0].mxu0
      %3334 = vmatprep.mubr.bf16.mxu0 %v3269
      %3335 = vmatmul.mubr.bf16.gmra.mrb[0].mxu0 %v3268
      %v3336 = vpop.f32.mrb[0].mxu0
      %v3337 = vadd.f32 0.0, %v3336
      %v3338 = vpop.f32.mrb[0].mxu0
      %v3339 = vpop.f32.mrb[0].mxu0
      %v3340 = vadd.f32 0.0, %v3339
      %v3341 = vpop.f32.mrb[0].mxu0
      %3342 = vdwg.mxu0
      %v3343 = vpack.c.bf16 %v3316, %v3313
      %v3344 = vpack.c.bf16 %v3324, %v3321
      %v3345 = vpack.c.bf16 %v3332, %v3329
      %v3346 = vpack.c.bf16 %v3340, %v3337
      %s3347 = scalar_lea.vmem %s3, 176
      %v3348 = vld [vmem:[%s3347] sm:$0xf]
      %v3349 = vld [vmem:[%s3347 + $0x4] sm:$0xf]
      %v3350 = vld [vmem:[%s3347 + $0x8] sm:$0xf]
      %v3351 = vld [vmem:[%s3347 + $0xc] sm:$0xf]
      %v3356 = vunpack.c.l.b16 %v3348
      %v3357 = vunpack.c.l.b16 %v3349
      %v3358 = vunpack.c.l.b16 %v3350
      %v3359 = vunpack.c.l.b16 %v3351
      %v3360 = vpack.c.b16 %v3357, %v3356
      %v3361 = vpack.c.b16 %v3359, %v3358
      %v3365 = vsel %vm1082, %v3343, 0
      %v3368 = vsel %vm1082, %v3344, 0
      %v3371 = vsel %vm1082, %v3345, 0
      %v3374 = vsel %vm1082, %v3346, 0
      %3376 = vmatprep.subr.bf16.mxu0 0
      %3377 = vmatpush1.bf16.msra.mxu0 %v3360
      %3378 = vmatprep.subr.bf16.mxu0 0
      %3379 = vmatpush1.bf16.msra.mxu0 %v3361
      %3380 = vmatprep.subr.bf16.mxu0 0
      %3381 = vmatpush1.bf16.msra.mxu0 0
      %3382 = vmatprep.subr.bf16.mxu0 0
      %3383 = vmatpush1.bf16.msra.mxu0 0
      %3384 = vmatprep.subr.bf16.mxu0 0
      %3385 = vmatpush1.bf16.msra.mxu0 0
      %3386 = vmatprep.subr.bf16.mxu0 0
      %3387 = vmatpush1.bf16.msra.mxu0 0
      %3388 = vmatprep.subr.bf16.mxu0 0
      %3389 = vmatpush1.bf16.msra.mxu0 0
      %3390 = vmatprep.subr.bf16.mxu0 0
      %3391 = vmatpush1.bf16.msra.mxu0 0
      %3392 = vmatprep.subr.bf16.mxu0 0
      %3393 = vmatpush1.bf16.msra.mxu0 0
      %3394 = vmatprep.subr.bf16.mxu0 0
      %3395 = vmatpush1.bf16.msra.mxu0 0
      %3396 = vmatprep.subr.bf16.mxu0 0
      %3397 = vmatpush1.bf16.msra.mxu0 0
      %3398 = vmatprep.subr.bf16.mxu0 0
      %3399 = vmatpush1.bf16.msra.mxu0 0
      %3400 = vmatprep.subr.bf16.mxu0 0
      %3401 = vmatpush1.bf16.msra.mxu0 0
      %3402 = vmatprep.subr.bf16.mxu0 0
      %3403 = vmatpush1.bf16.msra.mxu0 0
      %3404 = vmatprep.subr.bf16.mxu0 0
      %3405 = vmatpush1.bf16.msra.mxu0 0
      %3406 = vmatprep.subr.bf16.mxu0 0
      %3407 = vmatpush1.bf16.msra.mxu0 0
      %3408 = vmatprep.mubr.bf16.mxu0 0
      %3409 = vmatmul.mubr.bf16.gmra.mrb[0].mxu0 %v3365
      %v3410 = vpop.f32.mrb[0].mxu0
      %v3411 = vadd.f32 0.0, %v3410
      %v3412 = vpop.f32.mrb[0].mxu0
      %v3413 = vpop.f32.mrb[0].mxu0
      %v3414 = vadd.f32 0.0, %v3413
      %v3415 = vpop.f32.mrb[0].mxu0
      %3416 = vmatprep.mubr.bf16.mxu0 0
      %3417 = vmatmul.mubr.bf16.gmra.mrb[0].mxu0 %v3368
      %v3418 = vpop.f32.mrb[0].mxu0
      %v3419 = vadd.f32 0.0, %v3418
      %v3420 = vpop.f32.mrb[0].mxu0
      %v3421 = vpop.f32.mrb[0].mxu0
      %v3422 = vadd.f32 0.0, %v3421
      %v3423 = vpop.f32.mrb[0].mxu0
      %3424 = vmatprep.mubr.bf16.mxu0 0
      %3425 = vmatmul.mubr.bf16.gmra.mrb[0].mxu0 %v3371
      %v3426 = vpop.f32.mrb[0].mxu0
      %v3427 = vadd.f32 0.0, %v3426
      %v3428 = vpop.f32.mrb[0].mxu0
      %v3429 = vpop.f32.mrb[0].mxu0
      %v3430 = vadd.f32 0.0, %v3429
      %v3431 = vpop.f32.mrb[0].mxu0
      %3432 = vmatprep.mubr.bf16.mxu0 0
      %3433 = vmatmul.mubr.bf16.gmra.mrb[0].mxu0 %v3374
      %v3434 = vpop.f32.mrb[0].mxu0
      %v3435 = vadd.f32 0.0, %v3434
      %v3436 = vpop.f32.mrb[0].mxu0
      %v3437 = vpop.f32.mrb[0].mxu0
      %v3438 = vadd.f32 0.0, %v3437
      %v3439 = vpop.f32.mrb[0].mxu0
      %3440 = vdwg.mxu0
      %v3441 = vadd.f32 %v3221, %v3411
      %v3442 = vadd.f32 %v3222, %v3414
      %v3443 = vadd.f32 %v3223, %v3419
      %v3444 = vadd.f32 %v3224, %v3422
      %v3445 = vadd.f32 %v3225, %v3427
      %v3446 = vadd.f32 %v3226, %v3430
      %v3447 = vadd.f32 %v3227, %v3435
      %v3448 = vadd.f32 %v3228, %v3438
      %s3449 = scalar_lea.vmem %s2, 768
      %v3450 = vld [vmem:[%s3449] sm:$0xff]
      %v3451 = vld [vmem:[%s3449 + $0x8] sm:$0xff]
      %v3452 = vld [vmem:[%s3449 + $0x10] sm:$0xff]
      %v3453 = vld [vmem:[%s3449 + $0x18] sm:$0xff]
      %v3454 = vld [vmem:[%s3449 + $0x20] sm:$0xff]
      %v3455 = vld [vmem:[%s3449 + $0x28] sm:$0xff]
      %v3456 = vld [vmem:[%s3449 + $0x30] sm:$0xff]
      %v3457 = vld [vmem:[%s3449 + $0x38] sm:$0xff]
      %v3466 = vunpack.c.l.b16 %v3450
      %v3467 = vunpack.c.h.b16 %v3450
      %v3468 = vunpack.c.l.b16 %v3451
      %v3469 = vunpack.c.h.b16 %v3451
      %v3470 = vunpack.c.l.b16 %v3452
      %v3471 = vunpack.c.h.b16 %v3452
      %v3472 = vunpack.c.l.b16 %v3453
      %v3473 = vunpack.c.h.b16 %v3453
      %v3474 = vunpack.c.l.b16 %v3454
      %v3475 = vunpack.c.h.b16 %v3454
      %v3476 = vunpack.c.l.b16 %v3455
      %v3477 = vunpack.c.h.b16 %v3455
      %v3478 = vunpack.c.l.b16 %v3456
      %v3479 = vunpack.c.h.b16 %v3456
      %v3480 = vunpack.c.l.b16 %v3457
      %v3481 = vunpack.c.h.b16 %v3457
      %v3482 = vpack.c.b16 %v3468, %v3466
      %v3483 = vpack.c.b16 %v3469, %v3467
      %v3484 = vpack.c.b16 %v3472, %v3470
      %v3485 = vpack.c.b16 %v3473, %v3471
      %v3486 = vpack.c.b16 %v3476, %v3474
      %v3487 = vpack.c.b16 %v3477, %v3475
      %v3488 = vpack.c.b16 %v3480, %v3478
      %v3489 = vpack.c.b16 %v3481, %v3479
      %3498 = vmatprep.subr.bf16.mxu0 0
      %3499 = vmatpush1.bf16.msra.mxu0 %v810
      %3500 = vmatprep.subr.bf16.mxu0 0
      %3501 = vmatpush1.bf16.msra.mxu0 %v811
      %3502 = vmatprep.subr.bf16.mxu0 0
      %3503 = vmatpush1.bf16.msra.mxu0 %v812
      %3504 = vmatprep.subr.bf16.mxu0 0
      %3505 = vmatpush1.bf16.msra.mxu0 %v813
      %3506 = vmatprep.subr.bf16.mxu0 0
      %3507 = vmatpush1.bf16.msra.mxu0 %v814
      %3508 = vmatprep.subr.bf16.mxu0 0
      %3509 = vmatpush1.bf16.msra.mxu0 %v815
      %3510 = vmatprep.subr.bf16.mxu0 0
      %3511 = vmatpush1.bf16.msra.mxu0 %v816
      %3512 = vmatprep.subr.bf16.mxu0 0
      %3513 = vmatpush1.bf16.msra.mxu0 %v817
      %3514 = vmatprep.subr.bf16.mxu0 0
      %3515 = vmatpush1.bf16.msra.mxu0 %v818
      %3516 = vmatprep.subr.bf16.mxu0 0
      %3517 = vmatpush1.bf16.msra.mxu0 %v819
      %3518 = vmatprep.subr.bf16.mxu0 0
      %3519 = vmatpush1.bf16.msra.mxu0 %v820
      %3520 = vmatprep.subr.bf16.mxu0 0
      %3521 = vmatpush1.bf16.msra.mxu0 %v821
      %3522 = vmatprep.subr.bf16.mxu0 0
      %3523 = vmatpush1.bf16.msra.mxu0 %v822
      %3524 = vmatprep.subr.bf16.mxu0 0
      %3525 = vmatpush1.bf16.msra.mxu0 %v823
      %3526 = vmatprep.subr.bf16.mxu0 0
      %3527 = vmatpush1.bf16.msra.mxu0 %v824
      %3528 = vmatprep.subr.bf16.mxu0 0
      %3529 = vmatpush1.bf16.msra.mxu0 %v825
      %3530 = vmatprep.mubr.bf16.mxu0 %v3483
      %3531 = vmatmul.mubr.bf16.gmra.mrb[0].mxu0 %v3482
      %v3532 = vpop.f32.mrb[0].mxu0
      %v3533 = vadd.f32 0.0, %v3532
      %v3534 = vpop.f32.mrb[0].mxu0
      %v3535 = vpop.f32.mrb[0].mxu0
      %v3536 = vadd.f32 0.0, %v3535
      %v3537 = vpop.f32.mrb[0].mxu0
      %3538 = vmatprep.mubr.bf16.mxu0 %v3485
      %3539 = vmatmul.mubr.bf16.gmra.mrb[0].mxu0 %v3484
      %v3540 = vpop.f32.mrb[0].mxu0
      %v3541 = vadd.f32 0.0, %v3540
      %v3542 = vpop.f32.mrb[0].mxu0
      %v3543 = vpop.f32.mrb[0].mxu0
      %v3544 = vadd.f32 0.0, %v3543
      %v3545 = vpop.f32.mrb[0].mxu0
      %3546 = vmatprep.mubr.bf16.mxu0 %v3487
      %3547 = vmatmul.mubr.bf16.gmra.mrb[0].mxu0 %v3486
      %v3548 = vpop.f32.mrb[0].mxu0
      %v3549 = vadd.f32 0.0, %v3548
      %v3550 = vpop.f32.mrb[0].mxu0
      %v3551 = vpop.f32.mrb[0].mxu0
      %v3552 = vadd.f32 0.0, %v3551
      %v3553 = vpop.f32.mrb[0].mxu0
      %3554 = vmatprep.mubr.bf16.mxu0 %v3489
      %3555 = vmatmul.mubr.bf16.gmra.mrb[0].mxu0 %v3488
      %v3556 = vpop.f32.mrb[0].mxu0
      %v3557 = vadd.f32 0.0, %v3556
      %v3558 = vpop.f32.mrb[0].mxu0
      %v3559 = vpop.f32.mrb[0].mxu0
      %v3560 = vadd.f32 0.0, %v3559
      %v3561 = vpop.f32.mrb[0].mxu0
      %3562 = vdwg.mxu0
      %v3563 = vpack.c.bf16 %v3536, %v3533
      %v3564 = vpack.c.bf16 %v3544, %v3541
      %v3565 = vpack.c.bf16 %v3552, %v3549
      %v3566 = vpack.c.bf16 %v3560, %v3557
      %s3567 = scalar_lea.vmem %s3, 192
      %v3568 = vld [vmem:[%s3567] sm:$0xf]
      %v3569 = vld [vmem:[%s3567 + $0x4] sm:$0xf]
      %v3570 = vld [vmem:[%s3567 + $0x8] sm:$0xf]
      %v3571 = vld [vmem:[%s3567 + $0xc] sm:$0xf]
      %v3576 = vunpack.c.l.b16 %v3568
      %v3577 = vunpack.c.l.b16 %v3569
      %v3578 = vunpack.c.l.b16 %v3570
      %v3579 = vunpack.c.l.b16 %v3571
      %v3580 = vpack.c.b16 %v3577, %v3576
      %v3581 = vpack.c.b16 %v3579, %v3578
      %v3585 = vsel %vm1082, %v3563, 0
      %v3588 = vsel %vm1082, %v3564, 0
      %v3591 = vsel %vm1082, %v3565, 0
      %v3594 = vsel %vm1082, %v3566, 0
      %3596 = vmatprep.subr.bf16.mxu0 0
      %3597 = vmatpush1.bf16.msra.mxu0 %v3580
      %3598 = vmatprep.subr.bf16.mxu0 0
      %3599 = vmatpush1.bf16.msra.mxu0 %v3581
      %3600 = vmatprep.subr.bf16.mxu0 0
      %3601 = vmatpush1.bf16.msra.mxu0 0
      %3602 = vmatprep.subr.bf16.mxu0 0
      %3603 = vmatpush1.bf16.msra.mxu0 0
      %3604 = vmatprep.subr.bf16.mxu0 0
      %3605 = vmatpush1.bf16.msra.mxu0 0
      %3606 = vmatprep.subr.bf16.mxu0 0
      %3607 = vmatpush1.bf16.msra.mxu0 0
      %3608 = vmatprep.subr.bf16.mxu0 0
      %3609 = vmatpush1.bf16.msra.mxu0 0
      %3610 = vmatprep.subr.bf16.mxu0 0
      %3611 = vmatpush1.bf16.msra.mxu0 0
      %3612 = vmatprep.subr.bf16.mxu0 0
      %3613 = vmatpush1.bf16.msra.mxu0 0
      %3614 = vmatprep.subr.bf16.mxu0 0
      %3615 = vmatpush1.bf16.msra.mxu0 0
      %3616 = vmatprep.subr.bf16.mxu0 0
      %3617 = vmatpush1.bf16.msra.mxu0 0
      %3618 = vmatprep.subr.bf16.mxu0 0
      %3619 = vmatpush1.bf16.msra.mxu0 0
      %3620 = vmatprep.subr.bf16.mxu0 0
      %3621 = vmatpush1.bf16.msra.mxu0 0
      %3622 = vmatprep.subr.bf16.mxu0 0
      %3623 = vmatpush1.bf16.msra.mxu0 0
      %3624 = vmatprep.subr.bf16.mxu0 0
      %3625 = vmatpush1.bf16.msra.mxu0 0
      %3626 = vmatprep.subr.bf16.mxu0 0
      %3627 = vmatpush1.bf16.msra.mxu0 0
      %3628 = vmatprep.mubr.bf16.mxu0 0
      %3629 = vmatmul.mubr.bf16.gmra.mrb[0].mxu0 %v3585
      %v3630 = vpop.f32.mrb[0].mxu0
      %v3631 = vadd.f32 0.0, %v3630
      %v3632 = vpop.f32.mrb[0].mxu0
      %v3633 = vpop.f32.mrb[0].mxu0
      %v3634 = vadd.f32 0.0, %v3633
      %v3635 = vpop.f32.mrb[0].mxu0
      %3636 = vmatprep.mubr.bf16.mxu0 0
      %3637 = vmatmul.mubr.bf16.gmra.mrb[0].mxu0 %v3588
      %v3638 = vpop.f32.mrb[0].mxu0
      %v3639 = vadd.f32 0.0, %v3638
      %v3640 = vpop.f32.mrb[0].mxu0
      %v3641 = vpop.f32.mrb[0].mxu0
      %v3642 = vadd.f32 0.0, %v3641
      %v3643 = vpop.f32.mrb[0].mxu0
      %3644 = vmatprep.mubr.bf16.mxu0 0
      %3645 = vmatmul.mubr.bf16.gmra.mrb[0].mxu0 %v3591
      %v3646 = vpop.f32.mrb[0].mxu0
      %v3647 = vadd.f32 0.0, %v3646
      %v3648 = vpop.f32.mrb[0].mxu0
      %v3649 = vpop.f32.mrb[0].mxu0
      %v3650 = vadd.f32 0.0, %v3649
      %v3651 = vpop.f32.mrb[0].mxu0
      %3652 = vmatprep.mubr.bf16.mxu0 0
      %3653 = vmatmul.mubr.bf16.gmra.mrb[0].mxu0 %v3594
      %v3654 = vpop.f32.mrb[0].mxu0
      %v3655 = vadd.f32 0.0, %v3654
      %v3656 = vpop.f32.mrb[0].mxu0
      %v3657 = vpop.f32.mrb[0].mxu0
      %v3658 = vadd.f32 0.0, %v3657
      %v3659 = vpop.f32.mrb[0].mxu0
      %3660 = vdwg.mxu0
      %v3661 = vadd.f32 %v3441, %v3631
      %v3662 = vadd.f32 %v3442, %v3634
      %v3663 = vadd.f32 %v3443, %v3639
      %v3664 = vadd.f32 %v3444, %v3642
      %v3665 = vadd.f32 %v3445, %v3647
      %v3666 = vadd.f32 %v3446, %v3650
      %v3667 = vadd.f32 %v3447, %v3655
      %v3668 = vadd.f32 %v3448, %v3658
      %s3669 = scalar_lea.vmem %s2, 832
      %v3670 = vld [vmem:[%s3669] sm:$0xff]
      %v3671 = vld [vmem:[%s3669 + $0x8] sm:$0xff]
      %v3672 = vld [vmem:[%s3669 + $0x10] sm:$0xff]
      %v3673 = vld [vmem:[%s3669 + $0x18] sm:$0xff]
      %v3674 = vld [vmem:[%s3669 + $0x20] sm:$0xff]
      %v3675 = vld [vmem:[%s3669 + $0x28] sm:$0xff]
      %v3676 = vld [vmem:[%s3669 + $0x30] sm:$0xff]
      %v3677 = vld [vmem:[%s3669 + $0x38] sm:$0xff]
      %v3686 = vunpack.c.l.b16 %v3670
      %v3687 = vunpack.c.h.b16 %v3670
      %v3688 = vunpack.c.l.b16 %v3671
      %v3689 = vunpack.c.h.b16 %v3671
      %v3690 = vunpack.c.l.b16 %v3672
      %v3691 = vunpack.c.h.b16 %v3672
      %v3692 = vunpack.c.l.b16 %v3673
      %v3693 = vunpack.c.h.b16 %v3673
      %v3694 = vunpack.c.l.b16 %v3674
      %v3695 = vunpack.c.h.b16 %v3674
      %v3696 = vunpack.c.l.b16 %v3675
      %v3697 = vunpack.c.h.b16 %v3675
      %v3698 = vunpack.c.l.b16 %v3676
      %v3699 = vunpack.c.h.b16 %v3676
      %v3700 = vunpack.c.l.b16 %v3677
      %v3701 = vunpack.c.h.b16 %v3677
      %v3702 = vpack.c.b16 %v3688, %v3686
      %v3703 = vpack.c.b16 %v3689, %v3687
      %v3704 = vpack.c.b16 %v3692, %v3690
      %v3705 = vpack.c.b16 %v3693, %v3691
      %v3706 = vpack.c.b16 %v3696, %v3694
      %v3707 = vpack.c.b16 %v3697, %v3695
      %v3708 = vpack.c.b16 %v3700, %v3698
      %v3709 = vpack.c.b16 %v3701, %v3699
      %3718 = vmatprep.subr.bf16.mxu0 0
      %3719 = vmatpush1.bf16.msra.mxu0 %v810
      %3720 = vmatprep.subr.bf16.mxu0 0
      %3721 = vmatpush1.bf16.msra.mxu0 %v811
      %3722 = vmatprep.subr.bf16.mxu0 0
      %3723 = vmatpush1.bf16.msra.mxu0 %v812
      %3724 = vmatprep.subr.bf16.mxu0 0
      %3725 = vmatpush1.bf16.msra.mxu0 %v813
      %3726 = vmatprep.subr.bf16.mxu0 0
      %3727 = vmatpush1.bf16.msra.mxu0 %v814
      %3728 = vmatprep.subr.bf16.mxu0 0
      %3729 = vmatpush1.bf16.msra.mxu0 %v815
      %3730 = vmatprep.subr.bf16.mxu0 0
      %3731 = vmatpush1.bf16.msra.mxu0 %v816
      %3732 = vmatprep.subr.bf16.mxu0 0
      %3733 = vmatpush1.bf16.msra.mxu0 %v817
      %3734 = vmatprep.subr.bf16.mxu0 0
      %3735 = vmatpush1.bf16.msra.mxu0 %v818
      %3736 = vmatprep.subr.bf16.mxu0 0
      %3737 = vmatpush1.bf16.msra.mxu0 %v819
      %3738 = vmatprep.subr.bf16.mxu0 0
      %3739 = vmatpush1.bf16.msra.mxu0 %v820
      %3740 = vmatprep.subr.bf16.mxu0 0
      %3741 = vmatpush1.bf16.msra.mxu0 %v821
      %3742 = vmatprep.subr.bf16.mxu0 0
      %3743 = vmatpush1.bf16.msra.mxu0 %v822
      %3744 = vmatprep.subr.bf16.mxu0 0
      %3745 = vmatpush1.bf16.msra.mxu0 %v823
      %3746 = vmatprep.subr.bf16.mxu0 0
      %3747 = vmatpush1.bf16.msra.mxu0 %v824
      %3748 = vmatprep.subr.bf16.mxu0 0
      %3749 = vmatpush1.bf16.msra.mxu0 %v825
      %3750 = vmatprep.mubr.bf16.mxu0 %v3703
      %3751 = vmatmul.mubr.bf16.gmra.mrb[0].mxu0 %v3702
      %v3752 = vpop.f32.mrb[0].mxu0
      %v3753 = vadd.f32 0.0, %v3752
      %v3754 = vpop.f32.mrb[0].mxu0
      %v3755 = vpop.f32.mrb[0].mxu0
      %v3756 = vadd.f32 0.0, %v3755
      %v3757 = vpop.f32.mrb[0].mxu0
      %3758 = vmatprep.mubr.bf16.mxu0 %v3705
      %3759 = vmatmul.mubr.bf16.gmra.mrb[0].mxu0 %v3704
      %v3760 = vpop.f32.mrb[0].mxu0
      %v3761 = vadd.f32 0.0, %v3760
      %v3762 = vpop.f32.mrb[0].mxu0
      %v3763 = vpop.f32.mrb[0].mxu0
      %v3764 = vadd.f32 0.0, %v3763
      %v3765 = vpop.f32.mrb[0].mxu0
      %3766 = vmatprep.mubr.bf16.mxu0 %v3707
      %3767 = vmatmul.mubr.bf16.gmra.mrb[0].mxu0 %v3706
      %v3768 = vpop.f32.mrb[0].mxu0
      %v3769 = vadd.f32 0.0, %v3768
      %v3770 = vpop.f32.mrb[0].mxu0
      %v3771 = vpop.f32.mrb[0].mxu0
      %v3772 = vadd.f32 0.0, %v3771
      %v3773 = vpop.f32.mrb[0].mxu0
      %3774 = vmatprep.mubr.bf16.mxu0 %v3709
      %3775 = vmatmul.mubr.bf16.gmra.mrb[0].mxu0 %v3708
      %v3776 = vpop.f32.mrb[0].mxu0
      %v3777 = vadd.f32 0.0, %v3776
      %v3778 = vpop.f32.mrb[0].mxu0
      %v3779 = vpop.f32.mrb[0].mxu0
      %v3780 = vadd.f32 0.0, %v3779
      %v3781 = vpop.f32.mrb[0].mxu0
      %3782 = vdwg.mxu0
      %v3783 = vpack.c.bf16 %v3756, %v3753
      %v3784 = vpack.c.bf16 %v3764, %v3761
      %v3785 = vpack.c.bf16 %v3772, %v3769
      %v3786 = vpack.c.bf16 %v3780, %v3777
      %s3787 = scalar_lea.vmem %s3, 208
      %v3788 = vld [vmem:[%s3787] sm:$0xf]
      %v3789 = vld [vmem:[%s3787 + $0x4] sm:$0xf]
      %v3790 = vld [vmem:[%s3787 + $0x8] sm:$0xf]
      %v3791 = vld [vmem:[%s3787 + $0xc] sm:$0xf]
      %v3796 = vunpack.c.l.b16 %v3788
      %v3797 = vunpack.c.l.b16 %v3789
      %v3798 = vunpack.c.l.b16 %v3790
      %v3799 = vunpack.c.l.b16 %v3791
      %v3800 = vpack.c.b16 %v3797, %v3796
      %v3801 = vpack.c.b16 %v3799, %v3798
      %v3805 = vsel %vm1082, %v3783, 0
      %v3808 = vsel %vm1082, %v3784, 0
      %v3811 = vsel %vm1082, %v3785, 0
      %v3814 = vsel %vm1082, %v3786, 0
      %3816 = vmatprep.subr.bf16.mxu0 0
      %3817 = vmatpush1.bf16.msra.mxu0 %v3800
      %3818 = vmatprep.subr.bf16.mxu0 0
      %3819 = vmatpush1.bf16.msra.mxu0 %v3801
      %3820 = vmatprep.subr.bf16.mxu0 0
      %3821 = vmatpush1.bf16.msra.mxu0 0
      %3822 = vmatprep.subr.bf16.mxu0 0
      %3823 = vmatpush1.bf16.msra.mxu0 0
      %3824 = vmatprep.subr.bf16.mxu0 0
      %3825 = vmatpush1.bf16.msra.mxu0 0
      %3826 = vmatprep.subr.bf16.mxu0 0
      %3827 = vmatpush1.bf16.msra.mxu0 0
      %3828 = vmatprep.subr.bf16.mxu0 0
      %3829 = vmatpush1.bf16.msra.mxu0 0
      %3830 = vmatprep.subr.bf16.mxu0 0
      %3831 = vmatpush1.bf16.msra.mxu0 0
      %3832 = vmatprep.subr.bf16.mxu0 0
      %3833 = vmatpush1.bf16.msra.mxu0 0
      %3834 = vmatprep.subr.bf16.mxu0 0
      %3835 = vmatpush1.bf16.msra.mxu0 0
      %3836 = vmatprep.subr.bf16.mxu0 0
      %3837 = vmatpush1.bf16.msra.mxu0 0
      %3838 = vmatprep.subr.bf16.mxu0 0
      %3839 = vmatpush1.bf16.msra.mxu0 0
      %3840 = vmatprep.subr.bf16.mxu0 0
      %3841 = vmatpush1.bf16.msra.mxu0 0
      %3842 = vmatprep.subr.bf16.mxu0 0
      %3843 = vmatpush1.bf16.msra.mxu0 0
      %3844 = vmatprep.subr.bf16.mxu0 0
      %3845 = vmatpush1.bf16.msra.mxu0 0
      %3846 = vmatprep.subr.bf16.mxu0 0
      %3847 = vmatpush1.bf16.msra.mxu0 0
      %3848 = vmatprep.mubr.bf16.mxu0 0
      %3849 = vmatmul.mubr.bf16.gmra.mrb[0].mxu0 %v3805
      %v3850 = vpop.f32.mrb[0].mxu0
      %v3851 = vadd.f32 0.0, %v3850
      %v3852 = vpop.f32.mrb[0].mxu0
      %v3853 = vpop.f32.mrb[0].mxu0
      %v3854 = vadd.f32 0.0, %v3853
      %v3855 = vpop.f32.mrb[0].mxu0
      %3856 = vmatprep.mubr.bf16.mxu0 0
      %3857 = vmatmul.mubr.bf16.gmra.mrb[0].mxu0 %v3808
      %v3858 = vpop.f32.mrb[0].mxu0
      %v3859 = vadd.f32 0.0, %v3858
      %v3860 = vpop.f32.mrb[0].mxu0
      %v3861 = vpop.f32.mrb[0].mxu0
      %v3862 = vadd.f32 0.0, %v3861
      %v3863 = vpop.f32.mrb[0].mxu0
      %3864 = vmatprep.mubr.bf16.mxu0 0
      %3865 = vmatmul.mubr.bf16.gmra.mrb[0].mxu0 %v3811
      %v3866 = vpop.f32.mrb[0].mxu0
      %v3867 = vadd.f32 0.0, %v3866
      %v3868 = vpop.f32.mrb[0].mxu0
      %v3869 = vpop.f32.mrb[0].mxu0
      %v3870 = vadd.f32 0.0, %v3869
      %v3871 = vpop.f32.mrb[0].mxu0
      %3872 = vmatprep.mubr.bf16.mxu0 0
      %3873 = vmatmul.mubr.bf16.gmra.mrb[0].mxu0 %v3814
      %v3874 = vpop.f32.mrb[0].mxu0
      %v3875 = vadd.f32 0.0, %v3874
      %v3876 = vpop.f32.mrb[0].mxu0
      %v3877 = vpop.f32.mrb[0].mxu0
      %v3878 = vadd.f32 0.0, %v3877
      %v3879 = vpop.f32.mrb[0].mxu0
      %3880 = vdwg.mxu0
      %v3881 = vadd.f32 %v3661, %v3851
      %v3882 = vadd.f32 %v3662, %v3854
      %v3883 = vadd.f32 %v3663, %v3859
      %v3884 = vadd.f32 %v3664, %v3862
      %v3885 = vadd.f32 %v3665, %v3867
      %v3886 = vadd.f32 %v3666, %v3870
      %v3887 = vadd.f32 %v3667, %v3875
      %v3888 = vadd.f32 %v3668, %v3878
      %s3889 = scalar_lea.vmem %s2, 896
      %v3890 = vld [vmem:[%s3889] sm:$0xff]
      %v3891 = vld [vmem:[%s3889 + $0x8] sm:$0xff]
      %v3892 = vld [vmem:[%s3889 + $0x10] sm:$0xff]
      %v3893 = vld [vmem:[%s3889 + $0x18] sm:$0xff]
      %v3894 = vld [vmem:[%s3889 + $0x20] sm:$0xff]
      %v3895 = vld [vmem:[%s3889 + $0x28] sm:$0xff]
      %v3896 = vld [vmem:[%s3889 + $0x30] sm:$0xff]
      %v3897 = vld [vmem:[%s3889 + $0x38] sm:$0xff]
      %v3906 = vunpack.c.l.b16 %v3890
      %v3907 = vunpack.c.h.b16 %v3890
      %v3908 = vunpack.c.l.b16 %v3891
      %v3909 = vunpack.c.h.b16 %v3891
      %v3910 = vunpack.c.l.b16 %v3892
      %v3911 = vunpack.c.h.b16 %v3892
      %v3912 = vunpack.c.l.b16 %v3893
      %v3913 = vunpack.c.h.b16 %v3893
      %v3914 = vunpack.c.l.b16 %v3894
      %v3915 = vunpack.c.h.b16 %v3894
      %v3916 = vunpack.c.l.b16 %v3895
      %v3917 = vunpack.c.h.b16 %v3895
      %v3918 = vunpack.c.l.b16 %v3896
      %v3919 = vunpack.c.h.b16 %v3896
      %v3920 = vunpack.c.l.b16 %v3897
      %v3921 = vunpack.c.h.b16 %v3897
      %v3922 = vpack.c.b16 %v3908, %v3906
      %v3923 = vpack.c.b16 %v3909, %v3907
      %v3924 = vpack.c.b16 %v3912, %v3910
      %v3925 = vpack.c.b16 %v3913, %v3911
      %v3926 = vpack.c.b16 %v3916, %v3914
      %v3927 = vpack.c.b16 %v3917, %v3915
      %v3928 = vpack.c.b16 %v3920, %v3918
      %v3929 = vpack.c.b16 %v3921, %v3919
      %3938 = vmatprep.subr.bf16.mxu0 0
      %3939 = vmatpush1.bf16.msra.mxu0 %v810
      %3940 = vmatprep.subr.bf16.mxu0 0
      %3941 = vmatpush1.bf16.msra.mxu0 %v811
      %3942 = vmatprep.subr.bf16.mxu0 0
      %3943 = vmatpush1.bf16.msra.mxu0 %v812
      %3944 = vmatprep.subr.bf16.mxu0 0
      %3945 = vmatpush1.bf16.msra.mxu0 %v813
      %3946 = vmatprep.subr.bf16.mxu0 0
      %3947 = vmatpush1.bf16.msra.mxu0 %v814
      %3948 = vmatprep.subr.bf16.mxu0 0
      %3949 = vmatpush1.bf16.msra.mxu0 %v815
      %3950 = vmatprep.subr.bf16.mxu0 0
      %3951 = vmatpush1.bf16.msra.mxu0 %v816
      %3952 = vmatprep.subr.bf16.mxu0 0
      %3953 = vmatpush1.bf16.msra.mxu0 %v817
      %3954 = vmatprep.subr.bf16.mxu0 0
      %3955 = vmatpush1.bf16.msra.mxu0 %v818
      %3956 = vmatprep.subr.bf16.mxu0 0
      %3957 = vmatpush1.bf16.msra.mxu0 %v819
      %3958 = vmatprep.subr.bf16.mxu0 0
      %3959 = vmatpush1.bf16.msra.mxu0 %v820
      %3960 = vmatprep.subr.bf16.mxu0 0
      %3961 = vmatpush1.bf16.msra.mxu0 %v821
      %3962 = vmatprep.subr.bf16.mxu0 0
      %3963 = vmatpush1.bf16.msra.mxu0 %v822
      %3964 = vmatprep.subr.bf16.mxu0 0
      %3965 = vmatpush1.bf16.msra.mxu0 %v823
      %3966 = vmatprep.subr.bf16.mxu0 0
      %3967 = vmatpush1.bf16.msra.mxu0 %v824
      %3968 = vmatprep.subr.bf16.mxu0 0
      %3969 = vmatpush1.bf16.msra.mxu0 %v825
      %3970 = vmatprep.mubr.bf16.mxu0 %v3923
      %3971 = vmatmul.mubr.bf16.gmra.mrb[0].mxu0 %v3922
      %v3972 = vpop.f32.mrb[0].mxu0
      %v3973 = vadd.f32 0.0, %v3972
      %v3974 = vpop.f32.mrb[0].mxu0
      %v3975 = vpop.f32.mrb[0].mxu0
      %v3976 = vadd.f32 0.0, %v3975
      %v3977 = vpop.f32.mrb[0].mxu0
      %3978 = vmatprep.mubr.bf16.mxu0 %v3925
      %3979 = vmatmul.mubr.bf16.gmra.mrb[0].mxu0 %v3924
      %v3980 = vpop.f32.mrb[0].mxu0
      %v3981 = vadd.f32 0.0, %v3980
      %v3982 = vpop.f32.mrb[0].mxu0
      %v3983 = vpop.f32.mrb[0].mxu0
      %v3984 = vadd.f32 0.0, %v3983
      %v3985 = vpop.f32.mrb[0].mxu0
      %3986 = vmatprep.mubr.bf16.mxu0 %v3927
      %3987 = vmatmul.mubr.bf16.gmra.mrb[0].mxu0 %v3926
      %v3988 = vpop.f32.mrb[0].mxu0
      %v3989 = vadd.f32 0.0, %v3988
      %v3990 = vpop.f32.mrb[0].mxu0
      %v3991 = vpop.f32.mrb[0].mxu0
      %v3992 = vadd.f32 0.0, %v3991
      %v3993 = vpop.f32.mrb[0].mxu0
      %3994 = vmatprep.mubr.bf16.mxu0 %v3929
      %3995 = vmatmul.mubr.bf16.gmra.mrb[0].mxu0 %v3928
      %v3996 = vpop.f32.mrb[0].mxu0
      %v3997 = vadd.f32 0.0, %v3996
      %v3998 = vpop.f32.mrb[0].mxu0
      %v3999 = vpop.f32.mrb[0].mxu0
      %v4000 = vadd.f32 0.0, %v3999
      %v4001 = vpop.f32.mrb[0].mxu0
      %4002 = vdwg.mxu0
      %v4003 = vpack.c.bf16 %v3976, %v3973
      %v4004 = vpack.c.bf16 %v3984, %v3981
      %v4005 = vpack.c.bf16 %v3992, %v3989
      %v4006 = vpack.c.bf16 %v4000, %v3997
      %s4007 = scalar_lea.vmem %s3, 224
      %v4008 = vld [vmem:[%s4007] sm:$0xf]
      %v4009 = vld [vmem:[%s4007 + $0x4] sm:$0xf]
      %v4010 = vld [vmem:[%s4007 + $0x8] sm:$0xf]
      %v4011 = vld [vmem:[%s4007 + $0xc] sm:$0xf]
      %v4016 = vunpack.c.l.b16 %v4008
      %v4017 = vunpack.c.l.b16 %v4009
      %v4018 = vunpack.c.l.b16 %v4010
      %v4019 = vunpack.c.l.b16 %v4011
      %v4020 = vpack.c.b16 %v4017, %v4016
      %v4021 = vpack.c.b16 %v4019, %v4018
      %v4025 = vsel %vm1082, %v4003, 0
      %v4028 = vsel %vm1082, %v4004, 0
      %v4031 = vsel %vm1082, %v4005, 0
      %v4034 = vsel %vm1082, %v4006, 0
      %4036 = vmatprep.subr.bf16.mxu0 0
      %4037 = vmatpush1.bf16.msra.mxu0 %v4020
      %4038 = vmatprep.subr.bf16.mxu0 0
      %4039 = vmatpush1.bf16.msra.mxu0 %v4021
      %4040 = vmatprep.subr.bf16.mxu0 0
      %4041 = vmatpush1.bf16.msra.mxu0 0
      %4042 = vmatprep.subr.bf16.mxu0 0
      %4043 = vmatpush1.bf16.msra.mxu0 0
      %4044 = vmatprep.subr.bf16.mxu0 0
      %4045 = vmatpush1.bf16.msra.mxu0 0
      %4046 = vmatprep.subr.bf16.mxu0 0
      %4047 = vmatpush1.bf16.msra.mxu0 0
      %4048 = vmatprep.subr.bf16.mxu0 0
      %4049 = vmatpush1.bf16.msra.mxu0 0
      %4050 = vmatprep.subr.bf16.mxu0 0
      %4051 = vmatpush1.bf16.msra.mxu0 0
      %4052 = vmatprep.subr.bf16.mxu0 0
      %4053 = vmatpush1.bf16.msra.mxu0 0
      %4054 = vmatprep.subr.bf16.mxu0 0
      %4055 = vmatpush1.bf16.msra.mxu0 0
      %4056 = vmatprep.subr.bf16.mxu0 0
      %4057 = vmatpush1.bf16.msra.mxu0 0
      %4058 = vmatprep.subr.bf16.mxu0 0
      %4059 = vmatpush1.bf16.msra.mxu0 0
      %4060 = vmatprep.subr.bf16.mxu0 0
      %4061 = vmatpush1.bf16.msra.mxu0 0
      %4062 = vmatprep.subr.bf16.mxu0 0
      %4063 = vmatpush1.bf16.msra.mxu0 0
      %4064 = vmatprep.subr.bf16.mxu0 0
      %4065 = vmatpush1.bf16.msra.mxu0 0
      %4066 = vmatprep.subr.bf16.mxu0 0
      %4067 = vmatpush1.bf16.msra.mxu0 0
      %4068 = vmatprep.mubr.bf16.mxu0 0
      %4069 = vmatmul.mubr.bf16.gmra.mrb[0].mxu0 %v4025
      %v4070 = vpop.f32.mrb[0].mxu0
      %v4071 = vadd.f32 0.0, %v4070
      %v4072 = vpop.f32.mrb[0].mxu0
      %v4073 = vpop.f32.mrb[0].mxu0
      %v4074 = vadd.f32 0.0, %v4073
      %v4075 = vpop.f32.mrb[0].mxu0
      %4076 = vmatprep.mubr.bf16.mxu0 0
      %4077 = vmatmul.mubr.bf16.gmra.mrb[0].mxu0 %v4028
      %v4078 = vpop.f32.mrb[0].mxu0
      %v4079 = vadd.f32 0.0, %v4078
      %v4080 = vpop.f32.mrb[0].mxu0
      %v4081 = vpop.f32.mrb[0].mxu0
      %v4082 = vadd.f32 0.0, %v4081
      %v4083 = vpop.f32.mrb[0].mxu0
      %4084 = vmatprep.mubr.bf16.mxu0 0
      %4085 = vmatmul.mubr.bf16.gmra.mrb[0].mxu0 %v4031
      %v4086 = vpop.f32.mrb[0].mxu0
      %v4087 = vadd.f32 0.0, %v4086
      %v4088 = vpop.f32.mrb[0].mxu0
      %v4089 = vpop.f32.mrb[0].mxu0
      %v4090 = vadd.f32 0.0, %v4089
      %v4091 = vpop.f32.mrb[0].mxu0
      %4092 = vmatprep.mubr.bf16.mxu0 0
      %4093 = vmatmul.mubr.bf16.gmra.mrb[0].mxu0 %v4034
      %v4094 = vpop.f32.mrb[0].mxu0
      %v4095 = vadd.f32 0.0, %v4094
      %v4096 = vpop.f32.mrb[0].mxu0
      %v4097 = vpop.f32.mrb[0].mxu0
      %v4098 = vadd.f32 0.0, %v4097
      %v4099 = vpop.f32.mrb[0].mxu0
      %4100 = vdwg.mxu0
      %v4101 = vadd.f32 %v3881, %v4071
      %v4102 = vadd.f32 %v3882, %v4074
      %v4103 = vadd.f32 %v3883, %v4079
      %v4104 = vadd.f32 %v3884, %v4082
      %v4105 = vadd.f32 %v3885, %v4087
      %v4106 = vadd.f32 %v3886, %v4090
      %v4107 = vadd.f32 %v3887, %v4095
      %v4108 = vadd.f32 %v3888, %v4098
      %s4109 = scalar_lea.vmem %s2, 960
      %v4110 = vld [vmem:[%s4109] sm:$0xff]
      %v4111 = vld [vmem:[%s4109 + $0x8] sm:$0xff]
      %v4112 = vld [vmem:[%s4109 + $0x10] sm:$0xff]
      %v4113 = vld [vmem:[%s4109 + $0x18] sm:$0xff]
      %v4114 = vld [vmem:[%s4109 + $0x20] sm:$0xff]
      %v4115 = vld [vmem:[%s4109 + $0x28] sm:$0xff]
      %v4116 = vld [vmem:[%s4109 + $0x30] sm:$0xff]
      %v4117 = vld [vmem:[%s4109 + $0x38] sm:$0xff]
      %v4126 = vunpack.c.l.b16 %v4110
      %v4127 = vunpack.c.h.b16 %v4110
      %v4128 = vunpack.c.l.b16 %v4111
      %v4129 = vunpack.c.h.b16 %v4111
      %v4130 = vunpack.c.l.b16 %v4112
      %v4131 = vunpack.c.h.b16 %v4112
      %v4132 = vunpack.c.l.b16 %v4113
      %v4133 = vunpack.c.h.b16 %v4113
      %v4134 = vunpack.c.l.b16 %v4114
      %v4135 = vunpack.c.h.b16 %v4114
      %v4136 = vunpack.c.l.b16 %v4115
      %v4137 = vunpack.c.h.b16 %v4115
      %v4138 = vunpack.c.l.b16 %v4116
      %v4139 = vunpack.c.h.b16 %v4116
      %v4140 = vunpack.c.l.b16 %v4117
      %v4141 = vunpack.c.h.b16 %v4117
      %v4142 = vpack.c.b16 %v4128, %v4126
      %v4143 = vpack.c.b16 %v4129, %v4127
      %v4144 = vpack.c.b16 %v4132, %v4130
      %v4145 = vpack.c.b16 %v4133, %v4131
      %v4146 = vpack.c.b16 %v4136, %v4134
      %v4147 = vpack.c.b16 %v4137, %v4135
      %v4148 = vpack.c.b16 %v4140, %v4138
      %v4149 = vpack.c.b16 %v4141, %v4139
      %4158 = vmatprep.subr.bf16.mxu0 0
      %4159 = vmatpush1.bf16.msra.mxu0 %v810
      %4160 = vmatprep.subr.bf16.mxu0 0
      %4161 = vmatpush1.bf16.msra.mxu0 %v811
      %4162 = vmatprep.subr.bf16.mxu0 0
      %4163 = vmatpush1.bf16.msra.mxu0 %v812
      %4164 = vmatprep.subr.bf16.mxu0 0
      %4165 = vmatpush1.bf16.msra.mxu0 %v813
      %4166 = vmatprep.subr.bf16.mxu0 0
      %4167 = vmatpush1.bf16.msra.mxu0 %v814
      %4168 = vmatprep.subr.bf16.mxu0 0
      %4169 = vmatpush1.bf16.msra.mxu0 %v815
      %4170 = vmatprep.subr.bf16.mxu0 0
      %4171 = vmatpush1.bf16.msra.mxu0 %v816
      %4172 = vmatprep.subr.bf16.mxu0 0
      %4173 = vmatpush1.bf16.msra.mxu0 %v817
      %4174 = vmatprep.subr.bf16.mxu0 0
      %4175 = vmatpush1.bf16.msra.mxu0 %v818
      %4176 = vmatprep.subr.bf16.mxu0 0
      %4177 = vmatpush1.bf16.msra.mxu0 %v819
      %4178 = vmatprep.subr.bf16.mxu0 0
      %4179 = vmatpush1.bf16.msra.mxu0 %v820
      %4180 = vmatprep.subr.bf16.mxu0 0
      %4181 = vmatpush1.bf16.msra.mxu0 %v821
      %4182 = vmatprep.subr.bf16.mxu0 0
      %4183 = vmatpush1.bf16.msra.mxu0 %v822
      %4184 = vmatprep.subr.bf16.mxu0 0
      %4185 = vmatpush1.bf16.msra.mxu0 %v823
      %4186 = vmatprep.subr.bf16.mxu0 0
      %4187 = vmatpush1.bf16.msra.mxu0 %v824
      %4188 = vmatprep.subr.bf16.mxu0 0
      %4189 = vmatpush1.bf16.msra.mxu0 %v825
      %4190 = vmatprep.mubr.bf16.mxu0 %v4143
      %4191 = vmatmul.mubr.bf16.gmra.mrb[0].mxu0 %v4142
      %v4192 = vpop.f32.mrb[0].mxu0
      %v4193 = vadd.f32 0.0, %v4192
      %v4194 = vpop.f32.mrb[0].mxu0
      %v4195 = vpop.f32.mrb[0].mxu0
      %v4196 = vadd.f32 0.0, %v4195
      %v4197 = vpop.f32.mrb[0].mxu0
      %4198 = vmatprep.mubr.bf16.mxu0 %v4145
      %4199 = vmatmul.mubr.bf16.gmra.mrb[0].mxu0 %v4144
      %v4200 = vpop.f32.mrb[0].mxu0
      %v4201 = vadd.f32 0.0, %v4200
      %v4202 = vpop.f32.mrb[0].mxu0
      %v4203 = vpop.f32.mrb[0].mxu0
      %v4204 = vadd.f32 0.0, %v4203
      %v4205 = vpop.f32.mrb[0].mxu0
      %4206 = vmatprep.mubr.bf16.mxu0 %v4147
      %4207 = vmatmul.mubr.bf16.gmra.mrb[0].mxu0 %v4146
      %v4208 = vpop.f32.mrb[0].mxu0
      %v4209 = vadd.f32 0.0, %v4208
      %v4210 = vpop.f32.mrb[0].mxu0
      %v4211 = vpop.f32.mrb[0].mxu0
      %v4212 = vadd.f32 0.0, %v4211
      %v4213 = vpop.f32.mrb[0].mxu0
      %4214 = vmatprep.mubr.bf16.mxu0 %v4149
      %4215 = vmatmul.mubr.bf16.gmra.mrb[0].mxu0 %v4148
      %v4216 = vpop.f32.mrb[0].mxu0
      %v4217 = vadd.f32 0.0, %v4216
      %v4218 = vpop.f32.mrb[0].mxu0
      %v4219 = vpop.f32.mrb[0].mxu0
      %v4220 = vadd.f32 0.0, %v4219
      %v4221 = vpop.f32.mrb[0].mxu0
      %4222 = vdwg.mxu0
      %v4223 = vpack.c.bf16 %v4196, %v4193
      %v4224 = vpack.c.bf16 %v4204, %v4201
      %v4225 = vpack.c.bf16 %v4212, %v4209
      %v4226 = vpack.c.bf16 %v4220, %v4217
      %s4227 = scalar_lea.vmem %s3, 240
      %v4228 = vld [vmem:[%s4227] sm:$0xf]
      %v4229 = vld [vmem:[%s4227 + $0x4] sm:$0xf]
      %v4230 = vld [vmem:[%s4227 + $0x8] sm:$0xf]
      %v4231 = vld [vmem:[%s4227 + $0xc] sm:$0xf]
      %v4236 = vunpack.c.l.b16 %v4228
      %v4237 = vunpack.c.l.b16 %v4229
      %v4238 = vunpack.c.l.b16 %v4230
      %v4239 = vunpack.c.l.b16 %v4231
      %v4240 = vpack.c.b16 %v4237, %v4236
      %v4241 = vpack.c.b16 %v4239, %v4238
      %v4245 = vsel %vm1082, %v4223, 0
      %v4248 = vsel %vm1082, %v4224, 0
      %v4251 = vsel %vm1082, %v4225, 0
      %v4254 = vsel %vm1082, %v4226, 0
      %4256 = vmatprep.subr.bf16.mxu0 0
      %4257 = vmatpush1.bf16.msra.mxu0 %v4240
      %4258 = vmatprep.subr.bf16.mxu0 0
      %4259 = vmatpush1.bf16.msra.mxu0 %v4241
      %4260 = vmatprep.subr.bf16.mxu0 0
      %4261 = vmatpush1.bf16.msra.mxu0 0
      %4262 = vmatprep.subr.bf16.mxu0 0
      %4263 = vmatpush1.bf16.msra.mxu0 0
      %4264 = vmatprep.subr.bf16.mxu0 0
      %4265 = vmatpush1.bf16.msra.mxu0 0
      %4266 = vmatprep.subr.bf16.mxu0 0
      %4267 = vmatpush1.bf16.msra.mxu0 0
      %4268 = vmatprep.subr.bf16.mxu0 0
      %4269 = vmatpush1.bf16.msra.mxu0 0
      %4270 = vmatprep.subr.bf16.mxu0 0
      %4271 = vmatpush1.bf16.msra.mxu0 0
      %4272 = vmatprep.subr.bf16.mxu0 0
      %4273 = vmatpush1.bf16.msra.mxu0 0
      %4274 = vmatprep.subr.bf16.mxu0 0
      %4275 = vmatpush1.bf16.msra.mxu0 0
      %4276 = vmatprep.subr.bf16.mxu0 0
      %4277 = vmatpush1.bf16.msra.mxu0 0
      %4278 = vmatprep.subr.bf16.mxu0 0
      %4279 = vmatpush1.bf16.msra.mxu0 0
      %4280 = vmatprep.subr.bf16.mxu0 0
      %4281 = vmatpush1.bf16.msra.mxu0 0
      %4282 = vmatprep.subr.bf16.mxu0 0
      %4283 = vmatpush1.bf16.msra.mxu0 0
      %4284 = vmatprep.subr.bf16.mxu0 0
      %4285 = vmatpush1.bf16.msra.mxu0 0
      %4286 = vmatprep.subr.bf16.mxu0 0
      %4287 = vmatpush1.bf16.msra.mxu0 0
      %4288 = vmatprep.mubr.bf16.mxu0 0
      %4289 = vmatmul.mubr.bf16.gmra.mrb[0].mxu0 %v4245
      %v4290 = vpop.f32.mrb[0].mxu0
      %v4291 = vadd.f32 0.0, %v4290
      %v4292 = vpop.f32.mrb[0].mxu0
      %v4293 = vpop.f32.mrb[0].mxu0
      %v4294 = vadd.f32 0.0, %v4293
      %v4295 = vpop.f32.mrb[0].mxu0
      %4296 = vmatprep.mubr.bf16.mxu0 0
      %4297 = vmatmul.mubr.bf16.gmra.mrb[0].mxu0 %v4248
      %v4298 = vpop.f32.mrb[0].mxu0
      %v4299 = vadd.f32 0.0, %v4298
      %v4300 = vpop.f32.mrb[0].mxu0
      %v4301 = vpop.f32.mrb[0].mxu0
      %v4302 = vadd.f32 0.0, %v4301
      %v4303 = vpop.f32.mrb[0].mxu0
      %4304 = vmatprep.mubr.bf16.mxu0 0
      %4305 = vmatmul.mubr.bf16.gmra.mrb[0].mxu0 %v4251
      %v4306 = vpop.f32.mrb[0].mxu0
      %v4307 = vadd.f32 0.0, %v4306
      %v4308 = vpop.f32.mrb[0].mxu0
      %v4309 = vpop.f32.mrb[0].mxu0
      %v4310 = vadd.f32 0.0, %v4309
      %v4311 = vpop.f32.mrb[0].mxu0
      %4312 = vmatprep.mubr.bf16.mxu0 0
      %4313 = vmatmul.mubr.bf16.gmra.mrb[0].mxu0 %v4254
      %v4314 = vpop.f32.mrb[0].mxu0
      %v4315 = vadd.f32 0.0, %v4314
      %v4316 = vpop.f32.mrb[0].mxu0
      %v4317 = vpop.f32.mrb[0].mxu0
      %v4318 = vadd.f32 0.0, %v4317
      %v4319 = vpop.f32.mrb[0].mxu0
      %4320 = vdwg.mxu0
      %v4321 = vadd.f32 %v4101, %v4291
      %v4322 = vadd.f32 %v4102, %v4294
      %v4323 = vadd.f32 %v4103, %v4299
      %v4324 = vadd.f32 %v4104, %v4302
      %v4325 = vadd.f32 %v4105, %v4307
      %v4326 = vadd.f32 %v4106, %v4310
      %v4327 = vadd.f32 %v4107, %v4315
      %v4328 = vadd.f32 %v4108, %v4318
      %vm4329 = vcmask 523264
      %v4330 = vsel %vm4329, %v4321, 0.0
      %v4331 = vsel %vm4329, %v4322, 0.0
      %v4332 = vadd.f32 %v4330, %v4331
      %v4333 = vsel %vm4329, %v4323, 0.0
      %v4334 = vadd.f32 %v4332, %v4333
      %v4335 = vsel %vm4329, %v4324, 0.0
      %v4336 = vadd.f32 %v4334, %v4335
      %v4337 = vsel %vm4329, %v4325, 0.0
      %v4338 = vadd.f32 %v4336, %v4337
      %v4339 = vsel %vm4329, %v4326, 0.0
      %v4340 = vadd.f32 %v4338, %v4339
      %v4341 = vsel %vm4329, %v4327, 0.0
      %v4342 = vadd.f32 %v4340, %v4341
      %v4343 = vsel %vm4329, %v4328, 0.0
      %v4344 = vadd.f32 %v4342, %v4343
      %v4345 = vrot.slane %v4344, 4
      %v4346 = vadd.f32 %v4344, %v4345
      %v4347 = vrot.slane %v4346, 2
      %v4348 = vadd.f32 %v4346, %v4347
      %v4349 = vrot.slane %v4348, 1
      %v4350 = vadd.f32 %v4348, %v4349
      %v4351 = vrcp.pop 64.0
      %v4352 = vmul.f32 %v4350, %v4351
      %v4353 = vsub.f32 %v4321, %v4352
      %v4354 = vsub.f32 %v4322, %v4352
      %v4355 = vsub.f32 %v4323, %v4352
      %v4356 = vsub.f32 %v4324, %v4352
      %v4357 = vsub.f32 %v4325, %v4352
      %v4358 = vsub.f32 %v4326, %v4352
      %v4359 = vsub.f32 %v4327, %v4352
      %v4360 = vsub.f32 %v4328, %v4352
      %v4361 = vmul.f32 %v4353, %v4353
      %v4362 = vmul.f32 %v4354, %v4354
      %v4363 = vmul.f32 %v4355, %v4355
      %v4364 = vmul.f32 %v4356, %v4356
      %v4365 = vmul.f32 %v4357, %v4357
      %v4366 = vmul.f32 %v4358, %v4358
      %v4367 = vmul.f32 %v4359, %v4359
      %v4368 = vmul.f32 %v4360, %v4360
      %v4369 = vsel %vm4329, %v4361, 0.0
      %v4370 = vsel %vm4329, %v4362, 0.0
      %v4371 = vadd.f32 %v4369, %v4370
      %v4372 = vsel %vm4329, %v4363, 0.0
      %v4373 = vadd.f32 %v4371, %v4372
      %v4374 = vsel %vm4329, %v4364, 0.0
      %v4375 = vadd.f32 %v4373, %v4374
      %v4376 = vsel %vm4329, %v4365, 0.0
      %v4377 = vadd.f32 %v4375, %v4376
      %v4378 = vsel %vm4329, %v4366, 0.0
      %v4379 = vadd.f32 %v4377, %v4378
      %v4380 = vsel %vm4329, %v4367, 0.0
      %v4381 = vadd.f32 %v4379, %v4380
      %v4382 = vsel %vm4329, %v4368, 0.0
      %v4383 = vadd.f32 %v4381, %v4382
      %v4384 = vrot.slane %v4383, 4
      %v4385 = vadd.f32 %v4383, %v4384
      %v4386 = vrot.slane %v4385, 2
      %v4387 = vadd.f32 %v4385, %v4386
      %v4388 = vrot.slane %v4387, 1
      %v4389 = vadd.f32 %v4387, %v4388
      %v4390 = vmul.f32 %v4389, %v4351
      %v4391 = vadd.f32 %v4390, 1e-05
      %v4392 = vrsqrt.pop %v4391
      %v4393 = vmul.f32 %v4353, %v4392
      %v4394 = vmul.f32 %v4354, %v4392
      %v4395 = vmul.f32 %v4355, %v4392
      %v4396 = vmul.f32 %v4356, %v4392
      %v4397 = vmul.f32 %v4357, %v4392
      %v4398 = vmul.f32 %v4358, %v4392
      %v4399 = vmul.f32 %v4359, %v4392
      %v4400 = vmul.f32 %v4360, %v4392
      %v4401 = vld [vmem:[%s4] sm:$0x1]
      %v4403 = vlaneseq
      %v4404 = vshrl.u32 %v4403, 7
      %v4405 = vsub.s32 0, %v4404
      %v4406 = vrot.slane %v4401, %v4405
      %v4408 = vmul.f32 %v4393, %v4406
      %v4409 = vmul.f32 %v4394, %v4406
      %v4410 = vmul.f32 %v4395, %v4406
      %v4411 = vmul.f32 %v4396, %v4406
      %v4412 = vmul.f32 %v4397, %v4406
      %v4413 = vmul.f32 %v4398, %v4406
      %v4414 = vmul.f32 %v4399, %v4406
      %v4415 = vmul.f32 %v4400, %v4406
      %v4416 = vld [vmem:[%s5] sm:$0x1]
      %v4418 = vlaneseq
      %v4419 = vshrl.u32 %v4418, 7
      %v4420 = vsub.s32 0, %v4419
      %v4421 = vrot.slane %v4416, %v4420
      %v4423 = vadd.f32 %v4408, %v4421
      %v4424 = vadd.f32 %v4409, %v4421
      %v4425 = vadd.f32 %v4410, %v4421
      %v4426 = vadd.f32 %v4411, %v4421
      %v4427 = vadd.f32 %v4412, %v4421
      %v4428 = vadd.f32 %v4413, %v4421
      %v4429 = vadd.f32 %v4414, %v4421
      %v4430 = vadd.f32 %v4415, %v4421
      %vm4431 = vcmp.ge.f32.partialorder %v4423, 0.0
      %vm4432 = vcmp.ge.f32.partialorder %v4424, 0.0
      %vm4433 = vcmp.ge.f32.partialorder %v4425, 0.0
      %vm4434 = vcmp.ge.f32.partialorder %v4426, 0.0
      %vm4435 = vcmp.ge.f32.partialorder %v4427, 0.0
      %vm4436 = vcmp.ge.f32.partialorder %v4428, 0.0
      %vm4437 = vcmp.ge.f32.partialorder %v4429, 0.0
      %vm4438 = vcmp.ge.f32.partialorder %v4430, 0.0
      %v4439 = vmul.f32 %v4423, 0.2
      %v4440 = vmul.f32 %v4424, 0.2
      %v4441 = vmul.f32 %v4425, 0.2
      %v4442 = vmul.f32 %v4426, 0.2
      %v4443 = vmul.f32 %v4427, 0.2
      %v4444 = vmul.f32 %v4428, 0.2
      %v4445 = vmul.f32 %v4429, 0.2
      %v4446 = vmul.f32 %v4430, 0.2
      %v4447 = vsel %vm4431, %v4423, %v4439
      %v4448 = vsel %vm4432, %v4424, %v4440
      %v4449 = vsel %vm4433, %v4425, %v4441
      %v4450 = vsel %vm4434, %v4426, %v4442
      %v4451 = vsel %vm4435, %v4427, %v4443
      %v4452 = vsel %vm4436, %v4428, %v4444
      %v4453 = vsel %vm4437, %v4429, %v4445
      %v4454 = vsel %vm4438, %v4430, %v4446
      %v4455 = vpack.c.bf16 %v4448, %v4447
      %v4456 = vpack.c.bf16 %v4450, %v4449
      %v4457 = vpack.c.bf16 %v4452, %v4451
      %v4458 = vpack.c.bf16 %v4454, %v4453
      %v4459 = vld [vmem:[%s6] sm:$0xf]
      %v4460 = vld [vmem:[%s6 + $0x4] sm:$0xf]
      %v4463 = vunpack.c.l.b16 %v4459
      %v4464 = vunpack.c.l.b16 %v4460
      %v4465 = vpack.c.b16 %v4464, %v4463
      %v4467 = vsel %vm4329, %v4465, 0
      %4469 = vmatprep.subr.bf16.mxu0 0
      %4470 = vmatpush1.bf16.msra.mxu0 %v4455
      %4471 = vmatprep.subr.bf16.mxu0 0
      %4472 = vmatpush1.bf16.msra.mxu0 %v4456
      %4473 = vmatprep.subr.bf16.mxu0 0
      %4474 = vmatpush1.bf16.msra.mxu0 %v4457
      %4475 = vmatprep.subr.bf16.mxu0 0
      %4476 = vmatpush1.bf16.msra.mxu0 %v4458
      %4477 = vmatprep.subr.bf16.mxu0 0
      %4478 = vmatpush1.bf16.msra.mxu0 0
      %4479 = vmatprep.subr.bf16.mxu0 0
      %4480 = vmatpush1.bf16.msra.mxu0 0
      %4481 = vmatprep.subr.bf16.mxu0 0
      %4482 = vmatpush1.bf16.msra.mxu0 0
      %4483 = vmatprep.subr.bf16.mxu0 0
      %4484 = vmatpush1.bf16.msra.mxu0 0
      %4485 = vmatprep.subr.bf16.mxu0 0
      %4486 = vmatpush1.bf16.msra.mxu0 0
      %4487 = vmatprep.subr.bf16.mxu0 0
      %4488 = vmatpush1.bf16.msra.mxu0 0
      %4489 = vmatprep.subr.bf16.mxu0 0
      %4490 = vmatpush1.bf16.msra.mxu0 0
      %4491 = vmatprep.subr.bf16.mxu0 0
      %4492 = vmatpush1.bf16.msra.mxu0 0
      %4493 = vmatprep.subr.bf16.mxu0 0
      %4494 = vmatpush1.bf16.msra.mxu0 0
      %4495 = vmatprep.subr.bf16.mxu0 0
      %4496 = vmatpush1.bf16.msra.mxu0 0
      %4497 = vmatprep.subr.bf16.mxu0 0
      %4498 = vmatpush1.bf16.msra.mxu0 0
      %4499 = vmatprep.subr.bf16.mxu0 0
      %4500 = vmatpush1.bf16.msra.mxu0 0
      %4501 = vmatprep.mubr.bf16.mxu0 0
      %4502 = vmatmul.mubr.bf16.gmra.mrb[0].mxu0 %v4467
      %v4503 = vpop.f32.mrb[0].mxu0
      %v4504 = vadd.f32 0.0, %v4503
      %v4505 = vpop.f32.mrb[0].mxu0
      %v4506 = vpop.f32.mrb[0].mxu0
      %v4507 = vadd.f32 0.0, %v4506
      %v4508 = vpop.f32.mrb[0].mxu0
      %4509 = vdwg.mxu0
      %v4510 = vpack.c.bf16 %v4507, %v4504
      %v4511 = vld [vmem:[%s7] sm:$0xf]
      %v4512 = vld [vmem:[%s7 + $0x4] sm:$0xf]
      %v4513 = vld [vmem:[%s7 + $0x8] sm:$0xf]
      %v4514 = vld [vmem:[%s7 + $0xc] sm:$0xf]
      %v4515 = vld [vmem:[%s7 + $0x10] sm:$0xf]
      %v4516 = vld [vmem:[%s7 + $0x14] sm:$0xf]
      %v4517 = vld [vmem:[%s7 + $0x18] sm:$0xf]
      %v4518 = vld [vmem:[%s7 + $0x1c] sm:$0xf]
      %s4519 = scalar_lea.vmem %s6, 8
      %v4520 = vld [vmem:[%s4519] sm:$0xf]
      %v4521 = vld [vmem:[%s4519 + $0x4] sm:$0xf]
      %v4524 = vunpack.c.l.b16 %v4520
      %v4525 = vunpack.c.l.b16 %v4521
      %v4526 = vpack.c.b16 %v4525, %v4524
      %v4528 = vsel %vm4329, %v4526, 0
      %4530 = vmatprep.subr.bf16.mxu0 0
      %4531 = vmatpush1.bf16.msra.mxu0 %v4455
      %4532 = vmatprep.subr.bf16.mxu0 0
      %4533 = vmatpush1.bf16.msra.mxu0 %v4456
      %4534 = vmatprep.subr.bf16.mxu0 0
      %4535 = vmatpush1.bf16.msra.mxu0 %v4457
      %4536 = vmatprep.subr.bf16.mxu0 0
      %4537 = vmatpush1.bf16.msra.mxu0 %v4458
      %4538 = vmatprep.subr.bf16.mxu0 0
      %4539 = vmatpush1.bf16.msra.mxu0 0
      %4540 = vmatprep.subr.bf16.mxu0 0
      %4541 = vmatpush1.bf16.msra.mxu0 0
      %4542 = vmatprep.subr.bf16.mxu0 0
      %4543 = vmatpush1.bf16.msra.mxu0 0
      %4544 = vmatprep.subr.bf16.mxu0 0
      %4545 = vmatpush1.bf16.msra.mxu0 0
      %4546 = vmatprep.subr.bf16.mxu0 0
      %4547 = vmatpush1.bf16.msra.mxu0 0
      %4548 = vmatprep.subr.bf16.mxu0 0
      %4549 = vmatpush1.bf16.msra.mxu0 0
      %4550 = vmatprep.subr.bf16.mxu0 0
      %4551 = vmatpush1.bf16.msra.mxu0 0
      %4552 = vmatprep.subr.bf16.mxu0 0
      %4553 = vmatpush1.bf16.msra.mxu0 0
      %4554 = vmatprep.subr.bf16.mxu0 0
      %4555 = vmatpush1.bf16.msra.mxu0 0
      %4556 = vmatprep.subr.bf16.mxu0 0
      %4557 = vmatpush1.bf16.msra.mxu0 0
      %4558 = vmatprep.subr.bf16.mxu0 0
      %4559 = vmatpush1.bf16.msra.mxu0 0
      %4560 = vmatprep.subr.bf16.mxu0 0
      %4561 = vmatpush1.bf16.msra.mxu0 0
      %4562 = vmatprep.mubr.bf16.mxu0 0
      %4563 = vmatmul.mubr.bf16.gmra.mrb[0].mxu0 %v4528
      %v4564 = vpop.f32.mrb[0].mxu0
      %v4565 = vadd.f32 0.0, %v4564
      %v4566 = vpop.f32.mrb[0].mxu0
      %v4567 = vpop.f32.mrb[0].mxu0
      %v4568 = vadd.f32 0.0, %v4567
      %v4569 = vpop.f32.mrb[0].mxu0
      %4570 = vdwg.mxu0
      %v4571 = vpack.c.bf16 %v4568, %v4565
      %s4572 = scalar_lea.vmem %s7, 32
      %v4573 = vld [vmem:[%s4572] sm:$0xf]
      %v4574 = vld [vmem:[%s4572 + $0x4] sm:$0xf]
      %v4575 = vld [vmem:[%s4572 + $0x8] sm:$0xf]
      %v4576 = vld [vmem:[%s4572 + $0xc] sm:$0xf]
      %v4577 = vld [vmem:[%s4572 + $0x10] sm:$0xf]
      %v4578 = vld [vmem:[%s4572 + $0x14] sm:$0xf]
      %v4579 = vld [vmem:[%s4572 + $0x18] sm:$0xf]
      %v4580 = vld [vmem:[%s4572 + $0x1c] sm:$0xf]
      %v4589 = vunpack.c.l.b16 %v4573
      %v4590 = vunpack.c.l.b16 %v4574
      %v4591 = vunpack.c.l.b16 %v4575
      %v4592 = vunpack.c.l.b16 %v4576
      %v4593 = vunpack.c.l.b16 %v4577
      %v4594 = vunpack.c.l.b16 %v4578
      %v4595 = vunpack.c.l.b16 %v4579
      %v4596 = vunpack.c.l.b16 %v4580
      %v4597 = vpack.c.b16 %v4590, %v4589
      %v4598 = vpack.c.b16 %v4592, %v4591
      %v4599 = vpack.c.b16 %v4594, %v4593
      %v4600 = vpack.c.b16 %v4596, %v4595
      %v4606 = vsel %vm4329, %v4571, 0
      %4608 = vmatprep.subr.bf16.mxu0 0
      %4609 = vmatpush1.bf16.msra.mxu0 %v4597
      %4610 = vmatprep.subr.bf16.mxu0 0
      %4611 = vmatpush1.bf16.msra.mxu0 %v4598
      %4612 = vmatprep.subr.bf16.mxu0 0
      %4613 = vmatpush1.bf16.msra.mxu0 %v4599
      %4614 = vmatprep.subr.bf16.mxu0 0
      %4615 = vmatpush1.bf16.msra.mxu0 %v4600
      %4616 = vmatprep.subr.bf16.mxu0 0
      %4617 = vmatpush1.bf16.msra.mxu0 0
      %4618 = vmatprep.subr.bf16.mxu0 0
      %4619 = vmatpush1.bf16.msra.mxu0 0
      %4620 = vmatprep.subr.bf16.mxu0 0
      %4621 = vmatpush1.bf16.msra.mxu0 0
      %4622 = vmatprep.subr.bf16.mxu0 0
      %4623 = vmatpush1.bf16.msra.mxu0 0
      %4624 = vmatprep.subr.bf16.mxu0 0
      %4625 = vmatpush1.bf16.msra.mxu0 0
      %4626 = vmatprep.subr.bf16.mxu0 0
      %4627 = vmatpush1.bf16.msra.mxu0 0
      %4628 = vmatprep.subr.bf16.mxu0 0
      %4629 = vmatpush1.bf16.msra.mxu0 0
      %4630 = vmatprep.subr.bf16.mxu0 0
      %4631 = vmatpush1.bf16.msra.mxu0 0
      %4632 = vmatprep.subr.bf16.mxu0 0
      %4633 = vmatpush1.bf16.msra.mxu0 0
      %4634 = vmatprep.subr.bf16.mxu0 0
      %4635 = vmatpush1.bf16.msra.mxu0 0
      %4636 = vmatprep.subr.bf16.mxu0 0
      %4637 = vmatpush1.bf16.msra.mxu0 0
      %4638 = vmatprep.subr.bf16.mxu0 0
      %4639 = vmatpush1.bf16.msra.mxu0 0
      %4640 = vmatprep.mubr.bf16.mxu0 0
      %4641 = vmatmul.mubr.bf16.gmra.mrb[0].mxu0 %v4606
      %v4642 = vpop.f32.mrb[0].mxu0
      %v4643 = vadd.f32 0.0, %v4642
      %v4644 = vpop.f32.mrb[0].mxu0
      %v4645 = vpop.f32.mrb[0].mxu0
      %v4646 = vadd.f32 0.0, %v4645
      %v4647 = vpop.f32.mrb[0].mxu0
      %4648 = vdwg.mxu0
      %v4657 = vunpack.c.l.b16 %v4511
      %v4658 = vunpack.c.l.b16 %v4512
      %v4659 = vunpack.c.l.b16 %v4513
      %v4660 = vunpack.c.l.b16 %v4514
      %v4661 = vunpack.c.l.b16 %v4515
      %v4662 = vunpack.c.l.b16 %v4516
      %v4663 = vunpack.c.l.b16 %v4517
      %v4664 = vunpack.c.l.b16 %v4518
      %v4665 = vpack.c.b16 %v4658, %v4657
      %v4666 = vpack.c.b16 %v4660, %v4659
      %v4667 = vpack.c.b16 %v4662, %v4661
      %v4668 = vpack.c.b16 %v4664, %v4663
      %v4674 = vsel %vm4329, %v4510, 0
      %4676 = vmatprep.subr.bf16.mxu0 0
      %4677 = vmatpush1.bf16.msra.mxu0 %v4665
      %4678 = vmatprep.subr.bf16.mxu0 0
      %4679 = vmatpush1.bf16.msra.mxu0 %v4666
      %4680 = vmatprep.subr.bf16.mxu0 0
      %4681 = vmatpush1.bf16.msra.mxu0 %v4667
      %4682 = vmatprep.subr.bf16.mxu0 0
      %4683 = vmatpush1.bf16.msra.mxu0 %v4668
      %4684 = vmatprep.subr.bf16.mxu0 0
      %4685 = vmatpush1.bf16.msra.mxu0 0
      %4686 = vmatprep.subr.bf16.mxu0 0
      %4687 = vmatpush1.bf16.msra.mxu0 0
      %4688 = vmatprep.subr.bf16.mxu0 0
      %4689 = vmatpush1.bf16.msra.mxu0 0
      %4690 = vmatprep.subr.bf16.mxu0 0
      %4691 = vmatpush1.bf16.msra.mxu0 0
      %4692 = vmatprep.subr.bf16.mxu0 0
      %4693 = vmatpush1.bf16.msra.mxu0 0
      %4694 = vmatprep.subr.bf16.mxu0 0
      %4695 = vmatpush1.bf16.msra.mxu0 0
      %4696 = vmatprep.subr.bf16.mxu0 0
      %4697 = vmatpush1.bf16.msra.mxu0 0
      %4698 = vmatprep.subr.bf16.mxu0 0
      %4699 = vmatpush1.bf16.msra.mxu0 0
      %4700 = vmatprep.subr.bf16.mxu0 0
      %4701 = vmatpush1.bf16.msra.mxu0 0
      %4702 = vmatprep.subr.bf16.mxu0 0
      %4703 = vmatpush1.bf16.msra.mxu0 0
      %4704 = vmatprep.subr.bf16.mxu0 0
      %4705 = vmatpush1.bf16.msra.mxu0 0
      %4706 = vmatprep.subr.bf16.mxu0 0
      %4707 = vmatpush1.bf16.msra.mxu0 0
      %4708 = vmatprep.mubr.bf16.mxu0 0
      %4709 = vmatmul.mubr.bf16.gmra.mrb[0].mxu0 %v4674
      %v4710 = vpop.f32.mrb[0].mxu0
      %v4711 = vadd.f32 %v4643, %v4710
      %v4712 = vpop.f32.mrb[0].mxu0
      %v4713 = vpop.f32.mrb[0].mxu0
      %v4714 = vadd.f32 %v4646, %v4713
      %v4715 = vpop.f32.mrb[0].mxu0
      %4716 = vdwg.mxu0
      %s4717 = scalar_lea.vmem %s6, 16
      %v4718 = vld [vmem:[%s4717] sm:$0xf]
      %v4719 = vld [vmem:[%s4717 + $0x4] sm:$0xf]
      %v4722 = vunpack.c.l.b16 %v4718
      %v4723 = vunpack.c.l.b16 %v4719
      %v4724 = vpack.c.b16 %v4723, %v4722
      %v4726 = vsel %vm4329, %v4724, 0
      %4728 = vmatprep.subr.bf16.mxu0 0
      %4729 = vmatpush1.bf16.msra.mxu0 %v4455
      %4730 = vmatprep.subr.bf16.mxu0 0
      %4731 = vmatpush1.bf16.msra.mxu0 %v4456
      %4732 = vmatprep.subr.bf16.mxu0 0
      %4733 = vmatpush1.bf16.msra.mxu0 %v4457
      %4734 = vmatprep.subr.bf16.mxu0 0
      %4735 = vmatpush1.bf16.msra.mxu0 %v4458
      %4736 = vmatprep.subr.bf16.mxu0 0
      %4737 = vmatpush1.bf16.msra.mxu0 0
      %4738 = vmatprep.subr.bf16.mxu0 0
      %4739 = vmatpush1.bf16.msra.mxu0 0
      %4740 = vmatprep.subr.bf16.mxu0 0
      %4741 = vmatpush1.bf16.msra.mxu0 0
      %4742 = vmatprep.subr.bf16.mxu0 0
      %4743 = vmatpush1.bf16.msra.mxu0 0
      %4744 = vmatprep.subr.bf16.mxu0 0
      %4745 = vmatpush1.bf16.msra.mxu0 0
      %4746 = vmatprep.subr.bf16.mxu0 0
      %4747 = vmatpush1.bf16.msra.mxu0 0
      %4748 = vmatprep.subr.bf16.mxu0 0
      %4749 = vmatpush1.bf16.msra.mxu0 0
      %4750 = vmatprep.subr.bf16.mxu0 0
      %4751 = vmatpush1.bf16.msra.mxu0 0
      %4752 = vmatprep.subr.bf16.mxu0 0
      %4753 = vmatpush1.bf16.msra.mxu0 0
      %4754 = vmatprep.subr.bf16.mxu0 0
      %4755 = vmatpush1.bf16.msra.mxu0 0
      %4756 = vmatprep.subr.bf16.mxu0 0
      %4757 = vmatpush1.bf16.msra.mxu0 0
      %4758 = vmatprep.subr.bf16.mxu0 0
      %4759 = vmatpush1.bf16.msra.mxu0 0
      %4760 = vmatprep.mubr.bf16.mxu0 0
      %4761 = vmatmul.mubr.bf16.gmra.mrb[0].mxu0 %v4726
      %v4762 = vpop.f32.mrb[0].mxu0
      %v4763 = vadd.f32 0.0, %v4762
      %v4764 = vpop.f32.mrb[0].mxu0
      %v4765 = vpop.f32.mrb[0].mxu0
      %v4766 = vadd.f32 0.0, %v4765
      %v4767 = vpop.f32.mrb[0].mxu0
      %4768 = vdwg.mxu0
      %v4769 = vpack.c.bf16 %v4766, %v4763
      %s4770 = scalar_lea.vmem %s7, 64
      %v4771 = vld [vmem:[%s4770] sm:$0xf]
      %v4772 = vld [vmem:[%s4770 + $0x4] sm:$0xf]
      %v4773 = vld [vmem:[%s4770 + $0x8] sm:$0xf]
      %v4774 = vld [vmem:[%s4770 + $0xc] sm:$0xf]
      %v4775 = vld [vmem:[%s4770 + $0x10] sm:$0xf]
      %v4776 = vld [vmem:[%s4770 + $0x14] sm:$0xf]
      %v4777 = vld [vmem:[%s4770 + $0x18] sm:$0xf]
      %v4778 = vld [vmem:[%s4770 + $0x1c] sm:$0xf]
      %v4787 = vunpack.c.l.b16 %v4771
      %v4788 = vunpack.c.l.b16 %v4772
      %v4789 = vunpack.c.l.b16 %v4773
      %v4790 = vunpack.c.l.b16 %v4774
      %v4791 = vunpack.c.l.b16 %v4775
      %v4792 = vunpack.c.l.b16 %v4776
      %v4793 = vunpack.c.l.b16 %v4777
      %v4794 = vunpack.c.l.b16 %v4778
      %v4795 = vpack.c.b16 %v4788, %v4787
      %v4796 = vpack.c.b16 %v4790, %v4789
      %v4797 = vpack.c.b16 %v4792, %v4791
      %v4798 = vpack.c.b16 %v4794, %v4793
      %v4804 = vsel %vm4329, %v4769, 0
      %4806 = vmatprep.subr.bf16.mxu0 0
      %4807 = vmatpush1.bf16.msra.mxu0 %v4795
      %4808 = vmatprep.subr.bf16.mxu0 0
      %4809 = vmatpush1.bf16.msra.mxu0 %v4796
      %4810 = vmatprep.subr.bf16.mxu0 0
      %4811 = vmatpush1.bf16.msra.mxu0 %v4797
      %4812 = vmatprep.subr.bf16.mxu0 0
      %4813 = vmatpush1.bf16.msra.mxu0 %v4798
      %4814 = vmatprep.subr.bf16.mxu0 0
      %4815 = vmatpush1.bf16.msra.mxu0 0
      %4816 = vmatprep.subr.bf16.mxu0 0
      %4817 = vmatpush1.bf16.msra.mxu0 0
      %4818 = vmatprep.subr.bf16.mxu0 0
      %4819 = vmatpush1.bf16.msra.mxu0 0
      %4820 = vmatprep.subr.bf16.mxu0 0
      %4821 = vmatpush1.bf16.msra.mxu0 0
      %4822 = vmatprep.subr.bf16.mxu0 0
      %4823 = vmatpush1.bf16.msra.mxu0 0
      %4824 = vmatprep.subr.bf16.mxu0 0
      %4825 = vmatpush1.bf16.msra.mxu0 0
      %4826 = vmatprep.subr.bf16.mxu0 0
      %4827 = vmatpush1.bf16.msra.mxu0 0
      %4828 = vmatprep.subr.bf16.mxu0 0
      %4829 = vmatpush1.bf16.msra.mxu0 0
      %4830 = vmatprep.subr.bf16.mxu0 0
      %4831 = vmatpush1.bf16.msra.mxu0 0
      %4832 = vmatprep.subr.bf16.mxu0 0
      %4833 = vmatpush1.bf16.msra.mxu0 0
      %4834 = vmatprep.subr.bf16.mxu0 0
      %4835 = vmatpush1.bf16.msra.mxu0 0
      %4836 = vmatprep.subr.bf16.mxu0 0
      %4837 = vmatpush1.bf16.msra.mxu0 0
      %4838 = vmatprep.mubr.bf16.mxu0 0
      %4839 = vmatmul.mubr.bf16.gmra.mrb[0].mxu0 %v4804
      %v4840 = vpop.f32.mrb[0].mxu0
      %v4841 = vadd.f32 0.0, %v4840
      %v4842 = vpop.f32.mrb[0].mxu0
      %v4843 = vpop.f32.mrb[0].mxu0
      %v4844 = vadd.f32 0.0, %v4843
      %v4845 = vpop.f32.mrb[0].mxu0
      %4846 = vdwg.mxu0
      %v4847 = vadd.f32 %v4711, %v4841
      %v4848 = vadd.f32 %v4714, %v4844
      %s4849 = scalar_lea.vmem %s6, 24
      %v4850 = vld [vmem:[%s4849] sm:$0xf]
      %v4851 = vld [vmem:[%s4849 + $0x4] sm:$0xf]
      %v4854 = vunpack.c.l.b16 %v4850
      %v4855 = vunpack.c.l.b16 %v4851
      %v4856 = vpack.c.b16 %v4855, %v4854
      %v4858 = vsel %vm4329, %v4856, 0
      %4860 = vmatprep.subr.bf16.mxu0 0
      %4861 = vmatpush1.bf16.msra.mxu0 %v4455
      %4862 = vmatprep.subr.bf16.mxu0 0
      %4863 = vmatpush1.bf16.msra.mxu0 %v4456
      %4864 = vmatprep.subr.bf16.mxu0 0
      %4865 = vmatpush1.bf16.msra.mxu0 %v4457
      %4866 = vmatprep.subr.bf16.mxu0 0
      %4867 = vmatpush1.bf16.msra.mxu0 %v4458
      %4868 = vmatprep.subr.bf16.mxu0 0
      %4869 = vmatpush1.bf16.msra.mxu0 0
      %4870 = vmatprep.subr.bf16.mxu0 0
      %4871 = vmatpush1.bf16.msra.mxu0 0
      %4872 = vmatprep.subr.bf16.mxu0 0
      %4873 = vmatpush1.bf16.msra.mxu0 0
      %4874 = vmatprep.subr.bf16.mxu0 0
      %4875 = vmatpush1.bf16.msra.mxu0 0
      %4876 = vmatprep.subr.bf16.mxu0 0
      %4877 = vmatpush1.bf16.msra.mxu0 0
      %4878 = vmatprep.subr.bf16.mxu0 0
      %4879 = vmatpush1.bf16.msra.mxu0 0
      %4880 = vmatprep.subr.bf16.mxu0 0
      %4881 = vmatpush1.bf16.msra.mxu0 0
      %4882 = vmatprep.subr.bf16.mxu0 0
      %4883 = vmatpush1.bf16.msra.mxu0 0
      %4884 = vmatprep.subr.bf16.mxu0 0
      %4885 = vmatpush1.bf16.msra.mxu0 0
      %4886 = vmatprep.subr.bf16.mxu0 0
      %4887 = vmatpush1.bf16.msra.mxu0 0
      %4888 = vmatprep.subr.bf16.mxu0 0
      %4889 = vmatpush1.bf16.msra.mxu0 0
      %4890 = vmatprep.subr.bf16.mxu0 0
      %4891 = vmatpush1.bf16.msra.mxu0 0
      %4892 = vmatprep.mubr.bf16.mxu0 0
      %4893 = vmatmul.mubr.bf16.gmra.mrb[0].mxu0 %v4858
      %v4894 = vpop.f32.mrb[0].mxu0
      %v4895 = vadd.f32 0.0, %v4894
      %v4896 = vpop.f32.mrb[0].mxu0
      %v4897 = vpop.f32.mrb[0].mxu0
      %v4898 = vadd.f32 0.0, %v4897
      %v4899 = vpop.f32.mrb[0].mxu0
      %4900 = vdwg.mxu0
      %v4901 = vpack.c.bf16 %v4898, %v4895
      %s4902 = scalar_lea.vmem %s7, 96
      %v4903 = vld [vmem:[%s4902] sm:$0xf]
      %v4904 = vld [vmem:[%s4902 + $0x4] sm:$0xf]
      %v4905 = vld [vmem:[%s4902 + $0x8] sm:$0xf]
      %v4906 = vld [vmem:[%s4902 + $0xc] sm:$0xf]
      %v4907 = vld [vmem:[%s4902 + $0x10] sm:$0xf]
      %v4908 = vld [vmem:[%s4902 + $0x14] sm:$0xf]
      %v4909 = vld [vmem:[%s4902 + $0x18] sm:$0xf]
      %v4910 = vld [vmem:[%s4902 + $0x1c] sm:$0xf]
      %v4919 = vunpack.c.l.b16 %v4903
      %v4920 = vunpack.c.l.b16 %v4904
      %v4921 = vunpack.c.l.b16 %v4905
      %v4922 = vunpack.c.l.b16 %v4906
      %v4923 = vunpack.c.l.b16 %v4907
      %v4924 = vunpack.c.l.b16 %v4908
      %v4925 = vunpack.c.l.b16 %v4909
      %v4926 = vunpack.c.l.b16 %v4910
      %v4927 = vpack.c.b16 %v4920, %v4919
      %v4928 = vpack.c.b16 %v4922, %v4921
      %v4929 = vpack.c.b16 %v4924, %v4923
      %v4930 = vpack.c.b16 %v4926, %v4925
      %v4936 = vsel %vm4329, %v4901, 0
      %4938 = vmatprep.subr.bf16.mxu0 0
      %4939 = vmatpush1.bf16.msra.mxu0 %v4927
      %4940 = vmatprep.subr.bf16.mxu0 0
      %4941 = vmatpush1.bf16.msra.mxu0 %v4928
      %4942 = vmatprep.subr.bf16.mxu0 0
      %4943 = vmatpush1.bf16.msra.mxu0 %v4929
      %4944 = vmatprep.subr.bf16.mxu0 0
      %4945 = vmatpush1.bf16.msra.mxu0 %v4930
      %4946 = vmatprep.subr.bf16.mxu0 0
      %4947 = vmatpush1.bf16.msra.mxu0 0
      %4948 = vmatprep.subr.bf16.mxu0 0
      %4949 = vmatpush1.bf16.msra.mxu0 0
      %4950 = vmatprep.subr.bf16.mxu0 0
      %4951 = vmatpush1.bf16.msra.mxu0 0
      %4952 = vmatprep.subr.bf16.mxu0 0
      %4953 = vmatpush1.bf16.msra.mxu0 0
      %4954 = vmatprep.subr.bf16.mxu0 0
      %4955 = vmatpush1.bf16.msra.mxu0 0
      %4956 = vmatprep.subr.bf16.mxu0 0
      %4957 = vmatpush1.bf16.msra.mxu0 0
      %4958 = vmatprep.subr.bf16.mxu0 0
      %4959 = vmatpush1.bf16.msra.mxu0 0
      %4960 = vmatprep.subr.bf16.mxu0 0
      %4961 = vmatpush1.bf16.msra.mxu0 0
      %4962 = vmatprep.subr.bf16.mxu0 0
      %4963 = vmatpush1.bf16.msra.mxu0 0
      %4964 = vmatprep.subr.bf16.mxu0 0
      %4965 = vmatpush1.bf16.msra.mxu0 0
      %4966 = vmatprep.subr.bf16.mxu0 0
      %4967 = vmatpush1.bf16.msra.mxu0 0
      %4968 = vmatprep.subr.bf16.mxu0 0
      %4969 = vmatpush1.bf16.msra.mxu0 0
      %4970 = vmatprep.mubr.bf16.mxu0 0
      %4971 = vmatmul.mubr.bf16.gmra.mrb[0].mxu0 %v4936
      %v4972 = vpop.f32.mrb[0].mxu0
      %v4973 = vadd.f32 0.0, %v4972
      %v4974 = vpop.f32.mrb[0].mxu0
      %v4975 = vpop.f32.mrb[0].mxu0
      %v4976 = vadd.f32 0.0, %v4975
      %v4977 = vpop.f32.mrb[0].mxu0
      %4978 = vdwg.mxu0
      %v4979 = vadd.f32 %v4847, %v4973
      %v4980 = vadd.f32 %v4848, %v4976
      %s4981 = scalar_lea.vmem %s6, 32
      %v4982 = vld [vmem:[%s4981] sm:$0xf]
      %v4983 = vld [vmem:[%s4981 + $0x4] sm:$0xf]
      %v4986 = vunpack.c.l.b16 %v4982
      %v4987 = vunpack.c.l.b16 %v4983
      %v4988 = vpack.c.b16 %v4987, %v4986
      %v4990 = vsel %vm4329, %v4988, 0
      %4992 = vmatprep.subr.bf16.mxu0 0
      %4993 = vmatpush1.bf16.msra.mxu0 %v4455
      %4994 = vmatprep.subr.bf16.mxu0 0
      %4995 = vmatpush1.bf16.msra.mxu0 %v4456
      %4996 = vmatprep.subr.bf16.mxu0 0
      %4997 = vmatpush1.bf16.msra.mxu0 %v4457
      %4998 = vmatprep.subr.bf16.mxu0 0
      %4999 = vmatpush1.bf16.msra.mxu0 %v4458
      %5000 = vmatprep.subr.bf16.mxu0 0
      %5001 = vmatpush1.bf16.msra.mxu0 0
      %5002 = vmatprep.subr.bf16.mxu0 0
      %5003 = vmatpush1.bf16.msra.mxu0 0
      %5004 = vmatprep.subr.bf16.mxu0 0
      %5005 = vmatpush1.bf16.msra.mxu0 0
      %5006 = vmatprep.subr.bf16.mxu0 0
      %5007 = vmatpush1.bf16.msra.mxu0 0
      %5008 = vmatprep.subr.bf16.mxu0 0
      %5009 = vmatpush1.bf16.msra.mxu0 0
      %5010 = vmatprep.subr.bf16.mxu0 0
      %5011 = vmatpush1.bf16.msra.mxu0 0
      %5012 = vmatprep.subr.bf16.mxu0 0
      %5013 = vmatpush1.bf16.msra.mxu0 0
      %5014 = vmatprep.subr.bf16.mxu0 0
      %5015 = vmatpush1.bf16.msra.mxu0 0
      %5016 = vmatprep.subr.bf16.mxu0 0
      %5017 = vmatpush1.bf16.msra.mxu0 0
      %5018 = vmatprep.subr.bf16.mxu0 0
      %5019 = vmatpush1.bf16.msra.mxu0 0
      %5020 = vmatprep.subr.bf16.mxu0 0
      %5021 = vmatpush1.bf16.msra.mxu0 0
      %5022 = vmatprep.subr.bf16.mxu0 0
      %5023 = vmatpush1.bf16.msra.mxu0 0
      %5024 = vmatprep.mubr.bf16.mxu0 0
      %5025 = vmatmul.mubr.bf16.gmra.mrb[0].mxu0 %v4990
      %v5026 = vpop.f32.mrb[0].mxu0
      %v5027 = vadd.f32 0.0, %v5026
      %v5028 = vpop.f32.mrb[0].mxu0
      %v5029 = vpop.f32.mrb[0].mxu0
      %v5030 = vadd.f32 0.0, %v5029
      %v5031 = vpop.f32.mrb[0].mxu0
      %5032 = vdwg.mxu0
      %v5033 = vpack.c.bf16 %v5030, %v5027
      %s5034 = scalar_lea.vmem %s7, 128
      %v5035 = vld [vmem:[%s5034] sm:$0xf]
      %v5036 = vld [vmem:[%s5034 + $0x4] sm:$0xf]
      %v5037 = vld [vmem:[%s5034 + $0x8] sm:$0xf]
      %v5038 = vld [vmem:[%s5034 + $0xc] sm:$0xf]
      %v5039 = vld [vmem:[%s5034 + $0x10] sm:$0xf]
      %v5040 = vld [vmem:[%s5034 + $0x14] sm:$0xf]
      %v5041 = vld [vmem:[%s5034 + $0x18] sm:$0xf]
      %v5042 = vld [vmem:[%s5034 + $0x1c] sm:$0xf]
      %v5051 = vunpack.c.l.b16 %v5035
      %v5052 = vunpack.c.l.b16 %v5036
      %v5053 = vunpack.c.l.b16 %v5037
      %v5054 = vunpack.c.l.b16 %v5038
      %v5055 = vunpack.c.l.b16 %v5039
      %v5056 = vunpack.c.l.b16 %v5040
      %v5057 = vunpack.c.l.b16 %v5041
      %v5058 = vunpack.c.l.b16 %v5042
      %v5059 = vpack.c.b16 %v5052, %v5051
      %v5060 = vpack.c.b16 %v5054, %v5053
      %v5061 = vpack.c.b16 %v5056, %v5055
      %v5062 = vpack.c.b16 %v5058, %v5057
      %v5068 = vsel %vm4329, %v5033, 0
      %5070 = vmatprep.subr.bf16.mxu0 0
      %5071 = vmatpush1.bf16.msra.mxu0 %v5059
      %5072 = vmatprep.subr.bf16.mxu0 0
      %5073 = vmatpush1.bf16.msra.mxu0 %v5060
      %5074 = vmatprep.subr.bf16.mxu0 0
      %5075 = vmatpush1.bf16.msra.mxu0 %v5061
      %5076 = vmatprep.subr.bf16.mxu0 0
      %5077 = vmatpush1.bf16.msra.mxu0 %v5062
      %5078 = vmatprep.subr.bf16.mxu0 0
      %5079 = vmatpush1.bf16.msra.mxu0 0
      %5080 = vmatprep.subr.bf16.mxu0 0
      %5081 = vmatpush1.bf16.msra.mxu0 0
      %5082 = vmatprep.subr.bf16.mxu0 0
      %5083 = vmatpush1.bf16.msra.mxu0 0
      %5084 = vmatprep.subr.bf16.mxu0 0
      %5085 = vmatpush1.bf16.msra.mxu0 0
      %5086 = vmatprep.subr.bf16.mxu0 0
      %5087 = vmatpush1.bf16.msra.mxu0 0
      %5088 = vmatprep.subr.bf16.mxu0 0
      %5089 = vmatpush1.bf16.msra.mxu0 0
      %5090 = vmatprep.subr.bf16.mxu0 0
      %5091 = vmatpush1.bf16.msra.mxu0 0
      %5092 = vmatprep.subr.bf16.mxu0 0
      %5093 = vmatpush1.bf16.msra.mxu0 0
      %5094 = vmatprep.subr.bf16.mxu0 0
      %5095 = vmatpush1.bf16.msra.mxu0 0
      %5096 = vmatprep.subr.bf16.mxu0 0
      %5097 = vmatpush1.bf16.msra.mxu0 0
      %5098 = vmatprep.subr.bf16.mxu0 0
      %5099 = vmatpush1.bf16.msra.mxu0 0
      %5100 = vmatprep.subr.bf16.mxu0 0
      %5101 = vmatpush1.bf16.msra.mxu0 0
      %5102 = vmatprep.mubr.bf16.mxu0 0
      %5103 = vmatmul.mubr.bf16.gmra.mrb[0].mxu0 %v5068
      %v5104 = vpop.f32.mrb[0].mxu0
      %v5105 = vadd.f32 0.0, %v5104
      %v5106 = vpop.f32.mrb[0].mxu0
      %v5107 = vpop.f32.mrb[0].mxu0
      %v5108 = vadd.f32 0.0, %v5107
      %v5109 = vpop.f32.mrb[0].mxu0
      %5110 = vdwg.mxu0
      %v5111 = vadd.f32 %v4979, %v5105
      %v5112 = vadd.f32 %v4980, %v5108
      %s5113 = scalar_lea.vmem %s6, 40
      %v5114 = vld [vmem:[%s5113] sm:$0xf]
      %v5115 = vld [vmem:[%s5113 + $0x4] sm:$0xf]
      %v5118 = vunpack.c.l.b16 %v5114
      %v5119 = vunpack.c.l.b16 %v5115
      %v5120 = vpack.c.b16 %v5119, %v5118
      %v5122 = vsel %vm4329, %v5120, 0
      %5124 = vmatprep.subr.bf16.mxu0 0
      %5125 = vmatpush1.bf16.msra.mxu0 %v4455
      %5126 = vmatprep.subr.bf16.mxu0 0
      %5127 = vmatpush1.bf16.msra.mxu0 %v4456
      %5128 = vmatprep.subr.bf16.mxu0 0
      %5129 = vmatpush1.bf16.msra.mxu0 %v4457
      %5130 = vmatprep.subr.bf16.mxu0 0
      %5131 = vmatpush1.bf16.msra.mxu0 %v4458
      %5132 = vmatprep.subr.bf16.mxu0 0
      %5133 = vmatpush1.bf16.msra.mxu0 0
      %5134 = vmatprep.subr.bf16.mxu0 0
      %5135 = vmatpush1.bf16.msra.mxu0 0
      %5136 = vmatprep.subr.bf16.mxu0 0
      %5137 = vmatpush1.bf16.msra.mxu0 0
      %5138 = vmatprep.subr.bf16.mxu0 0
      %5139 = vmatpush1.bf16.msra.mxu0 0
      %5140 = vmatprep.subr.bf16.mxu0 0
      %5141 = vmatpush1.bf16.msra.mxu0 0
      %5142 = vmatprep.subr.bf16.mxu0 0
      %5143 = vmatpush1.bf16.msra.mxu0 0
      %5144 = vmatprep.subr.bf16.mxu0 0
      %5145 = vmatpush1.bf16.msra.mxu0 0
      %5146 = vmatprep.subr.bf16.mxu0 0
      %5147 = vmatpush1.bf16.msra.mxu0 0
      %5148 = vmatprep.subr.bf16.mxu0 0
      %5149 = vmatpush1.bf16.msra.mxu0 0
      %5150 = vmatprep.subr.bf16.mxu0 0
      %5151 = vmatpush1.bf16.msra.mxu0 0
      %5152 = vmatprep.subr.bf16.mxu0 0
      %5153 = vmatpush1.bf16.msra.mxu0 0
      %5154 = vmatprep.subr.bf16.mxu0 0
      %5155 = vmatpush1.bf16.msra.mxu0 0
      %5156 = vmatprep.mubr.bf16.mxu0 0
      %5157 = vmatmul.mubr.bf16.gmra.mrb[0].mxu0 %v5122
      %v5158 = vpop.f32.mrb[0].mxu0
      %v5159 = vadd.f32 0.0, %v5158
      %v5160 = vpop.f32.mrb[0].mxu0
      %v5161 = vpop.f32.mrb[0].mxu0
      %v5162 = vadd.f32 0.0, %v5161
      %v5163 = vpop.f32.mrb[0].mxu0
      %5164 = vdwg.mxu0
      %v5165 = vpack.c.bf16 %v5162, %v5159
      %s5166 = scalar_lea.vmem %s7, 160
      %v5167 = vld [vmem:[%s5166] sm:$0xf]
      %v5168 = vld [vmem:[%s5166 + $0x4] sm:$0xf]
      %v5169 = vld [vmem:[%s5166 + $0x8] sm:$0xf]
      %v5170 = vld [vmem:[%s5166 + $0xc] sm:$0xf]
      %v5171 = vld [vmem:[%s5166 + $0x10] sm:$0xf]
      %v5172 = vld [vmem:[%s5166 + $0x14] sm:$0xf]
      %v5173 = vld [vmem:[%s5166 + $0x18] sm:$0xf]
      %v5174 = vld [vmem:[%s5166 + $0x1c] sm:$0xf]
      %v5183 = vunpack.c.l.b16 %v5167
      %v5184 = vunpack.c.l.b16 %v5168
      %v5185 = vunpack.c.l.b16 %v5169
      %v5186 = vunpack.c.l.b16 %v5170
      %v5187 = vunpack.c.l.b16 %v5171
      %v5188 = vunpack.c.l.b16 %v5172
      %v5189 = vunpack.c.l.b16 %v5173
      %v5190 = vunpack.c.l.b16 %v5174
      %v5191 = vpack.c.b16 %v5184, %v5183
      %v5192 = vpack.c.b16 %v5186, %v5185
      %v5193 = vpack.c.b16 %v5188, %v5187
      %v5194 = vpack.c.b16 %v5190, %v5189
      %v5200 = vsel %vm4329, %v5165, 0
      %5202 = vmatprep.subr.bf16.mxu0 0
      %5203 = vmatpush1.bf16.msra.mxu0 %v5191
      %5204 = vmatprep.subr.bf16.mxu0 0
      %5205 = vmatpush1.bf16.msra.mxu0 %v5192
      %5206 = vmatprep.subr.bf16.mxu0 0
      %5207 = vmatpush1.bf16.msra.mxu0 %v5193
      %5208 = vmatprep.subr.bf16.mxu0 0
      %5209 = vmatpush1.bf16.msra.mxu0 %v5194
      %5210 = vmatprep.subr.bf16.mxu0 0
      %5211 = vmatpush1.bf16.msra.mxu0 0
      %5212 = vmatprep.subr.bf16.mxu0 0
      %5213 = vmatpush1.bf16.msra.mxu0 0
      %5214 = vmatprep.subr.bf16.mxu0 0
      %5215 = vmatpush1.bf16.msra.mxu0 0
      %5216 = vmatprep.subr.bf16.mxu0 0
      %5217 = vmatpush1.bf16.msra.mxu0 0
      %5218 = vmatprep.subr.bf16.mxu0 0
      %5219 = vmatpush1.bf16.msra.mxu0 0
      %5220 = vmatprep.subr.bf16.mxu0 0
      %5221 = vmatpush1.bf16.msra.mxu0 0
      %5222 = vmatprep.subr.bf16.mxu0 0
      %5223 = vmatpush1.bf16.msra.mxu0 0
      %5224 = vmatprep.subr.bf16.mxu0 0
      %5225 = vmatpush1.bf16.msra.mxu0 0
      %5226 = vmatprep.subr.bf16.mxu0 0
      %5227 = vmatpush1.bf16.msra.mxu0 0
      %5228 = vmatprep.subr.bf16.mxu0 0
      %5229 = vmatpush1.bf16.msra.mxu0 0
      %5230 = vmatprep.subr.bf16.mxu0 0
      %5231 = vmatpush1.bf16.msra.mxu0 0
      %5232 = vmatprep.subr.bf16.mxu0 0
      %5233 = vmatpush1.bf16.msra.mxu0 0
      %5234 = vmatprep.mubr.bf16.mxu0 0
      %5235 = vmatmul.mubr.bf16.gmra.mrb[0].mxu0 %v5200
      %v5236 = vpop.f32.mrb[0].mxu0
      %v5237 = vadd.f32 0.0, %v5236
      %v5238 = vpop.f32.mrb[0].mxu0
      %v5239 = vpop.f32.mrb[0].mxu0
      %v5240 = vadd.f32 0.0, %v5239
      %v5241 = vpop.f32.mrb[0].mxu0
      %5242 = vdwg.mxu0
      %v5243 = vadd.f32 %v5111, %v5237
      %v5244 = vadd.f32 %v5112, %v5240
      %s5245 = scalar_lea.vmem %s6, 48
      %v5246 = vld [vmem:[%s5245] sm:$0xf]
      %v5247 = vld [vmem:[%s5245 + $0x4] sm:$0xf]
      %v5250 = vunpack.c.l.b16 %v5246
      %v5251 = vunpack.c.l.b16 %v5247
      %v5252 = vpack.c.b16 %v5251, %v5250
      %v5254 = vsel %vm4329, %v5252, 0
      %5256 = vmatprep.subr.bf16.mxu0 0
      %5257 = vmatpush1.bf16.msra.mxu0 %v4455
      %5258 = vmatprep.subr.bf16.mxu0 0
      %5259 = vmatpush1.bf16.msra.mxu0 %v4456
      %5260 = vmatprep.subr.bf16.mxu0 0
      %5261 = vmatpush1.bf16.msra.mxu0 %v4457
      %5262 = vmatprep.subr.bf16.mxu0 0
      %5263 = vmatpush1.bf16.msra.mxu0 %v4458
      %5264 = vmatprep.subr.bf16.mxu0 0
      %5265 = vmatpush1.bf16.msra.mxu0 0
      %5266 = vmatprep.subr.bf16.mxu0 0
      %5267 = vmatpush1.bf16.msra.mxu0 0
      %5268 = vmatprep.subr.bf16.mxu0 0
      %5269 = vmatpush1.bf16.msra.mxu0 0
      %5270 = vmatprep.subr.bf16.mxu0 0
      %5271 = vmatpush1.bf16.msra.mxu0 0
      %5272 = vmatprep.subr.bf16.mxu0 0
      %5273 = vmatpush1.bf16.msra.mxu0 0
      %5274 = vmatprep.subr.bf16.mxu0 0
      %5275 = vmatpush1.bf16.msra.mxu0 0
      %5276 = vmatprep.subr.bf16.mxu0 0
      %5277 = vmatpush1.bf16.msra.mxu0 0
      %5278 = vmatprep.subr.bf16.mxu0 0
      %5279 = vmatpush1.bf16.msra.mxu0 0
      %5280 = vmatprep.subr.bf16.mxu0 0
      %5281 = vmatpush1.bf16.msra.mxu0 0
      %5282 = vmatprep.subr.bf16.mxu0 0
      %5283 = vmatpush1.bf16.msra.mxu0 0
      %5284 = vmatprep.subr.bf16.mxu0 0
      %5285 = vmatpush1.bf16.msra.mxu0 0
      %5286 = vmatprep.subr.bf16.mxu0 0
      %5287 = vmatpush1.bf16.msra.mxu0 0
      %5288 = vmatprep.mubr.bf16.mxu0 0
      %5289 = vmatmul.mubr.bf16.gmra.mrb[0].mxu0 %v5254
      %v5290 = vpop.f32.mrb[0].mxu0
      %v5291 = vadd.f32 0.0, %v5290
      %v5292 = vpop.f32.mrb[0].mxu0
      %v5293 = vpop.f32.mrb[0].mxu0
      %v5294 = vadd.f32 0.0, %v5293
      %v5295 = vpop.f32.mrb[0].mxu0
      %5296 = vdwg.mxu0
      %v5297 = vpack.c.bf16 %v5294, %v5291
      %s5298 = scalar_lea.vmem %s7, 192
      %v5299 = vld [vmem:[%s5298] sm:$0xf]
      %v5300 = vld [vmem:[%s5298 + $0x4] sm:$0xf]
      %v5301 = vld [vmem:[%s5298 + $0x8] sm:$0xf]
      %v5302 = vld [vmem:[%s5298 + $0xc] sm:$0xf]
      %v5303 = vld [vmem:[%s5298 + $0x10] sm:$0xf]
      %v5304 = vld [vmem:[%s5298 + $0x14] sm:$0xf]
      %v5305 = vld [vmem:[%s5298 + $0x18] sm:$0xf]
      %v5306 = vld [vmem:[%s5298 + $0x1c] sm:$0xf]
      %v5315 = vunpack.c.l.b16 %v5299
      %v5316 = vunpack.c.l.b16 %v5300
      %v5317 = vunpack.c.l.b16 %v5301
      %v5318 = vunpack.c.l.b16 %v5302
      %v5319 = vunpack.c.l.b16 %v5303
      %v5320 = vunpack.c.l.b16 %v5304
      %v5321 = vunpack.c.l.b16 %v5305
      %v5322 = vunpack.c.l.b16 %v5306
      %v5323 = vpack.c.b16 %v5316, %v5315
      %v5324 = vpack.c.b16 %v5318, %v5317
      %v5325 = vpack.c.b16 %v5320, %v5319
      %v5326 = vpack.c.b16 %v5322, %v5321
      %v5332 = vsel %vm4329, %v5297, 0
      %5334 = vmatprep.subr.bf16.mxu0 0
      %5335 = vmatpush1.bf16.msra.mxu0 %v5323
      %5336 = vmatprep.subr.bf16.mxu0 0
      %5337 = vmatpush1.bf16.msra.mxu0 %v5324
      %5338 = vmatprep.subr.bf16.mxu0 0
      %5339 = vmatpush1.bf16.msra.mxu0 %v5325
      %5340 = vmatprep.subr.bf16.mxu0 0
      %5341 = vmatpush1.bf16.msra.mxu0 %v5326
      %5342 = vmatprep.subr.bf16.mxu0 0
      %5343 = vmatpush1.bf16.msra.mxu0 0
      %5344 = vmatprep.subr.bf16.mxu0 0
      %5345 = vmatpush1.bf16.msra.mxu0 0
      %5346 = vmatprep.subr.bf16.mxu0 0
      %5347 = vmatpush1.bf16.msra.mxu0 0
      %5348 = vmatprep.subr.bf16.mxu0 0
      %5349 = vmatpush1.bf16.msra.mxu0 0
      %5350 = vmatprep.subr.bf16.mxu0 0
      %5351 = vmatpush1.bf16.msra.mxu0 0
      %5352 = vmatprep.subr.bf16.mxu0 0
      %5353 = vmatpush1.bf16.msra.mxu0 0
      %5354 = vmatprep.subr.bf16.mxu0 0
      %5355 = vmatpush1.bf16.msra.mxu0 0
      %5356 = vmatprep.subr.bf16.mxu0 0
      %5357 = vmatpush1.bf16.msra.mxu0 0
      %5358 = vmatprep.subr.bf16.mxu0 0
      %5359 = vmatpush1.bf16.msra.mxu0 0
      %5360 = vmatprep.subr.bf16.mxu0 0
      %5361 = vmatpush1.bf16.msra.mxu0 0
      %5362 = vmatprep.subr.bf16.mxu0 0
      %5363 = vmatpush1.bf16.msra.mxu0 0
      %5364 = vmatprep.subr.bf16.mxu0 0
      %5365 = vmatpush1.bf16.msra.mxu0 0
      %5366 = vmatprep.mubr.bf16.mxu0 0
      %5367 = vmatmul.mubr.bf16.gmra.mrb[0].mxu0 %v5332
      %v5368 = vpop.f32.mrb[0].mxu0
      %v5369 = vadd.f32 0.0, %v5368
      %v5370 = vpop.f32.mrb[0].mxu0
      %v5371 = vpop.f32.mrb[0].mxu0
      %v5372 = vadd.f32 0.0, %v5371
      %v5373 = vpop.f32.mrb[0].mxu0
      %5374 = vdwg.mxu0
      %v5375 = vadd.f32 %v5243, %v5369
      %v5376 = vadd.f32 %v5244, %v5372
      %s5377 = scalar_lea.vmem %s6, 56
      %v5378 = vld [vmem:[%s5377] sm:$0xf]
      %v5379 = vld [vmem:[%s5377 + $0x4] sm:$0xf]
      %v5382 = vunpack.c.l.b16 %v5378
      %v5383 = vunpack.c.l.b16 %v5379
      %v5384 = vpack.c.b16 %v5383, %v5382
      %v5386 = vsel %vm4329, %v5384, 0
      %5388 = vmatprep.subr.bf16.mxu0 0
      %5389 = vmatpush1.bf16.msra.mxu0 %v4455
      %5390 = vmatprep.subr.bf16.mxu0 0
      %5391 = vmatpush1.bf16.msra.mxu0 %v4456
      %5392 = vmatprep.subr.bf16.mxu0 0
      %5393 = vmatpush1.bf16.msra.mxu0 %v4457
      %5394 = vmatprep.subr.bf16.mxu0 0
      %5395 = vmatpush1.bf16.msra.mxu0 %v4458
      %5396 = vmatprep.subr.bf16.mxu0 0
      %5397 = vmatpush1.bf16.msra.mxu0 0
      %5398 = vmatprep.subr.bf16.mxu0 0
      %5399 = vmatpush1.bf16.msra.mxu0 0
      %5400 = vmatprep.subr.bf16.mxu0 0
      %5401 = vmatpush1.bf16.msra.mxu0 0
      %5402 = vmatprep.subr.bf16.mxu0 0
      %5403 = vmatpush1.bf16.msra.mxu0 0
      %5404 = vmatprep.subr.bf16.mxu0 0
      %5405 = vmatpush1.bf16.msra.mxu0 0
      %5406 = vmatprep.subr.bf16.mxu0 0
      %5407 = vmatpush1.bf16.msra.mxu0 0
      %5408 = vmatprep.subr.bf16.mxu0 0
      %5409 = vmatpush1.bf16.msra.mxu0 0
      %5410 = vmatprep.subr.bf16.mxu0 0
      %5411 = vmatpush1.bf16.msra.mxu0 0
      %5412 = vmatprep.subr.bf16.mxu0 0
      %5413 = vmatpush1.bf16.msra.mxu0 0
      %5414 = vmatprep.subr.bf16.mxu0 0
      %5415 = vmatpush1.bf16.msra.mxu0 0
      %5416 = vmatprep.subr.bf16.mxu0 0
      %5417 = vmatpush1.bf16.msra.mxu0 0
      %5418 = vmatprep.subr.bf16.mxu0 0
      %5419 = vmatpush1.bf16.msra.mxu0 0
      %5420 = vmatprep.mubr.bf16.mxu0 0
      %5421 = vmatmul.mubr.bf16.gmra.mrb[0].mxu0 %v5386
      %v5422 = vpop.f32.mrb[0].mxu0
      %v5423 = vadd.f32 0.0, %v5422
      %v5424 = vpop.f32.mrb[0].mxu0
      %v5425 = vpop.f32.mrb[0].mxu0
      %v5426 = vadd.f32 0.0, %v5425
      %v5427 = vpop.f32.mrb[0].mxu0
      %5428 = vdwg.mxu0
      %v5429 = vpack.c.bf16 %v5426, %v5423
      %s5430 = scalar_lea.vmem %s7, 224
      %v5431 = vld [vmem:[%s5430] sm:$0xf]
      %v5432 = vld [vmem:[%s5430 + $0x4] sm:$0xf]
      %v5433 = vld [vmem:[%s5430 + $0x8] sm:$0xf]
      %v5434 = vld [vmem:[%s5430 + $0xc] sm:$0xf]
      %v5435 = vld [vmem:[%s5430 + $0x10] sm:$0xf]
      %v5436 = vld [vmem:[%s5430 + $0x14] sm:$0xf]
      %v5437 = vld [vmem:[%s5430 + $0x18] sm:$0xf]
      %v5438 = vld [vmem:[%s5430 + $0x1c] sm:$0xf]
      %v5447 = vunpack.c.l.b16 %v5431
      %v5448 = vunpack.c.l.b16 %v5432
      %v5449 = vunpack.c.l.b16 %v5433
      %v5450 = vunpack.c.l.b16 %v5434
      %v5451 = vunpack.c.l.b16 %v5435
      %v5452 = vunpack.c.l.b16 %v5436
      %v5453 = vunpack.c.l.b16 %v5437
      %v5454 = vunpack.c.l.b16 %v5438
      %v5455 = vpack.c.b16 %v5448, %v5447
      %v5456 = vpack.c.b16 %v5450, %v5449
      %v5457 = vpack.c.b16 %v5452, %v5451
      %v5458 = vpack.c.b16 %v5454, %v5453
      %v5464 = vsel %vm4329, %v5429, 0
      %5466 = vmatprep.subr.bf16.mxu0 0
      %5467 = vmatpush1.bf16.msra.mxu0 %v5455
      %5468 = vmatprep.subr.bf16.mxu0 0
      %5469 = vmatpush1.bf16.msra.mxu0 %v5456
      %5470 = vmatprep.subr.bf16.mxu0 0
      %5471 = vmatpush1.bf16.msra.mxu0 %v5457
      %5472 = vmatprep.subr.bf16.mxu0 0
      %5473 = vmatpush1.bf16.msra.mxu0 %v5458
      %5474 = vmatprep.subr.bf16.mxu0 0
      %5475 = vmatpush1.bf16.msra.mxu0 0
      %5476 = vmatprep.subr.bf16.mxu0 0
      %5477 = vmatpush1.bf16.msra.mxu0 0
      %5478 = vmatprep.subr.bf16.mxu0 0
      %5479 = vmatpush1.bf16.msra.mxu0 0
      %5480 = vmatprep.subr.bf16.mxu0 0
      %5481 = vmatpush1.bf16.msra.mxu0 0
      %5482 = vmatprep.subr.bf16.mxu0 0
      %5483 = vmatpush1.bf16.msra.mxu0 0
      %5484 = vmatprep.subr.bf16.mxu0 0
      %5485 = vmatpush1.bf16.msra.mxu0 0
      %5486 = vmatprep.subr.bf16.mxu0 0
      %5487 = vmatpush1.bf16.msra.mxu0 0
      %5488 = vmatprep.subr.bf16.mxu0 0
      %5489 = vmatpush1.bf16.msra.mxu0 0
      %5490 = vmatprep.subr.bf16.mxu0 0
      %5491 = vmatpush1.bf16.msra.mxu0 0
      %5492 = vmatprep.subr.bf16.mxu0 0
      %5493 = vmatpush1.bf16.msra.mxu0 0
      %5494 = vmatprep.subr.bf16.mxu0 0
      %5495 = vmatpush1.bf16.msra.mxu0 0
      %5496 = vmatprep.subr.bf16.mxu0 0
      %5497 = vmatpush1.bf16.msra.mxu0 0
      %5498 = vmatprep.mubr.bf16.mxu0 0
      %5499 = vmatmul.mubr.bf16.gmra.mrb[0].mxu0 %v5464
      %v5500 = vpop.f32.mrb[0].mxu0
      %v5501 = vadd.f32 0.0, %v5500
      %v5502 = vpop.f32.mrb[0].mxu0
      %v5503 = vpop.f32.mrb[0].mxu0
      %v5504 = vadd.f32 0.0, %v5503
      %v5505 = vpop.f32.mrb[0].mxu0
      %5506 = vdwg.mxu0
      %v5507 = vadd.f32 %v5375, %v5501
      %v5508 = vadd.f32 %v5376, %v5504
      %s5509 = scalar_lea.vmem %s6, 64
      %v5510 = vld [vmem:[%s5509] sm:$0xf]
      %v5511 = vld [vmem:[%s5509 + $0x4] sm:$0xf]
      %v5514 = vunpack.c.l.b16 %v5510
      %v5515 = vunpack.c.l.b16 %v5511
      %v5516 = vpack.c.b16 %v5515, %v5514
      %v5518 = vsel %vm4329, %v5516, 0
      %5520 = vmatprep.subr.bf16.mxu0 0
      %5521 = vmatpush1.bf16.msra.mxu0 %v4455
      %5522 = vmatprep.subr.bf16.mxu0 0
      %5523 = vmatpush1.bf16.msra.mxu0 %v4456
      %5524 = vmatprep.subr.bf16.mxu0 0
      %5525 = vmatpush1.bf16.msra.mxu0 %v4457
      %5526 = vmatprep.subr.bf16.mxu0 0
      %5527 = vmatpush1.bf16.msra.mxu0 %v4458
      %5528 = vmatprep.subr.bf16.mxu0 0
      %5529 = vmatpush1.bf16.msra.mxu0 0
      %5530 = vmatprep.subr.bf16.mxu0 0
      %5531 = vmatpush1.bf16.msra.mxu0 0
      %5532 = vmatprep.subr.bf16.mxu0 0
      %5533 = vmatpush1.bf16.msra.mxu0 0
      %5534 = vmatprep.subr.bf16.mxu0 0
      %5535 = vmatpush1.bf16.msra.mxu0 0
      %5536 = vmatprep.subr.bf16.mxu0 0
      %5537 = vmatpush1.bf16.msra.mxu0 0
      %5538 = vmatprep.subr.bf16.mxu0 0
      %5539 = vmatpush1.bf16.msra.mxu0 0
      %5540 = vmatprep.subr.bf16.mxu0 0
      %5541 = vmatpush1.bf16.msra.mxu0 0
      %5542 = vmatprep.subr.bf16.mxu0 0
      %5543 = vmatpush1.bf16.msra.mxu0 0
      %5544 = vmatprep.subr.bf16.mxu0 0
      %5545 = vmatpush1.bf16.msra.mxu0 0
      %5546 = vmatprep.subr.bf16.mxu0 0
      %5547 = vmatpush1.bf16.msra.mxu0 0
      %5548 = vmatprep.subr.bf16.mxu0 0
      %5549 = vmatpush1.bf16.msra.mxu0 0
      %5550 = vmatprep.subr.bf16.mxu0 0
      %5551 = vmatpush1.bf16.msra.mxu0 0
      %5552 = vmatprep.mubr.bf16.mxu0 0
      %5553 = vmatmul.mubr.bf16.gmra.mrb[0].mxu0 %v5518
      %v5554 = vpop.f32.mrb[0].mxu0
      %v5555 = vadd.f32 0.0, %v5554
      %v5556 = vpop.f32.mrb[0].mxu0
      %v5557 = vpop.f32.mrb[0].mxu0
      %v5558 = vadd.f32 0.0, %v5557
      %v5559 = vpop.f32.mrb[0].mxu0
      %5560 = vdwg.mxu0
      %v5561 = vpack.c.bf16 %v5558, %v5555
      %s5562 = scalar_lea.vmem %s7, 256
      %v5563 = vld [vmem:[%s5562] sm:$0xf]
      %v5564 = vld [vmem:[%s5562 + $0x4] sm:$0xf]
      %v5565 = vld [vmem:[%s5562 + $0x8] sm:$0xf]
      %v5566 = vld [vmem:[%s5562 + $0xc] sm:$0xf]
      %v5567 = vld [vmem:[%s5562 + $0x10] sm:$0xf]
      %v5568 = vld [vmem:[%s5562 + $0x14] sm:$0xf]
      %v5569 = vld [vmem:[%s5562 + $0x18] sm:$0xf]
      %v5570 = vld [vmem:[%s5562 + $0x1c] sm:$0xf]
      %v5579 = vunpack.c.l.b16 %v5563
      %v5580 = vunpack.c.l.b16 %v5564
      %v5581 = vunpack.c.l.b16 %v5565
      %v5582 = vunpack.c.l.b16 %v5566
      %v5583 = vunpack.c.l.b16 %v5567
      %v5584 = vunpack.c.l.b16 %v5568
      %v5585 = vunpack.c.l.b16 %v5569
      %v5586 = vunpack.c.l.b16 %v5570
      %v5587 = vpack.c.b16 %v5580, %v5579
      %v5588 = vpack.c.b16 %v5582, %v5581
      %v5589 = vpack.c.b16 %v5584, %v5583
      %v5590 = vpack.c.b16 %v5586, %v5585
      %v5596 = vsel %vm4329, %v5561, 0
      %5598 = vmatprep.subr.bf16.mxu0 0
      %5599 = vmatpush1.bf16.msra.mxu0 %v5587
      %5600 = vmatprep.subr.bf16.mxu0 0
      %5601 = vmatpush1.bf16.msra.mxu0 %v5588
      %5602 = vmatprep.subr.bf16.mxu0 0
      %5603 = vmatpush1.bf16.msra.mxu0 %v5589
      %5604 = vmatprep.subr.bf16.mxu0 0
      %5605 = vmatpush1.bf16.msra.mxu0 %v5590
      %5606 = vmatprep.subr.bf16.mxu0 0
      %5607 = vmatpush1.bf16.msra.mxu0 0
      %5608 = vmatprep.subr.bf16.mxu0 0
      %5609 = vmatpush1.bf16.msra.mxu0 0
      %5610 = vmatprep.subr.bf16.mxu0 0
      %5611 = vmatpush1.bf16.msra.mxu0 0
      %5612 = vmatprep.subr.bf16.mxu0 0
      %5613 = vmatpush1.bf16.msra.mxu0 0
      %5614 = vmatprep.subr.bf16.mxu0 0
      %5615 = vmatpush1.bf16.msra.mxu0 0
      %5616 = vmatprep.subr.bf16.mxu0 0
      %5617 = vmatpush1.bf16.msra.mxu0 0
      %5618 = vmatprep.subr.bf16.mxu0 0
      %5619 = vmatpush1.bf16.msra.mxu0 0
      %5620 = vmatprep.subr.bf16.mxu0 0
      %5621 = vmatpush1.bf16.msra.mxu0 0
      %5622 = vmatprep.subr.bf16.mxu0 0
      %5623 = vmatpush1.bf16.msra.mxu0 0
      %5624 = vmatprep.subr.bf16.mxu0 0
      %5625 = vmatpush1.bf16.msra.mxu0 0
      %5626 = vmatprep.subr.bf16.mxu0 0
      %5627 = vmatpush1.bf16.msra.mxu0 0
      %5628 = vmatprep.subr.bf16.mxu0 0
      %5629 = vmatpush1.bf16.msra.mxu0 0
      %5630 = vmatprep.mubr.bf16.mxu0 0
      %5631 = vmatmul.mubr.bf16.gmra.mrb[0].mxu0 %v5596
      %v5632 = vpop.f32.mrb[0].mxu0
      %v5633 = vadd.f32 0.0, %v5632
      %v5634 = vpop.f32.mrb[0].mxu0
      %v5635 = vpop.f32.mrb[0].mxu0
      %v5636 = vadd.f32 0.0, %v5635
      %v5637 = vpop.f32.mrb[0].mxu0
      %5638 = vdwg.mxu0
      %v5639 = vadd.f32 %v5507, %v5633
      %v5640 = vadd.f32 %v5508, %v5636
      %v5641 = vadd.f32 %v5639, %v5640
      %v5642 = vrot.slane %v5641, 4
      %v5643 = vadd.f32 %v5641, %v5642
      %v5644 = vrot.slane %v5643, 2
      %v5645 = vadd.f32 %v5643, %v5644
      %v5646 = vrot.slane %v5645, 1
      %v5647 = vadd.f32 %v5645, %v5646
      %v5648 = vrcp.pop 16.0
      %v5649 = vmul.f32 %v5647, %v5648
      %v5650 = vsub.f32 %v5639, %v5649
      %v5651 = vsub.f32 %v5640, %v5649
      %v5652 = vmul.f32 %v5650, %v5650
      %v5653 = vmul.f32 %v5651, %v5651
      %v5654 = vadd.f32 %v5652, %v5653
      %v5655 = vrot.slane %v5654, 4
      %v5656 = vadd.f32 %v5654, %v5655
      %v5657 = vrot.slane %v5656, 2
      %v5658 = vadd.f32 %v5656, %v5657
      %v5659 = vrot.slane %v5658, 1
      %v5660 = vadd.f32 %v5658, %v5659
      %v5661 = vmul.f32 %v5660, %v5648
      %v5662 = vadd.f32 %v5661, 1e-05
      %v5663 = vrsqrt.pop %v5662
      %v5664 = vmul.f32 %v5650, %v5663
      %v5665 = vmul.f32 %v5651, %v5663
      %v5666 = vld [vmem:[%s8] sm:$0x1]
      %v5668 = vlaneseq
      %v5669 = vshrl.u32 %v5668, 7
      %v5670 = vsub.s32 0, %v5669
      %v5671 = vrot.slane %v5666, %v5670
      %v5673 = vmul.f32 %v5664, %v5671
      %v5674 = vmul.f32 %v5665, %v5671
      %v5675 = vld [vmem:[%s9] sm:$0x1]
      %v5677 = vlaneseq
      %v5678 = vshrl.u32 %v5677, 7
      %v5679 = vsub.s32 0, %v5678
      %v5680 = vrot.slane %v5675, %v5679
      %v5682 = vadd.f32 %v5673, %v5680
      %v5683 = vadd.f32 %v5674, %v5680
      %vm5684 = vcmp.ge.f32.partialorder %v5682, 0.0
      %vm5685 = vcmp.ge.f32.partialorder %v5683, 0.0
      %v5686 = vmul.f32 %v5682, 0.2
      %v5687 = vmul.f32 %v5683, 0.2
      %v5688 = vsel %vm5684, %v5682, %v5686
      %v5689 = vsel %vm5685, %v5683, %v5687
      %v5690 = vld [vmem:[%s10] sm:$0xff]
      %v5691 = vld [vmem:[%s10 + $0x8] sm:$0xff]
      %v5692 = vmul.f32 %v5688, %v5690
      %v5693 = vmul.f32 %v5689, %v5691
      %v5694 = vadd.f32 %v5692, %v5693
      %v5695 = vrot.slane %v5694, 4
      %v5696 = vadd.f32 %v5694, %v5695
      %v5697 = vrot.slane %v5696, 2
      %v5698 = vadd.f32 %v5696, %v5697
      %v5699 = vrot.slane %v5698, 1
      %v5700 = vadd.f32 %v5698, %v5699
      %5701 = vadd.xlane.f32.xlu0 %v5700
      %v5702 = vpop.xlane.xlu0 %5701
      %vm5703 = vcmask 0
      %5704 = vst.msk [vmem:[%s382] sm:$0x1] %vm5703, %v5702
      %p5705 = scmp.lt.s32.totalorder %s22, 1
      %s5706 = scalar_select %p5705, %s22, 1
      %s5707 = scalar_lea.vmem %s11, %s5706
      // Predicated region
      $region65: #{conv_discriminator_forward.1} parent=63 // pred_check
        %p5708 = pneg %p276
      $region66: #{conv_discriminator_forward.1} parent=63 // pred_check_branch
        %5710 = sbr.rel (%p5708) target = $region68
      $region67: #{conv_discriminator_forward.1} parent=63 // pred_region
        _
      $region68: #{conv_discriminator_forward.1} parent=63 // pred_fallthru
        _
    $region64: #{conv_discriminator_forward.1} parent=5 // pred_fallthru
      _
    %p5711 = scmp.le.s32.totalorder 2, %s17
    // Predicated region
    $region69: #{conv_discriminator_forward.1} parent=5 // pred_check
      %p5712 = pneg %p5711
    $region70: #{conv_discriminator_forward.1} parent=5 // pred_check_branch
      %5714 = sbr.rel (%p5712) target = $region72
    $region71: #{conv_discriminator_forward.1} parent=5 // pred_region
      %s5715 = ssub.s32 %s17, 2
      // Predicated region
      $region73: #{conv_discriminator_forward.1} parent=71 // pred_check
        %p5716 = pneg %p282
      $region74: #{conv_discriminator_forward.1} parent=71 // pred_check_branch
        %5718 = sbr.rel (%p5716) target = $region76
      $region75: #{conv_discriminator_forward.1} parent=71 // pred_region
        %p5719 = scmp.lt.s32.totalorder %s23, 1
        %s5720 = scalar_select %p5719, %s23, 1
        %s5721 = scalar_lea.vmem %s11, %s5720
      $region76: #{conv_discriminator_forward.1} parent=71 // pred_fallthru
        _
    $region72: #{conv_discriminator_forward.1} parent=5 // pred_fallthru
      _
  $region6: #{conv_discriminator_forward.1} parent=0 // loop_footer
    %s21 = sadd.s32 1, %s17
  $region7: #{conv_discriminator_forward.1} parent=0 // loop_footer_branch
    %16 = sbr.rel target = $region3
  $region8: #{conv_discriminator_forward.1} parent=0 // loop_exit
    _

</llo_original>
